<compile_context>
chip_gen: v6e
topology: v6e:2x2x1
jax: 0.10.0
libtpu: 0.0.40
codegen_flags: <defaults>
</compile_context>

<pallas_src>
import functools

import jax
import jax.numpy as jnp
from jax.experimental import pallas as pl
from jax.experimental.pallas import tpu as pltpu

EPS = 1e-5  # F.layer_norm default eps


def _round_up(n, m=128):
    return ((n + m - 1) // m) * m


# ------------------------------ fused kernel ------------------------------

def _fused_kernel(
    x_ref,
    # top attention layer (basis_dim -> hidden), padded
    twq_ref, tbq_ref, twk_ref, tbk_ref, twv_ref, tbv_ref,
    tw0_ref, tb0_ref, tw1_ref, tb1_ref,
    # stacked middle attention layers (L, ...), padded
    swq_ref, sbq_ref, swk_ref, sbk_ref, swv_ref, sbv_ref,
    sw0_ref, sb0_ref, sw1_ref, sb1_ref,
    # head (fc1, fc2, final_dense), padded
    hw1_ref, hb1_ref, hw2_ref, hb2_ref, hwf_ref, hbf_ref,
    o_ref,
    *, hidden_dim):
    """One full WeightsGenerator forward for a single (S, Dp) sequence."""
    hp = twq_ref.shape[1]                      # padded hidden width (multiple of 128)
    lane = jax.lax.broadcasted_iota(jnp.int32, (1, hp), 1)
    mask = (lane < hidden_dim).astype(jnp.float32)   # 1.0 on real hidden lanes
    inv_h = 1.0 / float(hidden_dim)

    def layer_norm(h):
        # per-row layer norm over the REAL hidden lanes only (padded lanes are zero
        # on input and forced to zero on output).
        mu = jnp.sum(h, axis=-1, keepdims=True) * inv_h
        d = (h - mu) * mask
        var = jnp.sum(d * d, axis=-1, keepdims=True) * inv_h
        return d * jax.lax.rsqrt(var + EPS)

    def attention_layer(h, wq, bq, wk, bk, wv, bv, w0, b0, w1, b1):
        hb = h.astype(jnp.bfloat16)
        q = jnp.dot(hb, wq, preferred_element_type=jnp.float32) + bq
        k = jnp.dot(hb, wk, preferred_element_type=jnp.float32) + bk  # scale pre-folded
        v = jnp.dot(hb, wv, preferred_element_type=jnp.float32) + bv
        # scores = q @ k^T  (1/sqrt(d_k) already folded into the key projection)
        s = jax.lax.dot_general(
            q.astype(jnp.bfloat16), k.astype(jnp.bfloat16),
            (((1,), (1,)), ((), ())), preferred_element_type=jnp.float32)
        s = s - jnp.max(s, axis=-1, keepdims=True)
        p = jnp.exp(s)
        attn = p * pl.reciprocal(jnp.sum(p, axis=-1, keepdims=True), approx=True)
        ws = jnp.dot(attn.astype(jnp.bfloat16), v.astype(jnp.bfloat16),
                     preferred_element_type=jnp.float32)
        h1 = layer_norm(ws + q)
        d0 = jnp.maximum(
            jnp.dot(h1.astype(jnp.bfloat16), w0, preferred_element_type=jnp.float32) + b0,
            0.0)
        h2 = h1 + jnp.dot(d0.astype(jnp.bfloat16), w1,
                          preferred_element_type=jnp.float32) + b1
        return layer_norm(h2)

    # ---- top attention layer (basis_dim -> hidden) ----
    h = x_ref[0]                               # (S, Dp) float32
    h = attention_layer(h,
                        twq_ref[...], tbq_ref[...], twk_ref[...], tbk_ref[...],
                        twv_ref[...], tbv_ref[...], tw0_ref[...], tb0_ref[...],
                        tw1_ref[...], tb1_ref[...])

    # ---- stacked middle attention layers (fully unrolled, static indices) ----
    num_layers = swq_ref.shape[0]
    for l in range(num_layers):
        h = attention_layer(h,
                            swq_ref[l], sbq_ref[l], swk_ref[l], sbk_ref[l],
                            swv_ref[l], sbv_ref[l], sw0_ref[l], sb0_ref[l],
                            sw1_ref[l], sb1_ref[l])

    # ---- head: relu(fc1) -> relu(fc2) -> final_dense ----
    z = jnp.maximum(
        jnp.dot(h.astype(jnp.bfloat16), hw1_ref[...],
                preferred_element_type=jnp.float32) + hb1_ref[...], 0.0)
    z = jnp.maximum(
        jnp.dot(z.astype(jnp.bfloat16), hw2_ref[...],
                preferred_element_type=jnp.float32) + hb2_ref[...], 0.0)
    o_ref[0] = (jnp.dot(z.astype(jnp.bfloat16), hwf_ref[...],
                        preferred_element_type=jnp.float32) + hbf_ref[...])


# ------------------------------ wrapper ------------------------------

def _resident_spec(a):
    # full-array block, constant index map -> fetched once, VMEM-resident across grid.
    zeros = (0,) * a.ndim
    return pl.BlockSpec(a.shape, lambda b, _z=zeros: _z)


def weights_generator_forward(x, prepared):
    """x: (S, basis_dim) or (B, S, basis_dim) float32; returns same leading shape
    with last dim = basis_dim."""
    basis_dim, hidden, dp, hp = prepared["dims"]
    squeeze = x.ndim == 2
    if squeeze:
        x = x[None]
    b, s, d = x.shape
    x_pad = jnp.pad(x.astype(jnp.float32), ((0, 0), (0, 0), (0, dp - d)))

    args = (x_pad,) + prepared["top"] + prepared["stack"] + prepared["head"]
    in_specs = [pl.BlockSpec((1, s, dp), lambda i: (i, 0, 0))]
    in_specs += [_resident_spec(a) for a in args[1:]]

    out = pl.pallas_call(
        functools.partial(_fused_kernel, hidden_dim=hidden),
        grid=(b,),
        in_specs=in_specs,
        out_specs=pl.BlockSpec((1, s, dp), lambda i: (i, 0, 0)),
        out_shape=jax.ShapeDtypeStruct((b, s, dp), jnp.float32),
        compiler_params=pltpu.CompilerParams(
            dimension_semantics=("parallel",),   # shard independent sequences over TCs
            vmem_limit_bytes=32 * 1024 * 1024,   # explicit budget (fits v5e/v6e/v7x)
        ),
    )(*args)

    out = out[:, :, :basis_dim]
    return out[0] if squeeze else out


# ---------------- deterministic parameter construction ----------------

def _init_linear(key, din, dout):
    """PyTorch nn.Linear-style uniform init; weight stored transposed (din, dout)."""
    kw, kb = jax.random.split(key)
    bound = 1.0 / (din ** 0.5)
    w = jax.random.uniform(kw, (din, dout), jnp.float32, -bound, bound)
    b = jax.random.uniform(kb, (1, dout), jnp.float32, -bound, bound)
    return w, b


def _init_attention_layer(key, din, hidden):
    ks = jax.random.split(key, 5)
    wq, bq = _init_linear(ks[0], din, hidden)
    wk, bk = _init_linear(ks[1], din, hidden)
    wv, bv = _init_linear(ks[2], din, hidden)
    w0, b0 = _init_linear(ks[3], hidden, hidden * 2)
    w1, b1 = _init_linear(ks[4], hidden * 2, hidden)
    return dict(wq=wq, bq=bq, wk=wk, bk=bk, wv=wv, bv=bv,
                w0=w0, b0=b0, w1=w1, b1=b1)


def init_weights_generator(key, basis_function_dim, hidden_dim, attention_layers):
    keys = jax.random.split(key, attention_layers + 4)
    top = _init_attention_layer(keys[0], basis_function_dim, hidden_dim)
    layers = [_init_attention_layer(keys[1 + i], hidden_dim, hidden_dim)
              for i in range(attention_layers)]
    w1, b1 = _init_linear(keys[attention_layers + 1], hidden_dim, hidden_dim)
    w2, b2 = _init_linear(keys[attention_layers + 2], hidden_dim, hidden_dim)
    wf, bf = _init_linear(keys[attention_layers + 3], hidden_dim, basis_function_dim)
    return dict(top=top, layers=layers,
                head=dict(w1=w1, b1=b1, w2=w2, b2=b2, wf=wf, bf=bf))


# ------------- prep: scale fold, lane padding, bf16 cast, stacking -------------

def _pad2d(w, rows, cols):
    return jnp.pad(w, ((0, rows - w.shape[0]), (0, cols - w.shape[1])))


def _prep_attention_layer(p, din_p, hp, fp, scale):
    # 1/sqrt(d_k) folded into the KEY projection (q also feeds the residual, so it
    # must stay unscaled). Weights -> bf16 (MXU operands); biases stay fp32.
    wq = _pad2d(p["wq"], din_p, hp).astype(jnp.bfloat16)
    bq = _pad2d(p["bq"], 1, hp)
    wk = _pad2d(p["wk"] * scale, din_p, hp).astype(jnp.bfloat16)
    bk = _pad2d(p["bk"] * scale, 1, hp)
    wv = _pad2d(p["wv"], din_p, hp).astype(jnp.bfloat16)
    bv = _pad2d(p["bv"], 1, hp)
    w0 = _pad2d(p["w0"], hp, fp).astype(jnp.bfloat16)
    b0 = _pad2d(p["b0"], 1, fp)
    w1 = _pad2d(p["w1"], fp, hp).astype(jnp.bfloat16)
    b1 = _pad2d(p["b1"], 1, hp)
    return (wq, bq, wk, bk, wv, bv, w0, b0, w1, b1)


def prepare_params(params, basis_function_dim, hidden_dim):
    assert len(params["layers"]) >= 1, "need at least one stacked attention layer"
    dp = _round_up(basis_function_dim, 128)
    hp = _round_up(hidden_dim, 128)
    fp = _round_up(2 * hidden_dim, 128)
    scale = 1.0 / (hidden_dim ** 0.5)          # q.size(-1) == hidden_dim in the module

    top = _prep_attention_layer(params["top"], dp, hp, fp, scale)
    layers = [_prep_attention_layer(lp, hp, hp, fp, scale) for lp in params["layers"]]
    stack = tuple(jnp.stack(ws) for ws in zip(*layers))   # each (L, ...)

    hd = params["head"]
    head = (
        _pad2d(hd["w1"], hp, hp).astype(jnp.bfloat16), _pad2d(hd["b1"], 1, hp),
        _pad2d(hd["w2"], hp, hp).astype(jnp.bfloat16), _pad2d(hd["b2"], 1, hp),
        _pad2d(hd["wf"], hp, dp).astype(jnp.bfloat16), _pad2d(hd["bf"], 1, dp),
    )
    return dict(dims=(basis_function_dim, hidden_dim, dp, hp),
                top=top, stack=stack, head=head)


if __name__ == "__main__":
    # small shapes consistent with the module's forward
    basis_function_dim = 32
    hidden_dim = 64
    attention_layers = 2   # module default is 8; kept small for the demo
    seq = 8                # number of "tokens" fed to the weights generator
    batch = 2              # independent generator invocations (parallel grid axis)

    key = jax.random.PRNGKey(0)
    kp, kx = jax.random.split(key)
    raw_params = init_weights_generator(kp, basis_function_dim, hidden_dim,
                                        attention_layers)
    prepared = prepare_params(raw_params, basis_function_dim, hidden_dim)
    x = jax.random.normal(kx, (batch, seq, basis_function_dim), jnp.float32)

    out = weights_generator_forward(x, prepared)
    out = jax.block_until_ready(out)
    assert out.shape == (batch, seq, basis_function_dim)
    assert out.dtype == jnp.float32
    print("KERNEL_OK")
</pallas_src>

<mosaic_0001>
module attributes {stable_mosaic.version = 11 : i64} {
  func.func @_fused_kernel(%arg0: i32, %arg1: memref<1x8x128xf32, #tpu.memory_space<vmem>>, %arg2: memref<128x128xbf16, #tpu.memory_space<vmem>>, %arg3: memref<1x128xf32, #tpu.memory_space<vmem>>, %arg4: memref<128x128xbf16, #tpu.memory_space<vmem>>, %arg5: memref<1x128xf32, #tpu.memory_space<vmem>>, %arg6: memref<128x128xbf16, #tpu.memory_space<vmem>>, %arg7: memref<1x128xf32, #tpu.memory_space<vmem>>, %arg8: memref<128x128xbf16, #tpu.memory_space<vmem>>, %arg9: memref<1x128xf32, #tpu.memory_space<vmem>>, %arg10: memref<128x128xbf16, #tpu.memory_space<vmem>>, %arg11: memref<1x128xf32, #tpu.memory_space<vmem>>, %arg12: memref<2x128x128xbf16, #tpu.memory_space<vmem>>, %arg13: memref<2x1x128xf32, #tpu.memory_space<vmem>>, %arg14: memref<2x128x128xbf16, #tpu.memory_space<vmem>>, %arg15: memref<2x1x128xf32, #tpu.memory_space<vmem>>, %arg16: memref<2x128x128xbf16, #tpu.memory_space<vmem>>, %arg17: memref<2x1x128xf32, #tpu.memory_space<vmem>>, %arg18: memref<2x128x128xbf16, #tpu.memory_space<vmem>>, %arg19: memref<2x1x128xf32, #tpu.memory_space<vmem>>, %arg20: memref<2x128x128xbf16, #tpu.memory_space<vmem>>, %arg21: memref<2x1x128xf32, #tpu.memory_space<vmem>>, %arg22: memref<128x128xbf16, #tpu.memory_space<vmem>>, %arg23: memref<1x128xf32, #tpu.memory_space<vmem>>, %arg24: memref<128x128xbf16, #tpu.memory_space<vmem>>, %arg25: memref<1x128xf32, #tpu.memory_space<vmem>>, %arg26: memref<128x128xbf16, #tpu.memory_space<vmem>>, %arg27: memref<1x128xf32, #tpu.memory_space<vmem>>, %arg28: memref<1x8x128xf32, #tpu.memory_space<vmem>>) attributes {dimension_semantics = [#tpu.dimension_semantics<parallel>], iteration_bounds = array<i64: 2>, scalar_prefetch = 0 : i64, scratch_operands = 0 : i64, tpu.core_type = #tpu.core_type<tc>, window_params = [{transform_indices = @transform_0, window_bounds = array<i64: 1, 8, 128>}, {pipeline_mode = #tpu.pipeline_mode<synchronous>, transform_indices = @transform_1, window_bounds = array<i64: 128, 128>}, {pipeline_mode = #tpu.pipeline_mode<synchronous>, transform_indices = @transform_2, window_bounds = array<i64: 1, 128>}, {pipeline_mode = #tpu.pipeline_mode<synchronous>, transform_indices = @transform_3, window_bounds = array<i64: 128, 128>}, {pipeline_mode = #tpu.pipeline_mode<synchronous>, transform_indices = @transform_4, window_bounds = array<i64: 1, 128>}, {pipeline_mode = #tpu.pipeline_mode<synchronous>, transform_indices = @transform_5, window_bounds = array<i64: 128, 128>}, {pipeline_mode = #tpu.pipeline_mode<synchronous>, transform_indices = @transform_6, window_bounds = array<i64: 1, 128>}, {pipeline_mode = #tpu.pipeline_mode<synchronous>, transform_indices = @transform_7, window_bounds = array<i64: 128, 128>}, {pipeline_mode = #tpu.pipeline_mode<synchronous>, transform_indices = @transform_8, window_bounds = array<i64: 1, 128>}, {pipeline_mode = #tpu.pipeline_mode<synchronous>, transform_indices = @transform_9, window_bounds = array<i64: 128, 128>}, {pipeline_mode = #tpu.pipeline_mode<synchronous>, transform_indices = @transform_10, window_bounds = array<i64: 1, 128>}, {pipeline_mode = #tpu.pipeline_mode<synchronous>, transform_indices = @transform_11, window_bounds = array<i64: 2, 128, 128>}, {pipeline_mode = #tpu.pipeline_mode<synchronous>, transform_indices = @transform_12, window_bounds = array<i64: 2, 1, 128>}, {pipeline_mode = #tpu.pipeline_mode<synchronous>, transform_indices = @transform_13, window_bounds = array<i64: 2, 128, 128>}, {pipeline_mode = #tpu.pipeline_mode<synchronous>, transform_indices = @transform_14, window_bounds = array<i64: 2, 1, 128>}, {pipeline_mode = #tpu.pipeline_mode<synchronous>, transform_indices = @transform_15, window_bounds = array<i64: 2, 128, 128>}, {pipeline_mode = #tpu.pipeline_mode<synchronous>, transform_indices = @transform_16, window_bounds = array<i64: 2, 1, 128>}, {pipeline_mode = #tpu.pipeline_mode<synchronous>, transform_indices = @transform_17, window_bounds = array<i64: 2, 128, 128>}, {pipeline_mode = #tpu.pipeline_mode<synchronous>, transform_indices = @transform_18, window_bounds = array<i64: 2, 1, 128>}, {pipeline_mode = #tpu.pipeline_mode<synchronous>, transform_indices = @transform_19, window_bounds = array<i64: 2, 128, 128>}, {pipeline_mode = #tpu.pipeline_mode<synchronous>, transform_indices = @transform_20, window_bounds = array<i64: 2, 1, 128>}, {pipeline_mode = #tpu.pipeline_mode<synchronous>, transform_indices = @transform_21, window_bounds = array<i64: 128, 128>}, {pipeline_mode = #tpu.pipeline_mode<synchronous>, transform_indices = @transform_22, window_bounds = array<i64: 1, 128>}, {pipeline_mode = #tpu.pipeline_mode<synchronous>, transform_indices = @transform_23, window_bounds = array<i64: 128, 128>}, {pipeline_mode = #tpu.pipeline_mode<synchronous>, transform_indices = @transform_24, window_bounds = array<i64: 1, 128>}, {pipeline_mode = #tpu.pipeline_mode<synchronous>, transform_indices = @transform_25, window_bounds = array<i64: 128, 128>}, {pipeline_mode = #tpu.pipeline_mode<synchronous>, transform_indices = @transform_26, window_bounds = array<i64: 1, 128>}, {transform_indices = @transform_27, window_bounds = array<i64: 1, 8, 128>}]} {
    %0 = tpu.iota {dimensions = array<i32: 1>} : vector<1x128xi32>
    %c64_i32 = arith.constant 64 : i32
    %1 = vector.broadcast %c64_i32 : i32 to vector<1x128xi32>
    %2 = arith.cmpi slt, %0, %1 : vector<1x128xi32>
    %3 = arith.extui %2 : vector<1x128xi1> to vector<1x128xi32>
    %4 = arith.sitofp %3 : vector<1x128xi32> to vector<1x128xf32>
    %c0 = arith.constant 0 : index
    %c0_0 = arith.constant 0 : index
    %c0_1 = arith.constant 0 : index
    %5 = vector.load %arg1[%c0, %c0_0, %c0_1] : memref<1x8x128xf32, #tpu.memory_space<vmem>>, vector<1x8x128xf32>
    %6 = vector.shape_cast %5 : vector<1x8x128xf32> to vector<8x128xf32>
    %c0_2 = arith.constant 0 : index
    %c0_3 = arith.constant 0 : index
    %7 = vector.load %arg2[%c0_2, %c0_3] : memref<128x128xbf16, #tpu.memory_space<vmem>>, vector<128x128xbf16>
    %c0_4 = arith.constant 0 : index
    %c0_5 = arith.constant 0 : index
    %8 = vector.load %arg3[%c0_4, %c0_5] : memref<1x128xf32, #tpu.memory_space<vmem>>, vector<1x128xf32>
    %c0_6 = arith.constant 0 : index
    %c0_7 = arith.constant 0 : index
    %9 = vector.load %arg4[%c0_6, %c0_7] : memref<128x128xbf16, #tpu.memory_space<vmem>>, vector<128x128xbf16>
    %c0_8 = arith.constant 0 : index
    %c0_9 = arith.constant 0 : index
    %10 = vector.load %arg5[%c0_8, %c0_9] : memref<1x128xf32, #tpu.memory_space<vmem>>, vector<1x128xf32>
    %c0_10 = arith.constant 0 : index
    %c0_11 = arith.constant 0 : index
    %11 = vector.load %arg6[%c0_10, %c0_11] : memref<128x128xbf16, #tpu.memory_space<vmem>>, vector<128x128xbf16>
    %c0_12 = arith.constant 0 : index
    %c0_13 = arith.constant 0 : index
    %12 = vector.load %arg7[%c0_12, %c0_13] : memref<1x128xf32, #tpu.memory_space<vmem>>, vector<1x128xf32>
    %c0_14 = arith.constant 0 : index
    %c0_15 = arith.constant 0 : index
    %13 = vector.load %arg8[%c0_14, %c0_15] : memref<128x128xbf16, #tpu.memory_space<vmem>>, vector<128x128xbf16>
    %c0_16 = arith.constant 0 : index
    %c0_17 = arith.constant 0 : index
    %14 = vector.load %arg9[%c0_16, %c0_17] : memref<1x128xf32, #tpu.memory_space<vmem>>, vector<1x128xf32>
    %c0_18 = arith.constant 0 : index
    %c0_19 = arith.constant 0 : index
    %15 = vector.load %arg10[%c0_18, %c0_19] : memref<128x128xbf16, #tpu.memory_space<vmem>>, vector<128x128xbf16>
    %c0_20 = arith.constant 0 : index
    %c0_21 = arith.constant 0 : index
    %16 = vector.load %arg11[%c0_20, %c0_21] : memref<1x128xf32, #tpu.memory_space<vmem>>, vector<1x128xf32>
    %17 = arith.truncf %6 : vector<8x128xf32> to vector<8x128xbf16>
    %cst = arith.constant dense<0.000000e+00> : vector<8x128xf32>
    %18 = tpu.matmul %17, %7, %cst {dimension_numbers = #tpu.dot_dimension_numbers<[1], [0], [0], [1], [0, 0, 1, 1], [], []>} : vector<8x128xbf16>, vector<128x128xbf16>, vector<8x128xf32> -> vector<8x128xf32>
    %19 = vector.broadcast %8 : vector<1x128xf32> to vector<8x128xf32>
    %20 = arith.addf %18, %19 : vector<8x128xf32>
    %cst_22 = arith.constant dense<0.000000e+00> : vector<8x128xf32>
    %21 = tpu.matmul %17, %9, %cst_22 {dimension_numbers = #tpu.dot_dimension_numbers<[1], [0], [0], [1], [0, 0, 1, 1], [], []>} : vector<8x128xbf16>, vector<128x128xbf16>, vector<8x128xf32> -> vector<8x128xf32>
    %22 = vector.broadcast %10 : vector<1x128xf32> to vector<8x128xf32>
    %23 = arith.addf %21, %22 : vector<8x128xf32>
    %cst_23 = arith.constant dense<0.000000e+00> : vector<8x128xf32>
    %24 = tpu.matmul %17, %11, %cst_23 {dimension_numbers = #tpu.dot_dimension_numbers<[1], [0], [0], [1], [0, 0, 1, 1], [], []>} : vector<8x128xbf16>, vector<128x128xbf16>, vector<8x128xf32> -> vector<8x128xf32>
    %25 = vector.broadcast %12 : vector<1x128xf32> to vector<8x128xf32>
    %26 = arith.addf %24, %25 : vector<8x128xf32>
    %27 = arith.truncf %20 : vector<8x128xf32> to vector<8x128xbf16>
    %28 = arith.truncf %23 : vector<8x128xf32> to vector<8x128xbf16>
    %cst_24 = arith.constant dense<0.000000e+00> : vector<8x8xf32>
    %29 = tpu.matmul %27, %28, %cst_24 {dimension_numbers = #tpu.dot_dimension_numbers<[1], [1], [0], [0], [0, 0, 1, 0], [], []>} : vector<8x128xbf16>, vector<8x128xbf16>, vector<8x8xf32> -> vector<8x8xf32>
    %cst_25 = arith.constant dense<0xFF800000> : vector<8xf32>
    %30 = vector.multi_reduction <maximumf>, %29, %cst_25 [1] : vector<8x8xf32> to vector<8xf32>
    %31 = vector.shape_cast %30 : vector<8xf32> to vector<8x1xf32>
    %32 = vector.broadcast %31 : vector<8x1xf32> to vector<8x8xf32>
    %33 = arith.subf %29, %32 : vector<8x8xf32>
    %34 = math.exp %33 : vector<8x8xf32>
    %cst_26 = arith.constant dense<0.000000e+00> : vector<8xf32>
    %35 = vector.multi_reduction <add>, %34, %cst_26 [1] : vector<8x8xf32> to vector<8xf32>
    %36 = vector.shape_cast %35 : vector<8xf32> to vector<8x1xf32>
    %37 = tpu.reciprocal %36 {approx = true} : vector<8x1xf32> -> vector<8x1xf32>
    %38 = vector.broadcast %37 : vector<8x1xf32> to vector<8x8xf32>
    %39 = arith.mulf %34, %38 : vector<8x8xf32>
    %40 = arith.truncf %39 : vector<8x8xf32> to vector<8x8xbf16>
    %41 = arith.truncf %26 : vector<8x128xf32> to vector<8x128xbf16>
    %cst_27 = arith.constant dense<0.000000e+00> : vector<8x128xf32>
    %42 = tpu.matmul %40, %41, %cst_27 {dimension_numbers = #tpu.dot_dimension_numbers<[1], [0], [0], [1], [0, 0, 1, 1], [], []>} : vector<8x8xbf16>, vector<8x128xbf16>, vector<8x128xf32> -> vector<8x128xf32>
    %43 = arith.addf %42, %20 : vector<8x128xf32>
    %cst_28 = arith.constant dense<0.000000e+00> : vector<8xf32>
    %44 = vector.multi_reduction <add>, %43, %cst_28 [1] : vector<8x128xf32> to vector<8xf32>
    %45 = vector.shape_cast %44 : vector<8xf32> to vector<8x1xf32>
    %cst_29 = arith.constant 1.562500e-02 : f32
    %46 = vector.broadcast %cst_29 : f32 to vector<8x1xf32>
    %47 = arith.mulf %45, %46 : vector<8x1xf32>
    %48 = vector.broadcast %47 : vector<8x1xf32> to vector<8x128xf32>
    %49 = arith.subf %43, %48 : vector<8x128xf32>
    %50 = vector.broadcast %4 : vector<1x128xf32> to vector<8x128xf32>
    %51 = arith.mulf %49, %50 : vector<8x128xf32>
    %52 = arith.mulf %51, %51 : vector<8x128xf32>
    %cst_30 = arith.constant dense<0.000000e+00> : vector<8xf32>
    %53 = vector.multi_reduction <add>, %52, %cst_30 [1] : vector<8x128xf32> to vector<8xf32>
    %54 = vector.shape_cast %53 : vector<8xf32> to vector<8x1xf32>
    %cst_31 = arith.constant 1.562500e-02 : f32
    %55 = vector.broadcast %cst_31 : f32 to vector<8x1xf32>
    %56 = arith.mulf %54, %55 : vector<8x1xf32>
    %cst_32 = arith.constant 9.99999974E-6 : f32
    %57 = vector.broadcast %cst_32 : f32 to vector<8x1xf32>
    %58 = arith.addf %56, %57 : vector<8x1xf32>
    %59 = math.rsqrt %58 : vector<8x1xf32>
    %60 = vector.broadcast %59 : vector<8x1xf32> to vector<8x128xf32>
    %61 = arith.mulf %51, %60 : vector<8x128xf32>
    %62 = arith.truncf %61 : vector<8x128xf32> to vector<8x128xbf16>
    %cst_33 = arith.constant dense<0.000000e+00> : vector<8x128xf32>
    %63 = tpu.matmul %62, %13, %cst_33 {dimension_numbers = #tpu.dot_dimension_numbers<[1], [0], [0], [1], [0, 0, 1, 1], [], []>} : vector<8x128xbf16>, vector<128x128xbf16>, vector<8x128xf32> -> vector<8x128xf32>
    %64 = vector.broadcast %14 : vector<1x128xf32> to vector<8x128xf32>
    %65 = arith.addf %63, %64 : vector<8x128xf32>
    %cst_34 = arith.constant 0.000000e+00 : f32
    %66 = vector.broadcast %cst_34 : f32 to vector<8x128xf32>
    %67 = arith.maximumf %65, %66 : vector<8x128xf32>
    %68 = arith.truncf %67 : vector<8x128xf32> to vector<8x128xbf16>
    %cst_35 = arith.constant dense<0.000000e+00> : vector<8x128xf32>
    %69 = tpu.matmul %68, %15, %cst_35 {dimension_numbers = #tpu.dot_dimension_numbers<[1], [0], [0], [1], [0, 0, 1, 1], [], []>} : vector<8x128xbf16>, vector<128x128xbf16>, vector<8x128xf32> -> vector<8x128xf32>
    %70 = arith.addf %61, %69 : vector<8x128xf32>
    %71 = vector.broadcast %16 : vector<1x128xf32> to vector<8x128xf32>
    %72 = arith.addf %70, %71 : vector<8x128xf32>
    %cst_36 = arith.constant dense<0.000000e+00> : vector<8xf32>
    %73 = vector.multi_reduction <add>, %72, %cst_36 [1] : vector<8x128xf32> to vector<8xf32>
    %74 = vector.shape_cast %73 : vector<8xf32> to vector<8x1xf32>
    %cst_37 = arith.constant 1.562500e-02 : f32
    %75 = vector.broadcast %cst_37 : f32 to vector<8x1xf32>
    %76 = arith.mulf %74, %75 : vector<8x1xf32>
    %77 = vector.broadcast %76 : vector<8x1xf32> to vector<8x128xf32>
    %78 = arith.subf %72, %77 : vector<8x128xf32>
    %79 = vector.broadcast %4 : vector<1x128xf32> to vector<8x128xf32>
    %80 = arith.mulf %78, %79 : vector<8x128xf32>
    %81 = arith.mulf %80, %80 : vector<8x128xf32>
    %cst_38 = arith.constant dense<0.000000e+00> : vector<8xf32>
    %82 = vector.multi_reduction <add>, %81, %cst_38 [1] : vector<8x128xf32> to vector<8xf32>
    %83 = vector.shape_cast %82 : vector<8xf32> to vector<8x1xf32>
    %cst_39 = arith.constant 1.562500e-02 : f32
    %84 = vector.broadcast %cst_39 : f32 to vector<8x1xf32>
    %85 = arith.mulf %83, %84 : vector<8x1xf32>
    %cst_40 = arith.constant 9.99999974E-6 : f32
    %86 = vector.broadcast %cst_40 : f32 to vector<8x1xf32>
    %87 = arith.addf %85, %86 : vector<8x1xf32>
    %88 = math.rsqrt %87 : vector<8x1xf32>
    %89 = vector.broadcast %88 : vector<8x1xf32> to vector<8x128xf32>
    %90 = arith.mulf %80, %89 : vector<8x128xf32>
    %c0_41 = arith.constant 0 : index
    %c0_42 = arith.constant 0 : index
    %c0_43 = arith.constant 0 : index
    %91 = vector.load %arg12[%c0_41, %c0_42, %c0_43] : memref<2x128x128xbf16, #tpu.memory_space<vmem>>, vector<1x128x128xbf16>
    %92 = vector.shape_cast %91 : vector<1x128x128xbf16> to vector<128x128xbf16>
    %c0_44 = arith.constant 0 : index
    %c0_45 = arith.constant 0 : index
    %c0_46 = arith.constant 0 : index
    %93 = vector.load %arg13[%c0_44, %c0_45, %c0_46] : memref<2x1x128xf32, #tpu.memory_space<vmem>>, vector<1x1x128xf32>
    %94 = vector.shape_cast %93 : vector<1x1x128xf32> to vector<1x128xf32>
    %c0_47 = arith.constant 0 : index
    %c0_48 = arith.constant 0 : index
    %c0_49 = arith.constant 0 : index
    %95 = vector.load %arg14[%c0_47, %c0_48, %c0_49] : memref<2x128x128xbf16, #tpu.memory_space<vmem>>, vector<1x128x128xbf16>
    %96 = vector.shape_cast %95 : vector<1x128x128xbf16> to vector<128x128xbf16>
    %c0_50 = arith.constant 0 : index
    %c0_51 = arith.constant 0 : index
    %c0_52 = arith.constant 0 : index
    %97 = vector.load %arg15[%c0_50, %c0_51, %c0_52] : memref<2x1x128xf32, #tpu.memory_space<vmem>>, vector<1x1x128xf32>
    %98 = vector.shape_cast %97 : vector<1x1x128xf32> to vector<1x128xf32>
    %c0_53 = arith.constant 0 : index
    %c0_54 = arith.constant 0 : index
    %c0_55 = arith.constant 0 : index
    %99 = vector.load %arg16[%c0_53, %c0_54, %c0_55] : memref<2x128x128xbf16, #tpu.memory_space<vmem>>, vector<1x128x128xbf16>
    %100 = vector.shape_cast %99 : vector<1x128x128xbf16> to vector<128x128xbf16>
    %c0_56 = arith.constant 0 : index
    %c0_57 = arith.constant 0 : index
    %c0_58 = arith.constant 0 : index
    %101 = vector.load %arg17[%c0_56, %c0_57, %c0_58] : memref<2x1x128xf32, #tpu.memory_space<vmem>>, vector<1x1x128xf32>
    %102 = vector.shape_cast %101 : vector<1x1x128xf32> to vector<1x128xf32>
    %c0_59 = arith.constant 0 : index
    %c0_60 = arith.constant 0 : index
    %c0_61 = arith.constant 0 : index
    %103 = vector.load %arg18[%c0_59, %c0_60, %c0_61] : memref<2x128x128xbf16, #tpu.memory_space<vmem>>, vector<1x128x128xbf16>
    %104 = vector.shape_cast %103 : vector<1x128x128xbf16> to vector<128x128xbf16>
    %c0_62 = arith.constant 0 : index
    %c0_63 = arith.constant 0 : index
    %c0_64 = arith.constant 0 : index
    %105 = vector.load %arg19[%c0_62, %c0_63, %c0_64] : memref<2x1x128xf32, #tpu.memory_space<vmem>>, vector<1x1x128xf32>
    %106 = vector.shape_cast %105 : vector<1x1x128xf32> to vector<1x128xf32>
    %c0_65 = arith.constant 0 : index
    %c0_66 = arith.constant 0 : index
    %c0_67 = arith.constant 0 : index
    %107 = vector.load %arg20[%c0_65, %c0_66, %c0_67] : memref<2x128x128xbf16, #tpu.memory_space<vmem>>, vector<1x128x128xbf16>
    %108 = vector.shape_cast %107 : vector<1x128x128xbf16> to vector<128x128xbf16>
    %c0_68 = arith.constant 0 : index
    %c0_69 = arith.constant 0 : index
    %c0_70 = arith.constant 0 : index
    %109 = vector.load %arg21[%c0_68, %c0_69, %c0_70] : memref<2x1x128xf32, #tpu.memory_space<vmem>>, vector<1x1x128xf32>
    %110 = vector.shape_cast %109 : vector<1x1x128xf32> to vector<1x128xf32>
    %111 = arith.truncf %90 : vector<8x128xf32> to vector<8x128xbf16>
    %cst_71 = arith.constant dense<0.000000e+00> : vector<8x128xf32>
    %112 = tpu.matmul %111, %92, %cst_71 {dimension_numbers = #tpu.dot_dimension_numbers<[1], [0], [0], [1], [0, 0, 1, 1], [], []>} : vector<8x128xbf16>, vector<128x128xbf16>, vector<8x128xf32> -> vector<8x128xf32>
    %113 = vector.broadcast %94 : vector<1x128xf32> to vector<8x128xf32>
    %114 = arith.addf %112, %113 : vector<8x128xf32>
    %cst_72 = arith.constant dense<0.000000e+00> : vector<8x128xf32>
    %115 = tpu.matmul %111, %96, %cst_72 {dimension_numbers = #tpu.dot_dimension_numbers<[1], [0], [0], [1], [0, 0, 1, 1], [], []>} : vector<8x128xbf16>, vector<128x128xbf16>, vector<8x128xf32> -> vector<8x128xf32>
    %116 = vector.broadcast %98 : vector<1x128xf32> to vector<8x128xf32>
    %117 = arith.addf %115, %116 : vector<8x128xf32>
    %cst_73 = arith.constant dense<0.000000e+00> : vector<8x128xf32>
    %118 = tpu.matmul %111, %100, %cst_73 {dimension_numbers = #tpu.dot_dimension_numbers<[1], [0], [0], [1], [0, 0, 1, 1], [], []>} : vector<8x128xbf16>, vector<128x128xbf16>, vector<8x128xf32> -> vector<8x128xf32>
    %119 = vector.broadcast %102 : vector<1x128xf32> to vector<8x128xf32>
    %120 = arith.addf %118, %119 : vector<8x128xf32>
    %121 = arith.truncf %114 : vector<8x128xf32> to vector<8x128xbf16>
    %122 = arith.truncf %117 : vector<8x128xf32> to vector<8x128xbf16>
    %cst_74 = arith.constant dense<0.000000e+00> : vector<8x8xf32>
    %123 = tpu.matmul %121, %122, %cst_74 {dimension_numbers = #tpu.dot_dimension_numbers<[1], [1], [0], [0], [0, 0, 1, 0], [], []>} : vector<8x128xbf16>, vector<8x128xbf16>, vector<8x8xf32> -> vector<8x8xf32>
    %cst_75 = arith.constant dense<0xFF800000> : vector<8xf32>
    %124 = vector.multi_reduction <maximumf>, %123, %cst_75 [1] : vector<8x8xf32> to vector<8xf32>
    %125 = vector.shape_cast %124 : vector<8xf32> to vector<8x1xf32>
    %126 = vector.broadcast %125 : vector<8x1xf32> to vector<8x8xf32>
    %127 = arith.subf %123, %126 : vector<8x8xf32>
    %128 = math.exp %127 : vector<8x8xf32>
    %cst_76 = arith.constant dense<0.000000e+00> : vector<8xf32>
    %129 = vector.multi_reduction <add>, %128, %cst_76 [1] : vector<8x8xf32> to vector<8xf32>
    %130 = vector.shape_cast %129 : vector<8xf32> to vector<8x1xf32>
    %131 = tpu.reciprocal %130 {approx = true} : vector<8x1xf32> -> vector<8x1xf32>
    %132 = vector.broadcast %131 : vector<8x1xf32> to vector<8x8xf32>
    %133 = arith.mulf %128, %132 : vector<8x8xf32>
    %134 = arith.truncf %133 : vector<8x8xf32> to vector<8x8xbf16>
    %135 = arith.truncf %120 : vector<8x128xf32> to vector<8x128xbf16>
    %cst_77 = arith.constant dense<0.000000e+00> : vector<8x128xf32>
    %136 = tpu.matmul %134, %135, %cst_77 {dimension_numbers = #tpu.dot_dimension_numbers<[1], [0], [0], [1], [0, 0, 1, 1], [], []>} : vector<8x8xbf16>, vector<8x128xbf16>, vector<8x128xf32> -> vector<8x128xf32>
    %137 = arith.addf %136, %114 : vector<8x128xf32>
    %cst_78 = arith.constant dense<0.000000e+00> : vector<8xf32>
    %138 = vector.multi_reduction <add>, %137, %cst_78 [1] : vector<8x128xf32> to vector<8xf32>
    %139 = vector.shape_cast %138 : vector<8xf32> to vector<8x1xf32>
    %cst_79 = arith.constant 1.562500e-02 : f32
    %140 = vector.broadcast %cst_79 : f32 to vector<8x1xf32>
    %141 = arith.mulf %139, %140 : vector<8x1xf32>
    %142 = vector.broadcast %141 : vector<8x1xf32> to vector<8x128xf32>
    %143 = arith.subf %137, %142 : vector<8x128xf32>
    %144 = vector.broadcast %4 : vector<1x128xf32> to vector<8x128xf32>
    %145 = arith.mulf %143, %144 : vector<8x128xf32>
    %146 = arith.mulf %145, %145 : vector<8x128xf32>
    %cst_80 = arith.constant dense<0.000000e+00> : vector<8xf32>
    %147 = vector.multi_reduction <add>, %146, %cst_80 [1] : vector<8x128xf32> to vector<8xf32>
    %148 = vector.shape_cast %147 : vector<8xf32> to vector<8x1xf32>
    %cst_81 = arith.constant 1.562500e-02 : f32
    %149 = vector.broadcast %cst_81 : f32 to vector<8x1xf32>
    %150 = arith.mulf %148, %149 : vector<8x1xf32>
    %cst_82 = arith.constant 9.99999974E-6 : f32
    %151 = vector.broadcast %cst_82 : f32 to vector<8x1xf32>
    %152 = arith.addf %150, %151 : vector<8x1xf32>
    %153 = math.rsqrt %152 : vector<8x1xf32>
    %154 = vector.broadcast %153 : vector<8x1xf32> to vector<8x128xf32>
    %155 = arith.mulf %145, %154 : vector<8x128xf32>
    %156 = arith.truncf %155 : vector<8x128xf32> to vector<8x128xbf16>
    %cst_83 = arith.constant dense<0.000000e+00> : vector<8x128xf32>
    %157 = tpu.matmul %156, %104, %cst_83 {dimension_numbers = #tpu.dot_dimension_numbers<[1], [0], [0], [1], [0, 0, 1, 1], [], []>} : vector<8x128xbf16>, vector<128x128xbf16>, vector<8x128xf32> -> vector<8x128xf32>
    %158 = vector.broadcast %106 : vector<1x128xf32> to vector<8x128xf32>
    %159 = arith.addf %157, %158 : vector<8x128xf32>
    %cst_84 = arith.constant 0.000000e+00 : f32
    %160 = vector.broadcast %cst_84 : f32 to vector<8x128xf32>
    %161 = arith.maximumf %159, %160 : vector<8x128xf32>
    %162 = arith.truncf %161 : vector<8x128xf32> to vector<8x128xbf16>
    %cst_85 = arith.constant dense<0.000000e+00> : vector<8x128xf32>
    %163 = tpu.matmul %162, %108, %cst_85 {dimension_numbers = #tpu.dot_dimension_numbers<[1], [0], [0], [1], [0, 0, 1, 1], [], []>} : vector<8x128xbf16>, vector<128x128xbf16>, vector<8x128xf32> -> vector<8x128xf32>
    %164 = arith.addf %155, %163 : vector<8x128xf32>
    %165 = vector.broadcast %110 : vector<1x128xf32> to vector<8x128xf32>
    %166 = arith.addf %164, %165 : vector<8x128xf32>
    %cst_86 = arith.constant dense<0.000000e+00> : vector<8xf32>
    %167 = vector.multi_reduction <add>, %166, %cst_86 [1] : vector<8x128xf32> to vector<8xf32>
    %168 = vector.shape_cast %167 : vector<8xf32> to vector<8x1xf32>
    %cst_87 = arith.constant 1.562500e-02 : f32
    %169 = vector.broadcast %cst_87 : f32 to vector<8x1xf32>
    %170 = arith.mulf %168, %169 : vector<8x1xf32>
    %171 = vector.broadcast %170 : vector<8x1xf32> to vector<8x128xf32>
    %172 = arith.subf %166, %171 : vector<8x128xf32>
    %173 = vector.broadcast %4 : vector<1x128xf32> to vector<8x128xf32>
    %174 = arith.mulf %172, %173 : vector<8x128xf32>
    %175 = arith.mulf %174, %174 : vector<8x128xf32>
    %cst_88 = arith.constant dense<0.000000e+00> : vector<8xf32>
    %176 = vector.multi_reduction <add>, %175, %cst_88 [1] : vector<8x128xf32> to vector<8xf32>
    %177 = vector.shape_cast %176 : vector<8xf32> to vector<8x1xf32>
    %cst_89 = arith.constant 1.562500e-02 : f32
    %178 = vector.broadcast %cst_89 : f32 to vector<8x1xf32>
    %179 = arith.mulf %177, %178 : vector<8x1xf32>
    %cst_90 = arith.constant 9.99999974E-6 : f32
    %180 = vector.broadcast %cst_90 : f32 to vector<8x1xf32>
    %181 = arith.addf %179, %180 : vector<8x1xf32>
    %182 = math.rsqrt %181 : vector<8x1xf32>
    %183 = vector.broadcast %182 : vector<8x1xf32> to vector<8x128xf32>
    %184 = arith.mulf %174, %183 : vector<8x128xf32>
    %c1 = arith.constant 1 : index
    %c0_91 = arith.constant 0 : index
    %c0_92 = arith.constant 0 : index
    %185 = vector.load %arg12[%c1, %c0_91, %c0_92] : memref<2x128x128xbf16, #tpu.memory_space<vmem>>, vector<1x128x128xbf16>
    %186 = vector.shape_cast %185 : vector<1x128x128xbf16> to vector<128x128xbf16>
    %c1_93 = arith.constant 1 : index
    %c0_94 = arith.constant 0 : index
    %c0_95 = arith.constant 0 : index
    %187 = vector.load %arg13[%c1_93, %c0_94, %c0_95] : memref<2x1x128xf32, #tpu.memory_space<vmem>>, vector<1x1x128xf32>
    %188 = vector.shape_cast %187 : vector<1x1x128xf32> to vector<1x128xf32>
    %c1_96 = arith.constant 1 : index
    %c0_97 = arith.constant 0 : index
    %c0_98 = arith.constant 0 : index
    %189 = vector.load %arg14[%c1_96, %c0_97, %c0_98] : memref<2x128x128xbf16, #tpu.memory_space<vmem>>, vector<1x128x128xbf16>
    %190 = vector.shape_cast %189 : vector<1x128x128xbf16> to vector<128x128xbf16>
    %c1_99 = arith.constant 1 : index
    %c0_100 = arith.constant 0 : index
    %c0_101 = arith.constant 0 : index
    %191 = vector.load %arg15[%c1_99, %c0_100, %c0_101] : memref<2x1x128xf32, #tpu.memory_space<vmem>>, vector<1x1x128xf32>
    %192 = vector.shape_cast %191 : vector<1x1x128xf32> to vector<1x128xf32>
    %c1_102 = arith.constant 1 : index
    %c0_103 = arith.constant 0 : index
    %c0_104 = arith.constant 0 : index
    %193 = vector.load %arg16[%c1_102, %c0_103, %c0_104] : memref<2x128x128xbf16, #tpu.memory_space<vmem>>, vector<1x128x128xbf16>
    %194 = vector.shape_cast %193 : vector<1x128x128xbf16> to vector<128x128xbf16>
    %c1_105 = arith.constant 1 : index
    %c0_106 = arith.constant 0 : index
    %c0_107 = arith.constant 0 : index
    %195 = vector.load %arg17[%c1_105, %c0_106, %c0_107] : memref<2x1x128xf32, #tpu.memory_space<vmem>>, vector<1x1x128xf32>
    %196 = vector.shape_cast %195 : vector<1x1x128xf32> to vector<1x128xf32>
    %c1_108 = arith.constant 1 : index
    %c0_109 = arith.constant 0 : index
    %c0_110 = arith.constant 0 : index
    %197 = vector.load %arg18[%c1_108, %c0_109, %c0_110] : memref<2x128x128xbf16, #tpu.memory_space<vmem>>, vector<1x128x128xbf16>
    %198 = vector.shape_cast %197 : vector<1x128x128xbf16> to vector<128x128xbf16>
    %c1_111 = arith.constant 1 : index
    %c0_112 = arith.constant 0 : index
    %c0_113 = arith.constant 0 : index
    %199 = vector.load %arg19[%c1_111, %c0_112, %c0_113] : memref<2x1x128xf32, #tpu.memory_space<vmem>>, vector<1x1x128xf32>
    %200 = vector.shape_cast %199 : vector<1x1x128xf32> to vector<1x128xf32>
    %c1_114 = arith.constant 1 : index
    %c0_115 = arith.constant 0 : index
    %c0_116 = arith.constant 0 : index
    %201 = vector.load %arg20[%c1_114, %c0_115, %c0_116] : memref<2x128x128xbf16, #tpu.memory_space<vmem>>, vector<1x128x128xbf16>
    %202 = vector.shape_cast %201 : vector<1x128x128xbf16> to vector<128x128xbf16>
    %c1_117 = arith.constant 1 : index
    %c0_118 = arith.constant 0 : index
    %c0_119 = arith.constant 0 : index
    %203 = vector.load %arg21[%c1_117, %c0_118, %c0_119] : memref<2x1x128xf32, #tpu.memory_space<vmem>>, vector<1x1x128xf32>
    %204 = vector.shape_cast %203 : vector<1x1x128xf32> to vector<1x128xf32>
    %205 = arith.truncf %184 : vector<8x128xf32> to vector<8x128xbf16>
    %cst_120 = arith.constant dense<0.000000e+00> : vector<8x128xf32>
    %206 = tpu.matmul %205, %186, %cst_120 {dimension_numbers = #tpu.dot_dimension_numbers<[1], [0], [0], [1], [0, 0, 1, 1], [], []>} : vector<8x128xbf16>, vector<128x128xbf16>, vector<8x128xf32> -> vector<8x128xf32>
    %207 = vector.broadcast %188 : vector<1x128xf32> to vector<8x128xf32>
    %208 = arith.addf %206, %207 : vector<8x128xf32>
    %cst_121 = arith.constant dense<0.000000e+00> : vector<8x128xf32>
    %209 = tpu.matmul %205, %190, %cst_121 {dimension_numbers = #tpu.dot_dimension_numbers<[1], [0], [0], [1], [0, 0, 1, 1], [], []>} : vector<8x128xbf16>, vector<128x128xbf16>, vector<8x128xf32> -> vector<8x128xf32>
    %210 = vector.broadcast %192 : vector<1x128xf32> to vector<8x128xf32>
    %211 = arith.addf %209, %210 : vector<8x128xf32>
    %cst_122 = arith.constant dense<0.000000e+00> : vector<8x128xf32>
    %212 = tpu.matmul %205, %194, %cst_122 {dimension_numbers = #tpu.dot_dimension_numbers<[1], [0], [0], [1], [0, 0, 1, 1], [], []>} : vector<8x128xbf16>, vector<128x128xbf16>, vector<8x128xf32> -> vector<8x128xf32>
    %213 = vector.broadcast %196 : vector<1x128xf32> to vector<8x128xf32>
    %214 = arith.addf %212, %213 : vector<8x128xf32>
    %215 = arith.truncf %208 : vector<8x128xf32> to vector<8x128xbf16>
    %216 = arith.truncf %211 : vector<8x128xf32> to vector<8x128xbf16>
    %cst_123 = arith.constant dense<0.000000e+00> : vector<8x8xf32>
    %217 = tpu.matmul %215, %216, %cst_123 {dimension_numbers = #tpu.dot_dimension_numbers<[1], [1], [0], [0], [0, 0, 1, 0], [], []>} : vector<8x128xbf16>, vector<8x128xbf16>, vector<8x8xf32> -> vector<8x8xf32>
    %cst_124 = arith.constant dense<0xFF800000> : vector<8xf32>
    %218 = vector.multi_reduction <maximumf>, %217, %cst_124 [1] : vector<8x8xf32> to vector<8xf32>
    %219 = vector.shape_cast %218 : vector<8xf32> to vector<8x1xf32>
    %220 = vector.broadcast %219 : vector<8x1xf32> to vector<8x8xf32>
    %221 = arith.subf %217, %220 : vector<8x8xf32>
    %222 = math.exp %221 : vector<8x8xf32>
    %cst_125 = arith.constant dense<0.000000e+00> : vector<8xf32>
    %223 = vector.multi_reduction <add>, %222, %cst_125 [1] : vector<8x8xf32> to vector<8xf32>
    %224 = vector.shape_cast %223 : vector<8xf32> to vector<8x1xf32>
    %225 = tpu.reciprocal %224 {approx = true} : vector<8x1xf32> -> vector<8x1xf32>
    %226 = vector.broadcast %225 : vector<8x1xf32> to vector<8x8xf32>
    %227 = arith.mulf %222, %226 : vector<8x8xf32>
    %228 = arith.truncf %227 : vector<8x8xf32> to vector<8x8xbf16>
    %229 = arith.truncf %214 : vector<8x128xf32> to vector<8x128xbf16>
    %cst_126 = arith.constant dense<0.000000e+00> : vector<8x128xf32>
    %230 = tpu.matmul %228, %229, %cst_126 {dimension_numbers = #tpu.dot_dimension_numbers<[1], [0], [0], [1], [0, 0, 1, 1], [], []>} : vector<8x8xbf16>, vector<8x128xbf16>, vector<8x128xf32> -> vector<8x128xf32>
    %231 = arith.addf %230, %208 : vector<8x128xf32>
    %cst_127 = arith.constant dense<0.000000e+00> : vector<8xf32>
    %232 = vector.multi_reduction <add>, %231, %cst_127 [1] : vector<8x128xf32> to vector<8xf32>
    %233 = vector.shape_cast %232 : vector<8xf32> to vector<8x1xf32>
    %cst_128 = arith.constant 1.562500e-02 : f32
    %234 = vector.broadcast %cst_128 : f32 to vector<8x1xf32>
    %235 = arith.mulf %233, %234 : vector<8x1xf32>
    %236 = vector.broadcast %235 : vector<8x1xf32> to vector<8x128xf32>
    %237 = arith.subf %231, %236 : vector<8x128xf32>
    %238 = vector.broadcast %4 : vector<1x128xf32> to vector<8x128xf32>
    %239 = arith.mulf %237, %238 : vector<8x128xf32>
    %240 = arith.mulf %239, %239 : vector<8x128xf32>
    %cst_129 = arith.constant dense<0.000000e+00> : vector<8xf32>
    %241 = vector.multi_reduction <add>, %240, %cst_129 [1] : vector<8x128xf32> to vector<8xf32>
    %242 = vector.shape_cast %241 : vector<8xf32> to vector<8x1xf32>
    %cst_130 = arith.constant 1.562500e-02 : f32
    %243 = vector.broadcast %cst_130 : f32 to vector<8x1xf32>
    %244 = arith.mulf %242, %243 : vector<8x1xf32>
    %cst_131 = arith.constant 9.99999974E-6 : f32
    %245 = vector.broadcast %cst_131 : f32 to vector<8x1xf32>
    %246 = arith.addf %244, %245 : vector<8x1xf32>
    %247 = math.rsqrt %246 : vector<8x1xf32>
    %248 = vector.broadcast %247 : vector<8x1xf32> to vector<8x128xf32>
    %249 = arith.mulf %239, %248 : vector<8x128xf32>
    %250 = arith.truncf %249 : vector<8x128xf32> to vector<8x128xbf16>
    %cst_132 = arith.constant dense<0.000000e+00> : vector<8x128xf32>
    %251 = tpu.matmul %250, %198, %cst_132 {dimension_numbers = #tpu.dot_dimension_numbers<[1], [0], [0], [1], [0, 0, 1, 1], [], []>} : vector<8x128xbf16>, vector<128x128xbf16>, vector<8x128xf32> -> vector<8x128xf32>
    %252 = vector.broadcast %200 : vector<1x128xf32> to vector<8x128xf32>
    %253 = arith.addf %251, %252 : vector<8x128xf32>
    %cst_133 = arith.constant 0.000000e+00 : f32
    %254 = vector.broadcast %cst_133 : f32 to vector<8x128xf32>
    %255 = arith.maximumf %253, %254 : vector<8x128xf32>
    %256 = arith.truncf %255 : vector<8x128xf32> to vector<8x128xbf16>
    %cst_134 = arith.constant dense<0.000000e+00> : vector<8x128xf32>
    %257 = tpu.matmul %256, %202, %cst_134 {dimension_numbers = #tpu.dot_dimension_numbers<[1], [0], [0], [1], [0, 0, 1, 1], [], []>} : vector<8x128xbf16>, vector<128x128xbf16>, vector<8x128xf32> -> vector<8x128xf32>
    %258 = arith.addf %249, %257 : vector<8x128xf32>
    %259 = vector.broadcast %204 : vector<1x128xf32> to vector<8x128xf32>
    %260 = arith.addf %258, %259 : vector<8x128xf32>
    %cst_135 = arith.constant dense<0.000000e+00> : vector<8xf32>
    %261 = vector.multi_reduction <add>, %260, %cst_135 [1] : vector<8x128xf32> to vector<8xf32>
    %262 = vector.shape_cast %261 : vector<8xf32> to vector<8x1xf32>
    %cst_136 = arith.constant 1.562500e-02 : f32
    %263 = vector.broadcast %cst_136 : f32 to vector<8x1xf32>
    %264 = arith.mulf %262, %263 : vector<8x1xf32>
    %265 = vector.broadcast %264 : vector<8x1xf32> to vector<8x128xf32>
    %266 = arith.subf %260, %265 : vector<8x128xf32>
    %267 = vector.broadcast %4 : vector<1x128xf32> to vector<8x128xf32>
    %268 = arith.mulf %266, %267 : vector<8x128xf32>
    %269 = arith.mulf %268, %268 : vector<8x128xf32>
    %cst_137 = arith.constant dense<0.000000e+00> : vector<8xf32>
    %270 = vector.multi_reduction <add>, %269, %cst_137 [1] : vector<8x128xf32> to vector<8xf32>
    %271 = vector.shape_cast %270 : vector<8xf32> to vector<8x1xf32>
    %cst_138 = arith.constant 1.562500e-02 : f32
    %272 = vector.broadcast %cst_138 : f32 to vector<8x1xf32>
    %273 = arith.mulf %271, %272 : vector<8x1xf32>
    %cst_139 = arith.constant 9.99999974E-6 : f32
    %274 = vector.broadcast %cst_139 : f32 to vector<8x1xf32>
    %275 = arith.addf %273, %274 : vector<8x1xf32>
    %276 = math.rsqrt %275 : vector<8x1xf32>
    %277 = vector.broadcast %276 : vector<8x1xf32> to vector<8x128xf32>
    %278 = arith.mulf %268, %277 : vector<8x128xf32>
    %279 = arith.truncf %278 : vector<8x128xf32> to vector<8x128xbf16>
    %c0_140 = arith.constant 0 : index
    %c0_141 = arith.constant 0 : index
    %280 = vector.load %arg22[%c0_140, %c0_141] : memref<128x128xbf16, #tpu.memory_space<vmem>>, vector<128x128xbf16>
    %cst_142 = arith.constant dense<0.000000e+00> : vector<8x128xf32>
    %281 = tpu.matmul %279, %280, %cst_142 {dimension_numbers = #tpu.dot_dimension_numbers<[1], [0], [0], [1], [0, 0, 1, 1], [], []>} : vector<8x128xbf16>, vector<128x128xbf16>, vector<8x128xf32> -> vector<8x128xf32>
    %c0_143 = arith.constant 0 : index
    %c0_144 = arith.constant 0 : index
    %282 = vector.load %arg23[%c0_143, %c0_144] : memref<1x128xf32, #tpu.memory_space<vmem>>, vector<1x128xf32>
    %283 = vector.broadcast %282 : vector<1x128xf32> to vector<8x128xf32>
    %284 = arith.addf %281, %283 : vector<8x128xf32>
    %cst_145 = arith.constant 0.000000e+00 : f32
    %285 = vector.broadcast %cst_145 : f32 to vector<8x128xf32>
    %286 = arith.maximumf %284, %285 : vector<8x128xf32>
    %287 = arith.truncf %286 : vector<8x128xf32> to vector<8x128xbf16>
    %c0_146 = arith.constant 0 : index
    %c0_147 = arith.constant 0 : index
    %288 = vector.load %arg24[%c0_146, %c0_147] : memref<128x128xbf16, #tpu.memory_space<vmem>>, vector<128x128xbf16>
    %cst_148 = arith.constant dense<0.000000e+00> : vector<8x128xf32>
    %289 = tpu.matmul %287, %288, %cst_148 {dimension_numbers = #tpu.dot_dimension_numbers<[1], [0], [0], [1], [0, 0, 1, 1], [], []>} : vector<8x128xbf16>, vector<128x128xbf16>, vector<8x128xf32> -> vector<8x128xf32>
    %c0_149 = arith.constant 0 : index
    %c0_150 = arith.constant 0 : index
    %290 = vector.load %arg25[%c0_149, %c0_150] : memref<1x128xf32, #tpu.memory_space<vmem>>, vector<1x128xf32>
    %291 = vector.broadcast %290 : vector<1x128xf32> to vector<8x128xf32>
    %292 = arith.addf %289, %291 : vector<8x128xf32>
    %cst_151 = arith.constant 0.000000e+00 : f32
    %293 = vector.broadcast %cst_151 : f32 to vector<8x128xf32>
    %294 = arith.maximumf %292, %293 : vector<8x128xf32>
    %295 = arith.truncf %294 : vector<8x128xf32> to vector<8x128xbf16>
    %c0_152 = arith.constant 0 : index
    %c0_153 = arith.constant 0 : index
    %296 = vector.load %arg26[%c0_152, %c0_153] : memref<128x128xbf16, #tpu.memory_space<vmem>>, vector<128x128xbf16>
    %cst_154 = arith.constant dense<0.000000e+00> : vector<8x128xf32>
    %297 = tpu.matmul %295, %296, %cst_154 {dimension_numbers = #tpu.dot_dimension_numbers<[1], [0], [0], [1], [0, 0, 1, 1], [], []>} : vector<8x128xbf16>, vector<128x128xbf16>, vector<8x128xf32> -> vector<8x128xf32>
    %c0_155 = arith.constant 0 : index
    %c0_156 = arith.constant 0 : index
    %298 = vector.load %arg27[%c0_155, %c0_156] : memref<1x128xf32, #tpu.memory_space<vmem>>, vector<1x128xf32>
    %299 = vector.broadcast %298 : vector<1x128xf32> to vector<8x128xf32>
    %300 = arith.addf %297, %299 : vector<8x128xf32>
    %c0_157 = arith.constant 0 : index
    %c0_158 = arith.constant 0 : index
    %c0_159 = arith.constant 0 : index
    %301 = vector.load %arg28[%c0_157, %c0_158, %c0_159] : memref<1x8x128xf32, #tpu.memory_space<vmem>>, vector<1x8x128xf32>
    %302 = vector.shape_cast %301 : vector<1x8x128xf32> to vector<8x128xf32>
    %303 = vector.shape_cast %300 : vector<8x128xf32> to vector<1x8x128xf32>
    tpu.vector_store %arg28[%c0_157, %c0_158, %c0_159], %303 {strides = array<i32>} : memref<1x8x128xf32, #tpu.memory_space<vmem>>, vector<1x8x128xf32>,
    return
  }
  func.func @transform_0(%arg0: i32) -> (i32, i32, i32) {
    %c0_i32 = arith.constant 0 : i32
    %c0_i32_0 = arith.constant 0 : i32
    %c0_i32_1 = arith.constant 0 : i32
    return %arg0, %c0_i32, %c0_i32_0 : i32, i32, i32
  }
  func.func @transform_1(%arg0: i32) -> (i32, i32) {
    %c0_i32 = arith.constant 0 : i32
    %c0_i32_0 = arith.constant 0 : i32
    %c0_i32_1 = arith.constant 0 : i32
    return %c0_i32, %c0_i32_0 : i32, i32
  }
  func.func @transform_2(%arg0: i32) -> (i32, i32) {
    %c0_i32 = arith.constant 0 : i32
    %c0_i32_0 = arith.constant 0 : i32
    %c0_i32_1 = arith.constant 0 : i32
    return %c0_i32, %c0_i32_0 : i32, i32
  }
  func.func @transform_3(%arg0: i32) -> (i32, i32) {
    %c0_i32 = arith.constant 0 : i32
    %c0_i32_0 = arith.constant 0 : i32
    %c0_i32_1 = arith.constant 0 : i32
    return %c0_i32, %c0_i32_0 : i32, i32
  }
  func.func @transform_4(%arg0: i32) -> (i32, i32) {
    %c0_i32 = arith.constant 0 : i32
    %c0_i32_0 = arith.constant 0 : i32
    %c0_i32_1 = arith.constant 0 : i32
    return %c0_i32, %c0_i32_0 : i32, i32
  }
  func.func @transform_5(%arg0: i32) -> (i32, i32) {
    %c0_i32 = arith.constant 0 : i32
    %c0_i32_0 = arith.constant 0 : i32
    %c0_i32_1 = arith.constant 0 : i32
    return %c0_i32, %c0_i32_0 : i32, i32
  }
  func.func @transform_6(%arg0: i32) -> (i32, i32) {
    %c0_i32 = arith.constant 0 : i32
    %c0_i32_0 = arith.constant 0 : i32
    %c0_i32_1 = arith.constant 0 : i32
    return %c0_i32, %c0_i32_0 : i32, i32
  }
  func.func @transform_7(%arg0: i32) -> (i32, i32) {
    %c0_i32 = arith.constant 0 : i32
    %c0_i32_0 = arith.constant 0 : i32
    %c0_i32_1 = arith.constant 0 : i32
    return %c0_i32, %c0_i32_0 : i32, i32
  }
  func.func @transform_8(%arg0: i32) -> (i32, i32) {
    %c0_i32 = arith.constant 0 : i32
    %c0_i32_0 = arith.constant 0 : i32
    %c0_i32_1 = arith.constant 0 : i32
    return %c0_i32, %c0_i32_0 : i32, i32
  }
  func.func @transform_9(%arg0: i32) -> (i32, i32) {
    %c0_i32 = arith.constant 0 : i32
    %c0_i32_0 = arith.constant 0 : i32
    %c0_i32_1 = arith.constant 0 : i32
    return %c0_i32, %c0_i32_0 : i32, i32
  }
  func.func @transform_10(%arg0: i32) -> (i32, i32) {
    %c0_i32 = arith.constant 0 : i32
    %c0_i32_0 = arith.constant 0 : i32
    %c0_i32_1 = arith.constant 0 : i32
    return %c0_i32, %c0_i32_0 : i32, i32
  }
  func.func @transform_11(%arg0: i32) -> (i32, i32, i32) {
    %c0_i32 = arith.constant 0 : i32
    %c0_i32_0 = arith.constant 0 : i32
    %c0_i32_1 = arith.constant 0 : i32
    %c0_i32_2 = arith.constant 0 : i32
    return %c0_i32, %c0_i32_0, %c0_i32_1 : i32, i32, i32
  }
  func.func @transform_12(%arg0: i32) -> (i32, i32, i32) {
    %c0_i32 = arith.constant 0 : i32
    %c0_i32_0 = arith.constant 0 : i32
    %c0_i32_1 = arith.constant 0 : i32
    %c0_i32_2 = arith.constant 0 : i32
    return %c0_i32, %c0_i32_0, %c0_i32_1 : i32, i32, i32
  }
  func.func @transform_13(%arg0: i32) -> (i32, i32, i32) {
    %c0_i32 = arith.constant 0 : i32
    %c0_i32_0 = arith.constant 0 : i32
    %c0_i32_1 = arith.constant 0 : i32
    %c0_i32_2 = arith.constant 0 : i32
    return %c0_i32, %c0_i32_0, %c0_i32_1 : i32, i32, i32
  }
  func.func @transform_14(%arg0: i32) -> (i32, i32, i32) {
    %c0_i32 = arith.constant 0 : i32
    %c0_i32_0 = arith.constant 0 : i32
    %c0_i32_1 = arith.constant 0 : i32
    %c0_i32_2 = arith.constant 0 : i32
    return %c0_i32, %c0_i32_0, %c0_i32_1 : i32, i32, i32
  }
  func.func @transform_15(%arg0: i32) -> (i32, i32, i32) {
    %c0_i32 = arith.constant 0 : i32
    %c0_i32_0 = arith.constant 0 : i32
    %c0_i32_1 = arith.constant 0 : i32
    %c0_i32_2 = arith.constant 0 : i32
    return %c0_i32, %c0_i32_0, %c0_i32_1 : i32, i32, i32
  }
  func.func @transform_16(%arg0: i32) -> (i32, i32, i32) {
    %c0_i32 = arith.constant 0 : i32
    %c0_i32_0 = arith.constant 0 : i32
    %c0_i32_1 = arith.constant 0 : i32
    %c0_i32_2 = arith.constant 0 : i32
    return %c0_i32, %c0_i32_0, %c0_i32_1 : i32, i32, i32
  }
  func.func @transform_17(%arg0: i32) -> (i32, i32, i32) {
    %c0_i32 = arith.constant 0 : i32
    %c0_i32_0 = arith.constant 0 : i32
    %c0_i32_1 = arith.constant 0 : i32
    %c0_i32_2 = arith.constant 0 : i32
    return %c0_i32, %c0_i32_0, %c0_i32_1 : i32, i32, i32
  }
  func.func @transform_18(%arg0: i32) -> (i32, i32, i32) {
    %c0_i32 = arith.constant 0 : i32
    %c0_i32_0 = arith.constant 0 : i32
    %c0_i32_1 = arith.constant 0 : i32
    %c0_i32_2 = arith.constant 0 : i32
    return %c0_i32, %c0_i32_0, %c0_i32_1 : i32, i32, i32
  }
  func.func @transform_19(%arg0: i32) -> (i32, i32, i32) {
    %c0_i32 = arith.constant 0 : i32
    %c0_i32_0 = arith.constant 0 : i32
    %c0_i32_1 = arith.constant 0 : i32
    %c0_i32_2 = arith.constant 0 : i32
    return %c0_i32, %c0_i32_0, %c0_i32_1 : i32, i32, i32
  }
  func.func @transform_20(%arg0: i32) -> (i32, i32, i32) {
    %c0_i32 = arith.constant 0 : i32
    %c0_i32_0 = arith.constant 0 : i32
    %c0_i32_1 = arith.constant 0 : i32
    %c0_i32_2 = arith.constant 0 : i32
    return %c0_i32, %c0_i32_0, %c0_i32_1 : i32, i32, i32
  }
  func.func @transform_21(%arg0: i32) -> (i32, i32) {
    %c0_i32 = arith.constant 0 : i32
    %c0_i32_0 = arith.constant 0 : i32
    %c0_i32_1 = arith.constant 0 : i32
    return %c0_i32, %c0_i32_0 : i32, i32
  }
  func.func @transform_22(%arg0: i32) -> (i32, i32) {
    %c0_i32 = arith.constant 0 : i32
    %c0_i32_0 = arith.constant 0 : i32
    %c0_i32_1 = arith.constant 0 : i32
    return %c0_i32, %c0_i32_0 : i32, i32
  }
  func.func @transform_23(%arg0: i32) -> (i32, i32) {
    %c0_i32 = arith.constant 0 : i32
    %c0_i32_0 = arith.constant 0 : i32
    %c0_i32_1 = arith.constant 0 : i32
    return %c0_i32, %c0_i32_0 : i32, i32
  }
  func.func @transform_24(%arg0: i32) -> (i32, i32) {
    %c0_i32 = arith.constant 0 : i32
    %c0_i32_0 = arith.constant 0 : i32
    %c0_i32_1 = arith.constant 0 : i32
    return %c0_i32, %c0_i32_0 : i32, i32
  }
  func.func @transform_25(%arg0: i32) -> (i32, i32) {
    %c0_i32 = arith.constant 0 : i32
    %c0_i32_0 = arith.constant 0 : i32
    %c0_i32_1 = arith.constant 0 : i32
    return %c0_i32, %c0_i32_0 : i32, i32
  }
  func.func @transform_26(%arg0: i32) -> (i32, i32) {
    %c0_i32 = arith.constant 0 : i32
    %c0_i32_0 = arith.constant 0 : i32
    %c0_i32_1 = arith.constant 0 : i32
    return %c0_i32, %c0_i32_0 : i32, i32
  }
  func.func @transform_27(%arg0: i32) -> (i32, i32, i32) {
    %c0_i32 = arith.constant 0 : i32
    %c0_i32_0 = arith.constant 0 : i32
    %c0_i32_1 = arith.constant 0 : i32
    return %arg0, %c0_i32, %c0_i32_0 : i32, i32, i32
  }
}

</mosaic_0001>

<llo_original>
// kernel: tpu_custom_call.1
$region0: #{tpu_custom_call.1}
  #allocation0 [shape = 'u32[]', space=smem, size = 0x4, offset = 0x4, fixed_abs, tag = 'smem constant byte address 0x4 - core index']
  #allocation1 [shape = 'u32[144,128]{1,0:T(1,128)}', space=vmem, size = 0x12000, scoped, tag = 'internal scratch']
  %s0 = inlined_call_operand.hbm [shape: f32[2,8,128], index: 0, kind: input, shape index: {}]
  %s1 = inlined_call_operand.hbm [shape: bf16[128,128], index: 1, kind: input, shape index: {}]
  %s2 = inlined_call_operand.hbm [shape: f32[1,128], index: 2, kind: input, shape index: {}]
  %s3 = inlined_call_operand.hbm [shape: bf16[128,128], index: 3, kind: input, shape index: {}]
  %s4 = inlined_call_operand.hbm [shape: f32[1,128], index: 4, kind: input, shape index: {}]
  %s5 = inlined_call_operand.hbm [shape: bf16[128,128], index: 5, kind: input, shape index: {}]
  %s6 = inlined_call_operand.hbm [shape: f32[1,128], index: 6, kind: input, shape index: {}]
  %s7 = inlined_call_operand.hbm [shape: bf16[128,128], index: 7, kind: input, shape index: {}]
  %s8 = inlined_call_operand.vmem [shape: f32[1,128], index: 8, kind: input, shape index: {}]
  %s9 = inlined_call_operand.hbm [shape: bf16[128,128], index: 9, kind: input, shape index: {}]
  %s10 = inlined_call_operand.vmem [shape: f32[1,128], index: 10, kind: input, shape index: {}]
  %s11 = inlined_call_operand.hbm [shape: bf16[2,128,128], index: 11, kind: input, shape index: {}]
  %s12 = inlined_call_operand.vmem [shape: f32[2,1,128], index: 12, kind: input, shape index: {}]
  %s13 = inlined_call_operand.hbm [shape: bf16[2,128,128], index: 13, kind: input, shape index: {}]
  %s14 = inlined_call_operand.vmem [shape: f32[2,1,128], index: 14, kind: input, shape index: {}]
  %s15 = inlined_call_operand.hbm [shape: bf16[2,128,128], index: 15, kind: input, shape index: {}]
  %s16 = inlined_call_operand.vmem [shape: f32[2,1,128], index: 16, kind: input, shape index: {}]
  %s17 = inlined_call_operand.hbm [shape: bf16[2,128,128], index: 17, kind: input, shape index: {}]
  %s18 = inlined_call_operand.vmem [shape: f32[2,1,128], index: 18, kind: input, shape index: {}]
  %s19 = inlined_call_operand.hbm [shape: bf16[2,128,128], index: 19, kind: input, shape index: {}]
  %s20 = inlined_call_operand.vmem [shape: f32[2,1,128], index: 20, kind: input, shape index: {}]
  %s21 = inlined_call_operand.hbm [shape: bf16[128,128], index: 21, kind: input, shape index: {}]
  %s22 = inlined_call_operand.vmem [shape: f32[1,128], index: 22, kind: input, shape index: {}]
  %s23 = inlined_call_operand.hbm [shape: bf16[128,128], index: 23, kind: input, shape index: {}]
  %s24 = inlined_call_operand.vmem [shape: f32[1,128], index: 24, kind: input, shape index: {}]
  %s25 = inlined_call_operand.hbm [shape: bf16[128,128], index: 25, kind: input, shape index: {}]
  %s26 = inlined_call_operand.vmem [shape: f32[1,128], index: 26, kind: input, shape index: {}]
  %s27 = inlined_call_operand.hbm [shape: f32[2,8,128], index: 27, kind: output, shape index: {}]
  %s28 = sld [smem:[#allocation0]]
  $region209: #{tpu_custom_call.1} parent=0
    _
  %s30 = ssub.s32 1, %s28
  %s31 = scalar_select 0, %s30, %s28
  $region1: #{tpu_custom_call.1} parent=0
    #allocation2 [shape = 'u8[8192]{0}', space=vmem, size = 0x2000, scoped, tag = 'input window, operand 0']
    #allocation3 [shape = 's32[2]{0}', space=sflag, size = 0x8, scoped, tag = 'scoped memory for tpu_custom_call.1']
    #allocation4 [shape = 's32[2]{0}', space=sflag, size = 0x8, scoped, tag = 'scoped memory for tpu_custom_call.1']
    #allocation5 [shape = 'u8[32768]{0}', space=vmem, size = 0x8000, scoped, tag = 'input window, operand 1, single buffered']
    #allocation6 [shape = 's32[1]{0}', space=sflag, size = 0x4, scoped, tag = 'scoped memory for tpu_custom_call.1']
    #allocation7 [shape = 'u8[512]{0}', space=vmem, size = 0x400, scoped, tag = 'input window, operand 2, single buffered']
    #allocation8 [shape = 'u8[32768]{0}', space=vmem, size = 0x8000, scoped, tag = 'input window, operand 3, single buffered']
    #allocation9 [shape = 's32[1]{0}', space=sflag, size = 0x4, scoped, tag = 'scoped memory for tpu_custom_call.1']
    #allocation10 [shape = 'u8[512]{0}', space=vmem, size = 0x400, scoped, tag = 'input window, operand 4, single buffered']
    #allocation11 [shape = 'u8[32768]{0}', space=vmem, size = 0x8000, scoped, tag = 'input window, operand 5, single buffered']
    #allocation12 [shape = 's32[1]{0}', space=sflag, size = 0x4, scoped, tag = 'scoped memory for tpu_custom_call.1']
    #allocation13 [shape = 'u8[512]{0}', space=vmem, size = 0x400, scoped, tag = 'input window, operand 6, single buffered']
    #allocation14 [shape = 'u8[32768]{0}', space=vmem, size = 0x8000, scoped, tag = 'input window, operand 7, single buffered']
    #allocation15 [shape = 's32[1]{0}', space=sflag, size = 0x4, scoped, tag = 'scoped memory for tpu_custom_call.1']
    #allocation16 [shape = 'u8[32768]{0}', space=vmem, size = 0x8000, scoped, tag = 'input window, operand 9, single buffered']
    #allocation17 [shape = 'u8[65536]{0}', space=vmem, size = 0x10000, scoped, tag = 'input window, operand 11, single buffered']
    #allocation18 [shape = 's32[1]{0}', space=sflag, size = 0x4, scoped, tag = 'scoped memory for tpu_custom_call.1']
    #allocation19 [shape = 'u8[65536]{0}', space=vmem, size = 0x10000, scoped, tag = 'input window, operand 13, single buffered']
    #allocation20 [shape = 'u8[65536]{0}', space=vmem, size = 0x10000, scoped, tag = 'input window, operand 15, single buffered']
    #allocation21 [shape = 's32[1]{0}', space=sflag, size = 0x4, scoped, tag = 'scoped memory for tpu_custom_call.1']
    #allocation22 [shape = 'u8[65536]{0}', space=vmem, size = 0x10000, scoped, tag = 'input window, operand 17, single buffered']
    #allocation23 [shape = 'u8[65536]{0}', space=vmem, size = 0x10000, scoped, tag = 'input window, operand 19, single buffered']
    #allocation24 [shape = 's32[1]{0}', space=sflag, size = 0x4, scoped, tag = 'scoped memory for tpu_custom_call.1']
    #allocation25 [shape = 'u8[32768]{0}', space=vmem, size = 0x8000, scoped, tag = 'input window, operand 21, single buffered']
    #allocation26 [shape = 'u8[32768]{0}', space=vmem, size = 0x8000, scoped, tag = 'input window, operand 23, single buffered']
    #allocation27 [shape = 's32[1]{0}', space=sflag, size = 0x4, scoped, tag = 'scoped memory for tpu_custom_call.1']
    #allocation28 [shape = 'u8[32768]{0}', space=vmem, size = 0x8000, scoped, tag = 'input window, operand 25, single buffered']
    #allocation29 [shape = 'u8[8192]{0}', space=vmem, size = 0x2000, scoped, tag = 'output window, operand 0']
    %32 = vsyncpa [#allocation3], 0
    %s33 = scalar_lea.sflag [#allocation3], 1
    %34 = vsyncpa %s33, 0
    %35 = vsyncpa [#allocation6], 0
    %36 = vsyncpa [#allocation9], 0
    %37 = vsyncpa [#allocation12], 0
    %38 = vsyncpa [#allocation15], 0
    %39 = vsyncpa [#allocation18], 0
    %40 = vsyncpa [#allocation21], 0
    %41 = vsyncpa [#allocation24], 0
    %42 = vsyncpa [#allocation27], 0
    %43 = vsyncpa [#allocation4], 0
    %s44 = scalar_lea.sflag [#allocation4], 1
    %45 = vsyncpa %s44, 0
    loop: start=0, step=1, limit=4
    $region2: #{tpu_custom_call.1} parent=1 // loop_pre_header
      _
    $region3: #{tpu_custom_call.1} parent=1 // loop_header
      %s47 = sphi 0, %s51
      %p48 = scmp.ge.s32.totalorder %s47, 4
      %s57 = sphi 0, %s59
      %s60 = sphi 0, %s57
      %s61 = sphi 0, %s60
      %s77 = sphi 0, %s61
      %s81 = sphi 0, %s81
      %s83 = sphi 0, %s81
      %s84 = sphi 0, %s83
      %s98 = sphi 0, %s84
      %s102 = sphi 0, %s102
      %s104 = sphi 0, %s102
      %s105 = sphi 0, %s104
      %s119 = sphi 0, %s105
      %s123 = sphi 0, %s123
      %s125 = sphi 0, %s123
      %s126 = sphi 0, %s125
      %s140 = sphi 0, %s126
      %s144 = sphi 0, %s144
      %s146 = sphi 0, %s144
      %s147 = sphi 0, %s146
      %s161 = sphi 0, %s147
      %s165 = sphi 0, %s165
      %s167 = sphi 0, %s165
      %s168 = sphi 0, %s167
      %s182 = sphi 0, %s168
      %s186 = sphi 0, %s186
      %s188 = sphi 0, %s186
      %s189 = sphi 0, %s188
      %s203 = sphi 0, %s189
      %s207 = sphi 0, %s207
      %s209 = sphi 0, %s207
      %s210 = sphi 0, %s209
      %s224 = sphi 0, %s210
      %s228 = sphi 0, %s228
      %s230 = sphi 0, %s228
      %s231 = sphi 0, %s230
      %s245 = sphi 0, %s231
      %s249 = sphi 0, %s249
      %s251 = sphi 0, %s249
      %s252 = sphi 0, %s251
      %s266 = sphi 0, %s252
      %s270 = sphi 0, %s270
      %s272 = sphi 0, %s270
      %s273 = sphi 0, %s272
      %s287 = sphi 0, %s273
      %s291 = sphi 0, %s291
      %s293 = sphi 0, %s291
      %s294 = sphi 0, %s293
      %s308 = sphi 0, %s294
      %s312 = sphi 0, %s312
      %s314 = sphi 0, %s312
      %s315 = sphi 0, %s314
      %s329 = sphi 0, %s315
      %s333 = sphi 0, %s333
      %s335 = sphi 0, %s333
      %s336 = sphi 0, %s335
      %s350 = sphi 0, %s336
      %s354 = sphi 0, %s354
      %s356 = sphi 0, %s354
      %s357 = sphi 0, %s356
      %s371 = sphi 0, %s357
      %s375 = sphi 0, %s375
      %s377 = sphi 0, %s375
      %s378 = sphi 0, %s377
      %s392 = sphi 0, %s378
      %s396 = sphi 0, %s396
      %s398 = sphi 0, %s396
      %s399 = sphi 0, %s398
      %s413 = sphi 0, %s399
      %s417 = sphi 0, %s417
      %s419 = sphi 0, %s417
      %s420 = sphi 0, %s419
      %s434 = sphi 0, %s420
      %s438 = sphi 0, %s438
      %s440 = sphi 0, %s438
      %s441 = sphi 0, %s440
      %s455 = sphi 0, %s441
      %s459 = sphi 0, %s459
      %s461 = sphi 0, %s459
      %s462 = sphi 0, %s461
      %s476 = sphi 0, %s462
      %s480 = sphi 0, %s480
      %s482 = sphi 0, %s480
      %s483 = sphi 0, %s482
      %s497 = sphi 0, %s483
      %s501 = sphi 0, %s501
      %s503 = sphi 0, %s501
      %s504 = sphi 0, %s503
      %s518 = sphi 0, %s504
      %s522 = sphi 0, %s522
      %s524 = sphi 0, %s522
      %s525 = sphi 0, %s524
      %s539 = sphi 0, %s525
      %s543 = sphi 0, %s543
      %s545 = sphi 0, %s543
      %s546 = sphi 0, %s545
      %s560 = sphi 0, %s546
      %s564 = sphi 0, %s564
      %s566 = sphi 0, %s564
      %s567 = sphi 0, %s566
      %s581 = sphi 0, %s567
      %s585 = sphi 0, %s585
      %s587 = sphi 0, %s585
      %s588 = sphi 0, %s587
      %s602 = sphi 0, %s588
      %s606 = sphi 0, %s606
      %s608 = sphi 0, %s606
      %s609 = sphi 0, %s608
      %s623 = sphi 0, %s609
      %s629 = sphi 0, %s631
      %s632 = sphi 0, %s629
      %s633 = sphi 0, %s632
      %s649 = sphi 0, %s633
    $region4: #{tpu_custom_call.1} parent=1 // loop_header_branch
      %50 = sbr.rel (%p48) target = $region8
    $region5: #{tpu_custom_call.1} parent=1 // loop_body
      %s52 = ssub.s32 %s47, 1
      %s53 = ssub.s32 %s47, 2
      %s54 = sadd.s32 %s47, 1
      %s55 = ssub.s32 %s47, %s54
      %p56 = scmp.eq.s32.totalorder %s55, 0
      %s58 = sadd.s32 %s57, 1
      %s59 = scalar_select %p56, %s57, %s58
      %p62 = pneg %p56
      %p63 = scmp.eq.s32.totalorder %s47, 1
      %p64 = por %p62, %p63
      %p65 = scmp.ne.s32.totalorder %s57, %s60
      %p66 = scmp.eq.s32.totalorder %s47, 0
      %p67 = por %p65, %p66
      %p68 = scmp.ne.s32.totalorder %s57, %s60
      %p69 = scmp.eq.s32.totalorder %s52, 1
      %p70 = por %p68, %p69
      %p71 = scmp.ne.s32.totalorder %s60, %s61
      %p72 = scmp.eq.s32.totalorder %s52, 0
      %p73 = por %p71, %p72
      %p74 = scmp.ne.s32.totalorder %s60, %s61
      %p75 = scmp.eq.s32.totalorder %s53, 1
      %p76 = por %p74, %p75
      %p78 = scmp.ne.s32.totalorder %s61, %s77
      %p79 = scmp.eq.s32.totalorder %s53, 0
      %p80 = por %p78, %p79
      %s82 = sadd.s32 %s81, 1
      %p85 = scmp.eq.s32.totalorder %s47, 1
      %p86 = scmp.ne.s32.totalorder %s81, %s83
      %p87 = scmp.eq.s32.totalorder %s47, 0
      %p88 = por %p86, %p87
      %p89 = scmp.ne.s32.totalorder %s81, %s83
      %p90 = scmp.eq.s32.totalorder %s52, 1
      %p91 = por %p89, %p90
      %p92 = scmp.ne.s32.totalorder %s83, %s84
      %p93 = scmp.eq.s32.totalorder %s52, 0
      %p94 = por %p92, %p93
      %p95 = scmp.ne.s32.totalorder %s83, %s84
      %p96 = scmp.eq.s32.totalorder %s53, 1
      %p97 = por %p95, %p96
      %p99 = scmp.ne.s32.totalorder %s84, %s98
      %p100 = scmp.eq.s32.totalorder %s53, 0
      %p101 = por %p99, %p100
      %s103 = sadd.s32 %s102, 1
      %p106 = scmp.eq.s32.totalorder %s47, 1
      %p107 = scmp.ne.s32.totalorder %s102, %s104
      %p108 = scmp.eq.s32.totalorder %s47, 0
      %p109 = por %p107, %p108
      %p110 = scmp.ne.s32.totalorder %s102, %s104
      %p111 = scmp.eq.s32.totalorder %s52, 1
      %p112 = por %p110, %p111
      %p113 = scmp.ne.s32.totalorder %s104, %s105
      %p114 = scmp.eq.s32.totalorder %s52, 0
      %p115 = por %p113, %p114
      %p116 = scmp.ne.s32.totalorder %s104, %s105
      %p117 = scmp.eq.s32.totalorder %s53, 1
      %p118 = por %p116, %p117
      %p120 = scmp.ne.s32.totalorder %s105, %s119
      %p121 = scmp.eq.s32.totalorder %s53, 0
      %p122 = por %p120, %p121
      %s124 = sadd.s32 %s123, 1
      %p127 = scmp.eq.s32.totalorder %s47, 1
      %p128 = scmp.ne.s32.totalorder %s123, %s125
      %p129 = scmp.eq.s32.totalorder %s47, 0
      %p130 = por %p128, %p129
      %p131 = scmp.ne.s32.totalorder %s123, %s125
      %p132 = scmp.eq.s32.totalorder %s52, 1
      %p133 = por %p131, %p132
      %p134 = scmp.ne.s32.totalorder %s125, %s126
      %p135 = scmp.eq.s32.totalorder %s52, 0
      %p136 = por %p134, %p135
      %p137 = scmp.ne.s32.totalorder %s125, %s126
      %p138 = scmp.eq.s32.totalorder %s53, 1
      %p139 = por %p137, %p138
      %p141 = scmp.ne.s32.totalorder %s126, %s140
      %p142 = scmp.eq.s32.totalorder %s53, 0
      %p143 = por %p141, %p142
      %s145 = sadd.s32 %s144, 1
      %p148 = scmp.eq.s32.totalorder %s47, 1
      %p149 = scmp.ne.s32.totalorder %s144, %s146
      %p150 = scmp.eq.s32.totalorder %s47, 0
      %p151 = por %p149, %p150
      %p152 = scmp.ne.s32.totalorder %s144, %s146
      %p153 = scmp.eq.s32.totalorder %s52, 1
      %p154 = por %p152, %p153
      %p155 = scmp.ne.s32.totalorder %s146, %s147
      %p156 = scmp.eq.s32.totalorder %s52, 0
      %p157 = por %p155, %p156
      %p158 = scmp.ne.s32.totalorder %s146, %s147
      %p159 = scmp.eq.s32.totalorder %s53, 1
      %p160 = por %p158, %p159
      %p162 = scmp.ne.s32.totalorder %s147, %s161
      %p163 = scmp.eq.s32.totalorder %s53, 0
      %p164 = por %p162, %p163
      %s166 = sadd.s32 %s165, 1
      %p169 = scmp.eq.s32.totalorder %s47, 1
      %p170 = scmp.ne.s32.totalorder %s165, %s167
      %p171 = scmp.eq.s32.totalorder %s47, 0
      %p172 = por %p170, %p171
      %p173 = scmp.ne.s32.totalorder %s165, %s167
      %p174 = scmp.eq.s32.totalorder %s52, 1
      %p175 = por %p173, %p174
      %p176 = scmp.ne.s32.totalorder %s167, %s168
      %p177 = scmp.eq.s32.totalorder %s52, 0
      %p178 = por %p176, %p177
      %p179 = scmp.ne.s32.totalorder %s167, %s168
      %p180 = scmp.eq.s32.totalorder %s53, 1
      %p181 = por %p179, %p180
      %p183 = scmp.ne.s32.totalorder %s168, %s182
      %p184 = scmp.eq.s32.totalorder %s53, 0
      %p185 = por %p183, %p184
      %s187 = sadd.s32 %s186, 1
      %p190 = scmp.eq.s32.totalorder %s47, 1
      %p191 = scmp.ne.s32.totalorder %s186, %s188
      %p192 = scmp.eq.s32.totalorder %s47, 0
      %p193 = por %p191, %p192
      %p194 = scmp.ne.s32.totalorder %s186, %s188
      %p195 = scmp.eq.s32.totalorder %s52, 1
      %p196 = por %p194, %p195
      %p197 = scmp.ne.s32.totalorder %s188, %s189
      %p198 = scmp.eq.s32.totalorder %s52, 0
      %p199 = por %p197, %p198
      %p200 = scmp.ne.s32.totalorder %s188, %s189
      %p201 = scmp.eq.s32.totalorder %s53, 1
      %p202 = por %p200, %p201
      %p204 = scmp.ne.s32.totalorder %s189, %s203
      %p205 = scmp.eq.s32.totalorder %s53, 0
      %p206 = por %p204, %p205
      %s208 = sadd.s32 %s207, 1
      %p211 = scmp.eq.s32.totalorder %s47, 1
      %p212 = scmp.ne.s32.totalorder %s207, %s209
      %p213 = scmp.eq.s32.totalorder %s47, 0
      %p214 = por %p212, %p213
      %p215 = scmp.ne.s32.totalorder %s207, %s209
      %p216 = scmp.eq.s32.totalorder %s52, 1
      %p217 = por %p215, %p216
      %p218 = scmp.ne.s32.totalorder %s209, %s210
      %p219 = scmp.eq.s32.totalorder %s52, 0
      %p220 = por %p218, %p219
      %p221 = scmp.ne.s32.totalorder %s209, %s210
      %p222 = scmp.eq.s32.totalorder %s53, 1
      %p223 = por %p221, %p222
      %p225 = scmp.ne.s32.totalorder %s210, %s224
      %p226 = scmp.eq.s32.totalorder %s53, 0
      %p227 = por %p225, %p226
      %s229 = sadd.s32 %s228, 1
      %p232 = scmp.eq.s32.totalorder %s47, 1
      %p233 = scmp.ne.s32.totalorder %s228, %s230
      %p234 = scmp.eq.s32.totalorder %s47, 0
      %p235 = por %p233, %p234
      %p236 = scmp.ne.s32.totalorder %s228, %s230
      %p237 = scmp.eq.s32.totalorder %s52, 1
      %p238 = por %p236, %p237
      %p239 = scmp.ne.s32.totalorder %s230, %s231
      %p240 = scmp.eq.s32.totalorder %s52, 0
      %p241 = por %p239, %p240
      %p242 = scmp.ne.s32.totalorder %s230, %s231
      %p243 = scmp.eq.s32.totalorder %s53, 1
      %p244 = por %p242, %p243
      %p246 = scmp.ne.s32.totalorder %s231, %s245
      %p247 = scmp.eq.s32.totalorder %s53, 0
      %p248 = por %p246, %p247
      %s250 = sadd.s32 %s249, 1
      %p253 = scmp.eq.s32.totalorder %s47, 1
      %p254 = scmp.ne.s32.totalorder %s249, %s251
      %p255 = scmp.eq.s32.totalorder %s47, 0
      %p256 = por %p254, %p255
      %p257 = scmp.ne.s32.totalorder %s249, %s251
      %p258 = scmp.eq.s32.totalorder %s52, 1
      %p259 = por %p257, %p258
      %p260 = scmp.ne.s32.totalorder %s251, %s252
      %p261 = scmp.eq.s32.totalorder %s52, 0
      %p262 = por %p260, %p261
      %p263 = scmp.ne.s32.totalorder %s251, %s252
      %p264 = scmp.eq.s32.totalorder %s53, 1
      %p265 = por %p263, %p264
      %p267 = scmp.ne.s32.totalorder %s252, %s266
      %p268 = scmp.eq.s32.totalorder %s53, 0
      %p269 = por %p267, %p268
      %s271 = sadd.s32 %s270, 1
      %p274 = scmp.eq.s32.totalorder %s47, 1
      %p275 = scmp.ne.s32.totalorder %s270, %s272
      %p276 = scmp.eq.s32.totalorder %s47, 0
      %p277 = por %p275, %p276
      %p278 = scmp.ne.s32.totalorder %s270, %s272
      %p279 = scmp.eq.s32.totalorder %s52, 1
      %p280 = por %p278, %p279
      %p281 = scmp.ne.s32.totalorder %s272, %s273
      %p282 = scmp.eq.s32.totalorder %s52, 0
      %p283 = por %p281, %p282
      %p284 = scmp.ne.s32.totalorder %s272, %s273
      %p285 = scmp.eq.s32.totalorder %s53, 1
      %p286 = por %p284, %p285
      %p288 = scmp.ne.s32.totalorder %s273, %s287
      %p289 = scmp.eq.s32.totalorder %s53, 0
      %p290 = por %p288, %p289
      %s292 = sadd.s32 %s291, 1
      %p295 = scmp.eq.s32.totalorder %s47, 1
      %p296 = scmp.ne.s32.totalorder %s291, %s293
      %p297 = scmp.eq.s32.totalorder %s47, 0
      %p298 = por %p296, %p297
      %p299 = scmp.ne.s32.totalorder %s291, %s293
      %p300 = scmp.eq.s32.totalorder %s52, 1
      %p301 = por %p299, %p300
      %p302 = scmp.ne.s32.totalorder %s293, %s294
      %p303 = scmp.eq.s32.totalorder %s52, 0
      %p304 = por %p302, %p303
      %p305 = scmp.ne.s32.totalorder %s293, %s294
      %p306 = scmp.eq.s32.totalorder %s53, 1
      %p307 = por %p305, %p306
      %p309 = scmp.ne.s32.totalorder %s294, %s308
      %p310 = scmp.eq.s32.totalorder %s53, 0
      %p311 = por %p309, %p310
      %s313 = sadd.s32 %s312, 1
      %p316 = scmp.eq.s32.totalorder %s47, 1
      %p317 = scmp.ne.s32.totalorder %s312, %s314
      %p318 = scmp.eq.s32.totalorder %s47, 0
      %p319 = por %p317, %p318
      %p320 = scmp.ne.s32.totalorder %s312, %s314
      %p321 = scmp.eq.s32.totalorder %s52, 1
      %p322 = por %p320, %p321
      %p323 = scmp.ne.s32.totalorder %s314, %s315
      %p324 = scmp.eq.s32.totalorder %s52, 0
      %p325 = por %p323, %p324
      %p326 = scmp.ne.s32.totalorder %s314, %s315
      %p327 = scmp.eq.s32.totalorder %s53, 1
      %p328 = por %p326, %p327
      %p330 = scmp.ne.s32.totalorder %s315, %s329
      %p331 = scmp.eq.s32.totalorder %s53, 0
      %p332 = por %p330, %p331
      %s334 = sadd.s32 %s333, 1
      %p337 = scmp.eq.s32.totalorder %s47, 1
      %p338 = scmp.ne.s32.totalorder %s333, %s335
      %p339 = scmp.eq.s32.totalorder %s47, 0
      %p340 = por %p338, %p339
      %p341 = scmp.ne.s32.totalorder %s333, %s335
      %p342 = scmp.eq.s32.totalorder %s52, 1
      %p343 = por %p341, %p342
      %p344 = scmp.ne.s32.totalorder %s335, %s336
      %p345 = scmp.eq.s32.totalorder %s52, 0
      %p346 = por %p344, %p345
      %p347 = scmp.ne.s32.totalorder %s335, %s336
      %p348 = scmp.eq.s32.totalorder %s53, 1
      %p349 = por %p347, %p348
      %p351 = scmp.ne.s32.totalorder %s336, %s350
      %p352 = scmp.eq.s32.totalorder %s53, 0
      %p353 = por %p351, %p352
      %s355 = sadd.s32 %s354, 1
      %p358 = scmp.eq.s32.totalorder %s47, 1
      %p359 = scmp.ne.s32.totalorder %s354, %s356
      %p360 = scmp.eq.s32.totalorder %s47, 0
      %p361 = por %p359, %p360
      %p362 = scmp.ne.s32.totalorder %s354, %s356
      %p363 = scmp.eq.s32.totalorder %s52, 1
      %p364 = por %p362, %p363
      %p365 = scmp.ne.s32.totalorder %s356, %s357
      %p366 = scmp.eq.s32.totalorder %s52, 0
      %p367 = por %p365, %p366
      %p368 = scmp.ne.s32.totalorder %s356, %s357
      %p369 = scmp.eq.s32.totalorder %s53, 1
      %p370 = por %p368, %p369
      %p372 = scmp.ne.s32.totalorder %s357, %s371
      %p373 = scmp.eq.s32.totalorder %s53, 0
      %p374 = por %p372, %p373
      %s376 = sadd.s32 %s375, 1
      %p379 = scmp.eq.s32.totalorder %s47, 1
      %p380 = scmp.ne.s32.totalorder %s375, %s377
      %p381 = scmp.eq.s32.totalorder %s47, 0
      %p382 = por %p380, %p381
      %p383 = scmp.ne.s32.totalorder %s375, %s377
      %p384 = scmp.eq.s32.totalorder %s52, 1
      %p385 = por %p383, %p384
      %p386 = scmp.ne.s32.totalorder %s377, %s378
      %p387 = scmp.eq.s32.totalorder %s52, 0
      %p388 = por %p386, %p387
      %p389 = scmp.ne.s32.totalorder %s377, %s378
      %p390 = scmp.eq.s32.totalorder %s53, 1
      %p391 = por %p389, %p390
      %p393 = scmp.ne.s32.totalorder %s378, %s392
      %p394 = scmp.eq.s32.totalorder %s53, 0
      %p395 = por %p393, %p394
      %s397 = sadd.s32 %s396, 1
      %p400 = scmp.eq.s32.totalorder %s47, 1
      %p401 = scmp.ne.s32.totalorder %s396, %s398
      %p402 = scmp.eq.s32.totalorder %s47, 0
      %p403 = por %p401, %p402
      %p404 = scmp.ne.s32.totalorder %s396, %s398
      %p405 = scmp.eq.s32.totalorder %s52, 1
      %p406 = por %p404, %p405
      %p407 = scmp.ne.s32.totalorder %s398, %s399
      %p408 = scmp.eq.s32.totalorder %s52, 0
      %p409 = por %p407, %p408
      %p410 = scmp.ne.s32.totalorder %s398, %s399
      %p411 = scmp.eq.s32.totalorder %s53, 1
      %p412 = por %p410, %p411
      %p414 = scmp.ne.s32.totalorder %s399, %s413
      %p415 = scmp.eq.s32.totalorder %s53, 0
      %p416 = por %p414, %p415
      %s418 = sadd.s32 %s417, 1
      %p421 = scmp.eq.s32.totalorder %s47, 1
      %p422 = scmp.ne.s32.totalorder %s417, %s419
      %p423 = scmp.eq.s32.totalorder %s47, 0
      %p424 = por %p422, %p423
      %p425 = scmp.ne.s32.totalorder %s417, %s419
      %p426 = scmp.eq.s32.totalorder %s52, 1
      %p427 = por %p425, %p426
      %p428 = scmp.ne.s32.totalorder %s419, %s420
      %p429 = scmp.eq.s32.totalorder %s52, 0
      %p430 = por %p428, %p429
      %p431 = scmp.ne.s32.totalorder %s419, %s420
      %p432 = scmp.eq.s32.totalorder %s53, 1
      %p433 = por %p431, %p432
      %p435 = scmp.ne.s32.totalorder %s420, %s434
      %p436 = scmp.eq.s32.totalorder %s53, 0
      %p437 = por %p435, %p436
      %s439 = sadd.s32 %s438, 1
      %p442 = scmp.eq.s32.totalorder %s47, 1
      %p443 = scmp.ne.s32.totalorder %s438, %s440
      %p444 = scmp.eq.s32.totalorder %s47, 0
      %p445 = por %p443, %p444
      %p446 = scmp.ne.s32.totalorder %s438, %s440
      %p447 = scmp.eq.s32.totalorder %s52, 1
      %p448 = por %p446, %p447
      %p449 = scmp.ne.s32.totalorder %s440, %s441
      %p450 = scmp.eq.s32.totalorder %s52, 0
      %p451 = por %p449, %p450
      %p452 = scmp.ne.s32.totalorder %s440, %s441
      %p453 = scmp.eq.s32.totalorder %s53, 1
      %p454 = por %p452, %p453
      %p456 = scmp.ne.s32.totalorder %s441, %s455
      %p457 = scmp.eq.s32.totalorder %s53, 0
      %p458 = por %p456, %p457
      %s460 = sadd.s32 %s459, 1
      %p463 = scmp.eq.s32.totalorder %s47, 1
      %p464 = scmp.ne.s32.totalorder %s459, %s461
      %p465 = scmp.eq.s32.totalorder %s47, 0
      %p466 = por %p464, %p465
      %p467 = scmp.ne.s32.totalorder %s459, %s461
      %p468 = scmp.eq.s32.totalorder %s52, 1
      %p469 = por %p467, %p468
      %p470 = scmp.ne.s32.totalorder %s461, %s462
      %p471 = scmp.eq.s32.totalorder %s52, 0
      %p472 = por %p470, %p471
      %p473 = scmp.ne.s32.totalorder %s461, %s462
      %p474 = scmp.eq.s32.totalorder %s53, 1
      %p475 = por %p473, %p474
      %p477 = scmp.ne.s32.totalorder %s462, %s476
      %p478 = scmp.eq.s32.totalorder %s53, 0
      %p479 = por %p477, %p478
      %s481 = sadd.s32 %s480, 1
      %p484 = scmp.eq.s32.totalorder %s47, 1
      %p485 = scmp.ne.s32.totalorder %s480, %s482
      %p486 = scmp.eq.s32.totalorder %s47, 0
      %p487 = por %p485, %p486
      %p488 = scmp.ne.s32.totalorder %s480, %s482
      %p489 = scmp.eq.s32.totalorder %s52, 1
      %p490 = por %p488, %p489
      %p491 = scmp.ne.s32.totalorder %s482, %s483
      %p492 = scmp.eq.s32.totalorder %s52, 0
      %p493 = por %p491, %p492
      %p494 = scmp.ne.s32.totalorder %s482, %s483
      %p495 = scmp.eq.s32.totalorder %s53, 1
      %p496 = por %p494, %p495
      %p498 = scmp.ne.s32.totalorder %s483, %s497
      %p499 = scmp.eq.s32.totalorder %s53, 0
      %p500 = por %p498, %p499
      %s502 = sadd.s32 %s501, 1
      %p505 = scmp.eq.s32.totalorder %s47, 1
      %p506 = scmp.ne.s32.totalorder %s501, %s503
      %p507 = scmp.eq.s32.totalorder %s47, 0
      %p508 = por %p506, %p507
      %p509 = scmp.ne.s32.totalorder %s501, %s503
      %p510 = scmp.eq.s32.totalorder %s52, 1
      %p511 = por %p509, %p510
      %p512 = scmp.ne.s32.totalorder %s503, %s504
      %p513 = scmp.eq.s32.totalorder %s52, 0
      %p514 = por %p512, %p513
      %p515 = scmp.ne.s32.totalorder %s503, %s504
      %p516 = scmp.eq.s32.totalorder %s53, 1
      %p517 = por %p515, %p516
      %p519 = scmp.ne.s32.totalorder %s504, %s518
      %p520 = scmp.eq.s32.totalorder %s53, 0
      %p521 = por %p519, %p520
      %s523 = sadd.s32 %s522, 1
      %p526 = scmp.eq.s32.totalorder %s47, 1
      %p527 = scmp.ne.s32.totalorder %s522, %s524
      %p528 = scmp.eq.s32.totalorder %s47, 0
      %p529 = por %p527, %p528
      %p530 = scmp.ne.s32.totalorder %s522, %s524
      %p531 = scmp.eq.s32.totalorder %s52, 1
      %p532 = por %p530, %p531
      %p533 = scmp.ne.s32.totalorder %s524, %s525
      %p534 = scmp.eq.s32.totalorder %s52, 0
      %p535 = por %p533, %p534
      %p536 = scmp.ne.s32.totalorder %s524, %s525
      %p537 = scmp.eq.s32.totalorder %s53, 1
      %p538 = por %p536, %p537
      %p540 = scmp.ne.s32.totalorder %s525, %s539
      %p541 = scmp.eq.s32.totalorder %s53, 0
      %p542 = por %p540, %p541
      %s544 = sadd.s32 %s543, 1
      %p547 = scmp.eq.s32.totalorder %s47, 1
      %p548 = scmp.ne.s32.totalorder %s543, %s545
      %p549 = scmp.eq.s32.totalorder %s47, 0
      %p550 = por %p548, %p549
      %p551 = scmp.ne.s32.totalorder %s543, %s545
      %p552 = scmp.eq.s32.totalorder %s52, 1
      %p553 = por %p551, %p552
      %p554 = scmp.ne.s32.totalorder %s545, %s546
      %p555 = scmp.eq.s32.totalorder %s52, 0
      %p556 = por %p554, %p555
      %p557 = scmp.ne.s32.totalorder %s545, %s546
      %p558 = scmp.eq.s32.totalorder %s53, 1
      %p559 = por %p557, %p558
      %p561 = scmp.ne.s32.totalorder %s546, %s560
      %p562 = scmp.eq.s32.totalorder %s53, 0
      %p563 = por %p561, %p562
      %s565 = sadd.s32 %s564, 1
      %p568 = scmp.eq.s32.totalorder %s47, 1
      %p569 = scmp.ne.s32.totalorder %s564, %s566
      %p570 = scmp.eq.s32.totalorder %s47, 0
      %p571 = por %p569, %p570
      %p572 = scmp.ne.s32.totalorder %s564, %s566
      %p573 = scmp.eq.s32.totalorder %s52, 1
      %p574 = por %p572, %p573
      %p575 = scmp.ne.s32.totalorder %s566, %s567
      %p576 = scmp.eq.s32.totalorder %s52, 0
      %p577 = por %p575, %p576
      %p578 = scmp.ne.s32.totalorder %s566, %s567
      %p579 = scmp.eq.s32.totalorder %s53, 1
      %p580 = por %p578, %p579
      %p582 = scmp.ne.s32.totalorder %s567, %s581
      %p583 = scmp.eq.s32.totalorder %s53, 0
      %p584 = por %p582, %p583
      %s586 = sadd.s32 %s585, 1
      %p589 = scmp.eq.s32.totalorder %s47, 1
      %p590 = scmp.ne.s32.totalorder %s585, %s587
      %p591 = scmp.eq.s32.totalorder %s47, 0
      %p592 = por %p590, %p591
      %p593 = scmp.ne.s32.totalorder %s585, %s587
      %p594 = scmp.eq.s32.totalorder %s52, 1
      %p595 = por %p593, %p594
      %p596 = scmp.ne.s32.totalorder %s587, %s588
      %p597 = scmp.eq.s32.totalorder %s52, 0
      %p598 = por %p596, %p597
      %p599 = scmp.ne.s32.totalorder %s587, %s588
      %p600 = scmp.eq.s32.totalorder %s53, 1
      %p601 = por %p599, %p600
      %p603 = scmp.ne.s32.totalorder %s588, %s602
      %p604 = scmp.eq.s32.totalorder %s53, 0
      %p605 = por %p603, %p604
      %s607 = sadd.s32 %s606, 1
      %p610 = scmp.eq.s32.totalorder %s47, 1
      %p611 = scmp.ne.s32.totalorder %s606, %s608
      %p612 = scmp.eq.s32.totalorder %s47, 0
      %p613 = por %p611, %p612
      %p614 = scmp.ne.s32.totalorder %s606, %s608
      %p615 = scmp.eq.s32.totalorder %s52, 1
      %p616 = por %p614, %p615
      %p617 = scmp.ne.s32.totalorder %s608, %s609
      %p618 = scmp.eq.s32.totalorder %s52, 0
      %p619 = por %p617, %p618
      %p620 = scmp.ne.s32.totalorder %s608, %s609
      %p621 = scmp.eq.s32.totalorder %s53, 1
      %p622 = por %p620, %p621
      %p624 = scmp.ne.s32.totalorder %s609, %s623
      %p625 = scmp.eq.s32.totalorder %s53, 0
      %p626 = por %p624, %p625
      %s627 = ssub.s32 %s47, %s54
      %p628 = scmp.eq.s32.totalorder %s627, 0
      %s630 = sadd.s32 %s629, 1
      %s631 = scalar_select %p628, %s629, %s630
      %p634 = pneg %p628
      %p635 = scmp.eq.s32.totalorder %s47, 1
      %p636 = por %p634, %p635
      %p637 = scmp.ne.s32.totalorder %s629, %s632
      %p638 = scmp.eq.s32.totalorder %s47, 0
      %p639 = por %p637, %p638
      %p640 = scmp.ne.s32.totalorder %s629, %s632
      %p641 = scmp.eq.s32.totalorder %s52, 1
      %p642 = por %p640, %p641
      %p643 = scmp.ne.s32.totalorder %s632, %s633
      %p644 = scmp.eq.s32.totalorder %s52, 0
      %p645 = por %p643, %p644
      %p646 = scmp.ne.s32.totalorder %s632, %s633
      %p647 = scmp.eq.s32.totalorder %s53, 1
      %p648 = por %p646, %p647
      %p650 = scmp.ne.s32.totalorder %s633, %s649
      %p651 = scmp.eq.s32.totalorder %s53, 0
      %p652 = por %p650, %p651
      %p653 = scmp.le.s32.totalorder 1, %s47
      %p654 = scmp.lt.s32.totalorder %s47, 3
      %p655 = pnand %p653, %p654
      %p656 = pneg %p655
      // Predicated region
      $region9: #{tpu_custom_call.1} parent=5 // pred_check
        _
      $region10: #{tpu_custom_call.1} parent=5 // pred_check_branch
        %658 = sbr.rel (%p655) target = $region12
      $region11: #{tpu_custom_call.1} parent=5 // pred_region
        %s659 = ssub.s32 %s47, 1
        // Predicated region
        $region13: #{tpu_custom_call.1} parent=11 // pred_check
          %p660 = pneg %p94
        $region14: #{tpu_custom_call.1} parent=11 // pred_check_branch
          %662 = sbr.rel (%p660) target = $region16
        $region15: #{tpu_custom_call.1} parent=11 // pred_region
          %s664 = ssub.s32 1024, 1024
          %665 = vsyncadd [#allocation6], %s664
          %s666 = sshll.u32 [#allocation5], 4
          %s667 = int_to_ptr.vmem [resolvable:$true] %s666
          %672 = dma.hbm_to_vmem [thread:$0]  %s1, 1024, %s667, [#allocation6], 64, 64, 4
        $region16: #{tpu_custom_call.1} parent=11 // pred_fallthru
          _
        // Predicated region
        $region17: #{tpu_custom_call.1} parent=11 // pred_check
          %p673 = pneg %p115
        $region18: #{tpu_custom_call.1} parent=11 // pred_check_branch
          %675 = sbr.rel (%p673) target = $region20
        $region19: #{tpu_custom_call.1} parent=11 // pred_region
          %s677 = ssub.s32 16, 16
          %678 = vsyncadd [#allocation6], %s677
          %s680 = sshll.u32 [#allocation7], 4
          %s681 = int_to_ptr.vmem [resolvable:$true] %s680
          %683 = dma.hbm_to_vmem [thread:$0]  %s2, 16, %s681, [#allocation6]
        $region20: #{tpu_custom_call.1} parent=11 // pred_fallthru
          _
        // Predicated region
        $region21: #{tpu_custom_call.1} parent=11 // pred_check
          %p684 = pneg %p136
        $region22: #{tpu_custom_call.1} parent=11 // pred_check_branch
          %686 = sbr.rel (%p684) target = $region24
        $region23: #{tpu_custom_call.1} parent=11 // pred_region
          %s688 = ssub.s32 1024, 1024
          %689 = vsyncadd [#allocation9], %s688
          %s690 = sshll.u32 [#allocation8], 4
          %s691 = int_to_ptr.vmem [resolvable:$true] %s690
          %696 = dma.hbm_to_vmem [thread:$0]  %s3, 1024, %s691, [#allocation9], 64, 64, 4
        $region24: #{tpu_custom_call.1} parent=11 // pred_fallthru
          _
        // Predicated region
        $region25: #{tpu_custom_call.1} parent=11 // pred_check
          %p697 = pneg %p157
        $region26: #{tpu_custom_call.1} parent=11 // pred_check_branch
          %699 = sbr.rel (%p697) target = $region28
        $region27: #{tpu_custom_call.1} parent=11 // pred_region
          %s701 = ssub.s32 16, 16
          %702 = vsyncadd [#allocation9], %s701
          %s704 = sshll.u32 [#allocation10], 4
          %s705 = int_to_ptr.vmem [resolvable:$true] %s704
          %707 = dma.hbm_to_vmem [thread:$0]  %s4, 16, %s705, [#allocation9]
        $region28: #{tpu_custom_call.1} parent=11 // pred_fallthru
          _
        // Predicated region
        $region29: #{tpu_custom_call.1} parent=11 // pred_check
          %p708 = pneg %p178
        $region30: #{tpu_custom_call.1} parent=11 // pred_check_branch
          %710 = sbr.rel (%p708) target = $region32
        $region31: #{tpu_custom_call.1} parent=11 // pred_region
          %s712 = ssub.s32 1024, 1024
          %713 = vsyncadd [#allocation12], %s712
          %s714 = sshll.u32 [#allocation11], 4
          %s715 = int_to_ptr.vmem [resolvable:$true] %s714
          %720 = dma.hbm_to_vmem [thread:$0]  %s5, 1024, %s715, [#allocation12], 64, 64, 4
        $region32: #{tpu_custom_call.1} parent=11 // pred_fallthru
          _
        // Predicated region
        $region33: #{tpu_custom_call.1} parent=11 // pred_check
          %p721 = pneg %p199
        $region34: #{tpu_custom_call.1} parent=11 // pred_check_branch
          %723 = sbr.rel (%p721) target = $region36
        $region35: #{tpu_custom_call.1} parent=11 // pred_region
          %s725 = ssub.s32 16, 16
          %726 = vsyncadd [#allocation12], %s725
          %s728 = sshll.u32 [#allocation13], 4
          %s729 = int_to_ptr.vmem [resolvable:$true] %s728
          %731 = dma.hbm_to_vmem [thread:$0]  %s6, 16, %s729, [#allocation12]
        $region36: #{tpu_custom_call.1} parent=11 // pred_fallthru
          _
        // Predicated region
        $region37: #{tpu_custom_call.1} parent=11 // pred_check
          %p732 = pneg %p220
        $region38: #{tpu_custom_call.1} parent=11 // pred_check_branch
          %734 = sbr.rel (%p732) target = $region40
        $region39: #{tpu_custom_call.1} parent=11 // pred_region
          %s736 = ssub.s32 1024, 1024
          %737 = vsyncadd [#allocation15], %s736
          %s738 = sshll.u32 [#allocation14], 4
          %s739 = int_to_ptr.vmem [resolvable:$true] %s738
          %744 = dma.hbm_to_vmem [thread:$0]  %s7, 1024, %s739, [#allocation15], 64, 64, 4
        $region40: #{tpu_custom_call.1} parent=11 // pred_fallthru
          _
        // Predicated region
        $region41: #{tpu_custom_call.1} parent=11 // pred_check
          %p745 = pneg %p241
        $region42: #{tpu_custom_call.1} parent=11 // pred_check_branch
          %747 = sbr.rel (%p745) target = $region44
        $region43: #{tpu_custom_call.1} parent=11 // pred_region
          _
        $region44: #{tpu_custom_call.1} parent=11 // pred_fallthru
          _
        // Predicated region
        $region45: #{tpu_custom_call.1} parent=11 // pred_check
          %p748 = pneg %p262
        $region46: #{tpu_custom_call.1} parent=11 // pred_check_branch
          %750 = sbr.rel (%p748) target = $region48
        $region47: #{tpu_custom_call.1} parent=11 // pred_region
          %s752 = ssub.s32 1024, 1024
          %753 = vsyncadd [#allocation15], %s752
          %s754 = sshll.u32 [#allocation16], 4
          %s755 = int_to_ptr.vmem [resolvable:$true] %s754
          %760 = dma.hbm_to_vmem [thread:$0]  %s9, 1024, %s755, [#allocation15], 64, 64, 4
        $region48: #{tpu_custom_call.1} parent=11 // pred_fallthru
          _
        // Predicated region
        $region49: #{tpu_custom_call.1} parent=11 // pred_check
          %p761 = pneg %p283
        $region50: #{tpu_custom_call.1} parent=11 // pred_check_branch
          %763 = sbr.rel (%p761) target = $region52
        $region51: #{tpu_custom_call.1} parent=11 // pred_region
          _
        $region52: #{tpu_custom_call.1} parent=11 // pred_fallthru
          _
        // Predicated region
        $region53: #{tpu_custom_call.1} parent=11 // pred_check
          %p764 = pneg %p304
        $region54: #{tpu_custom_call.1} parent=11 // pred_check_branch
          %766 = sbr.rel (%p764) target = $region56
        $region55: #{tpu_custom_call.1} parent=11 // pred_region
          %s768 = ssub.s32 2048, 2048
          %769 = vsyncadd [#allocation18], %s768
          %s770 = sshll.u32 [#allocation17], 4
          %s771 = int_to_ptr.vmem [resolvable:$true] %s770
          %776 = dma.hbm_to_vmem [thread:$0]  %s11, 2048, %s771, [#allocation18], 64, 64, 4
        $region56: #{tpu_custom_call.1} parent=11 // pred_fallthru
          _
        // Predicated region
        $region57: #{tpu_custom_call.1} parent=11 // pred_check
          %p777 = pneg %p325
        $region58: #{tpu_custom_call.1} parent=11 // pred_check_branch
          %779 = sbr.rel (%p777) target = $region60
        $region59: #{tpu_custom_call.1} parent=11 // pred_region
          _
        $region60: #{tpu_custom_call.1} parent=11 // pred_fallthru
          _
        // Predicated region
        $region61: #{tpu_custom_call.1} parent=11 // pred_check
          %p780 = pneg %p346
        $region62: #{tpu_custom_call.1} parent=11 // pred_check_branch
          %782 = sbr.rel (%p780) target = $region64
        $region63: #{tpu_custom_call.1} parent=11 // pred_region
          %s784 = ssub.s32 2048, 2048
          %785 = vsyncadd [#allocation18], %s784
          %s786 = sshll.u32 [#allocation19], 4
          %s787 = int_to_ptr.vmem [resolvable:$true] %s786
          %792 = dma.hbm_to_vmem [thread:$0]  %s13, 2048, %s787, [#allocation18], 64, 64, 4
        $region64: #{tpu_custom_call.1} parent=11 // pred_fallthru
          _
        // Predicated region
        $region65: #{tpu_custom_call.1} parent=11 // pred_check
          %p793 = pneg %p367
        $region66: #{tpu_custom_call.1} parent=11 // pred_check_branch
          %795 = sbr.rel (%p793) target = $region68
        $region67: #{tpu_custom_call.1} parent=11 // pred_region
          _
        $region68: #{tpu_custom_call.1} parent=11 // pred_fallthru
          _
        // Predicated region
        $region69: #{tpu_custom_call.1} parent=11 // pred_check
          %p796 = pneg %p388
        $region70: #{tpu_custom_call.1} parent=11 // pred_check_branch
          %798 = sbr.rel (%p796) target = $region72
        $region71: #{tpu_custom_call.1} parent=11 // pred_region
          %s800 = ssub.s32 2048, 2048
          %801 = vsyncadd [#allocation21], %s800
          %s802 = sshll.u32 [#allocation20], 4
          %s803 = int_to_ptr.vmem [resolvable:$true] %s802
          %808 = dma.hbm_to_vmem [thread:$0]  %s15, 2048, %s803, [#allocation21], 64, 64, 4
        $region72: #{tpu_custom_call.1} parent=11 // pred_fallthru
          _
        // Predicated region
        $region73: #{tpu_custom_call.1} parent=11 // pred_check
          %p809 = pneg %p409
        $region74: #{tpu_custom_call.1} parent=11 // pred_check_branch
          %811 = sbr.rel (%p809) target = $region76
        $region75: #{tpu_custom_call.1} parent=11 // pred_region
          _
        $region76: #{tpu_custom_call.1} parent=11 // pred_fallthru
          _
        // Predicated region
        $region77: #{tpu_custom_call.1} parent=11 // pred_check
          %p812 = pneg %p430
        $region78: #{tpu_custom_call.1} parent=11 // pred_check_branch
          %814 = sbr.rel (%p812) target = $region80
        $region79: #{tpu_custom_call.1} parent=11 // pred_region
          %s816 = ssub.s32 2048, 2048
          %817 = vsyncadd [#allocation21], %s816
          %s818 = sshll.u32 [#allocation22], 4
          %s819 = int_to_ptr.vmem [resolvable:$true] %s818
          %824 = dma.hbm_to_vmem [thread:$0]  %s17, 2048, %s819, [#allocation21], 64, 64, 4
        $region80: #{tpu_custom_call.1} parent=11 // pred_fallthru
          _
        // Predicated region
        $region81: #{tpu_custom_call.1} parent=11 // pred_check
          %p825 = pneg %p451
        $region82: #{tpu_custom_call.1} parent=11 // pred_check_branch
          %827 = sbr.rel (%p825) target = $region84
        $region83: #{tpu_custom_call.1} parent=11 // pred_region
          _
        $region84: #{tpu_custom_call.1} parent=11 // pred_fallthru
          _
        // Predicated region
        $region85: #{tpu_custom_call.1} parent=11 // pred_check
          %p828 = pneg %p472
        $region86: #{tpu_custom_call.1} parent=11 // pred_check_branch
          %830 = sbr.rel (%p828) target = $region88
        $region87: #{tpu_custom_call.1} parent=11 // pred_region
          %s832 = ssub.s32 2048, 2048
          %833 = vsyncadd [#allocation24], %s832
          %s834 = sshll.u32 [#allocation23], 4
          %s835 = int_to_ptr.vmem [resolvable:$true] %s834
          %840 = dma.hbm_to_vmem [thread:$0]  %s19, 2048, %s835, [#allocation24], 64, 64, 4
        $region88: #{tpu_custom_call.1} parent=11 // pred_fallthru
          _
        // Predicated region
        $region89: #{tpu_custom_call.1} parent=11 // pred_check
          %p841 = pneg %p493
        $region90: #{tpu_custom_call.1} parent=11 // pred_check_branch
          %843 = sbr.rel (%p841) target = $region92
        $region91: #{tpu_custom_call.1} parent=11 // pred_region
          _
        $region92: #{tpu_custom_call.1} parent=11 // pred_fallthru
          _
        // Predicated region
        $region93: #{tpu_custom_call.1} parent=11 // pred_check
          %p844 = pneg %p514
        $region94: #{tpu_custom_call.1} parent=11 // pred_check_branch
          %846 = sbr.rel (%p844) target = $region96
        $region95: #{tpu_custom_call.1} parent=11 // pred_region
          %s848 = ssub.s32 1024, 1024
          %849 = vsyncadd [#allocation24], %s848
          %s850 = sshll.u32 [#allocation25], 4
          %s851 = int_to_ptr.vmem [resolvable:$true] %s850
          %856 = dma.hbm_to_vmem [thread:$0]  %s21, 1024, %s851, [#allocation24], 64, 64, 4
        $region96: #{tpu_custom_call.1} parent=11 // pred_fallthru
          _
        // Predicated region
        $region97: #{tpu_custom_call.1} parent=11 // pred_check
          %p857 = pneg %p535
        $region98: #{tpu_custom_call.1} parent=11 // pred_check_branch
          %859 = sbr.rel (%p857) target = $region100
        $region99: #{tpu_custom_call.1} parent=11 // pred_region
          _
        $region100: #{tpu_custom_call.1} parent=11 // pred_fallthru
          _
        // Predicated region
        $region101: #{tpu_custom_call.1} parent=11 // pred_check
          %p860 = pneg %p556
        $region102: #{tpu_custom_call.1} parent=11 // pred_check_branch
          %862 = sbr.rel (%p860) target = $region104
        $region103: #{tpu_custom_call.1} parent=11 // pred_region
          %s864 = ssub.s32 1024, 1024
          %865 = vsyncadd [#allocation27], %s864
          %s866 = sshll.u32 [#allocation26], 4
          %s867 = int_to_ptr.vmem [resolvable:$true] %s866
          %872 = dma.hbm_to_vmem [thread:$0]  %s23, 1024, %s867, [#allocation27], 64, 64, 4
        $region104: #{tpu_custom_call.1} parent=11 // pred_fallthru
          _
        // Predicated region
        $region105: #{tpu_custom_call.1} parent=11 // pred_check
          %p873 = pneg %p577
        $region106: #{tpu_custom_call.1} parent=11 // pred_check_branch
          %875 = sbr.rel (%p873) target = $region108
        $region107: #{tpu_custom_call.1} parent=11 // pred_region
          _
        $region108: #{tpu_custom_call.1} parent=11 // pred_fallthru
          _
        // Predicated region
        $region109: #{tpu_custom_call.1} parent=11 // pred_check
          %p876 = pneg %p598
        $region110: #{tpu_custom_call.1} parent=11 // pred_check_branch
          %878 = sbr.rel (%p876) target = $region112
        $region111: #{tpu_custom_call.1} parent=11 // pred_region
          %s880 = ssub.s32 1024, 1024
          %881 = vsyncadd [#allocation27], %s880
          %s882 = sshll.u32 [#allocation28], 4
          %s883 = int_to_ptr.vmem [resolvable:$true] %s882
          %888 = dma.hbm_to_vmem [thread:$0]  %s25, 1024, %s883, [#allocation27], 64, 64, 4
        $region112: #{tpu_custom_call.1} parent=11 // pred_fallthru
          _
        // Predicated region
        $region113: #{tpu_custom_call.1} parent=11 // pred_check
          %p889 = pneg %p619
        $region114: #{tpu_custom_call.1} parent=11 // pred_check_branch
          %891 = sbr.rel (%p889) target = $region116
        $region115: #{tpu_custom_call.1} parent=11 // pred_region
          _
        $region116: #{tpu_custom_call.1} parent=11 // pred_fallthru
          _
      $region12: #{tpu_custom_call.1} parent=5 // pred_fallthru
        _
      %p892 = scmp.lt.s32.totalorder %s47, 2
      // Predicated region
      $region117: #{tpu_custom_call.1} parent=5 // pred_check
        %p893 = pneg %p892
      $region118: #{tpu_custom_call.1} parent=5 // pred_check_branch
        %895 = sbr.rel (%p893) target = $region120
      $region119: #{tpu_custom_call.1} parent=5 // pred_region
        // Predicated region
        $region121: #{tpu_custom_call.1} parent=119 // pred_check
          %p896 = pneg %p67
        $region122: #{tpu_custom_call.1} parent=119 // pred_check_branch
          %898 = sbr.rel (%p896) target = $region124
        $region123: #{tpu_custom_call.1} parent=119 // pred_region
          %s899 = sand.u32 %s57, 1
          %s900 = scalar_lea.sflag [#allocation3], %s899
          %s901 = sand.u32 %s57, 1
          %s902 = smul.addr %s901, 8
          %s903 = scalar_lea.vmem [#allocation2], %s902
          %s905 = ssub.s32 128, 128
          %906 = vsyncadd %s900, %s905
          %s907 = smul.addr %s47, 128
          %s908 = scalar_lea.hbm %s0, %s907
          %s910 = sshll.u32 %s903, 4
          %s911 = int_to_ptr.vmem [resolvable:$true] %s910
          %913 = dma.hbm_to_vmem [thread:$0]  %s908, 128, %s911, %s900
        $region124: #{tpu_custom_call.1} parent=119 // pred_fallthru
          _
      $region120: #{tpu_custom_call.1} parent=5 // pred_fallthru
        _
      %p914 = scmp.le.s32.totalorder 1, %s47
      %p915 = scmp.lt.s32.totalorder %s47, 3
      %p916 = pnand %p914, %p915
      %p917 = pneg %p916
      // Predicated region
      $region125: #{tpu_custom_call.1} parent=5 // pred_check
        _
      $region126: #{tpu_custom_call.1} parent=5 // pred_check_branch
        %919 = sbr.rel (%p916) target = $region128
      $region127: #{tpu_custom_call.1} parent=5 // pred_region
        %s920 = ssub.s32 %s47, 1
        %s921 = sand.u32 %s60, 1
        %s922 = scalar_lea.sflag [#allocation3], %s921
        %s923 = sand.u32 %s60, 1
        %s924 = smul.addr %s923, 8
        %s925 = scalar_lea.vmem [#allocation2], %s924
        // Predicated region
        $region129: #{tpu_custom_call.1} parent=127 // pred_check
          %p926 = pneg %p73
        $region130: #{tpu_custom_call.1} parent=127 // pred_check_branch
          %928 = sbr.rel (%p926) target = $region132
        $region131: #{tpu_custom_call.1} parent=127 // pred_region
          %929 = dma.done %s922, 128
        $region132: #{tpu_custom_call.1} parent=127 // pred_fallthru
          _
        // Predicated region
        $region133: #{tpu_custom_call.1} parent=127 // pred_check
          %p930 = pneg %p94
        $region134: #{tpu_custom_call.1} parent=127 // pred_check_branch
          %932 = sbr.rel (%p930) target = $region136
        $region135: #{tpu_custom_call.1} parent=127 // pred_region
          %933 = dma.done [#allocation6], 1024
        $region136: #{tpu_custom_call.1} parent=127 // pred_fallthru
          _
        // Predicated region
        $region137: #{tpu_custom_call.1} parent=127 // pred_check
          %p934 = pneg %p115
        $region138: #{tpu_custom_call.1} parent=127 // pred_check_branch
          %936 = sbr.rel (%p934) target = $region140
        $region139: #{tpu_custom_call.1} parent=127 // pred_region
          %937 = dma.done [#allocation6], 16
        $region140: #{tpu_custom_call.1} parent=127 // pred_fallthru
          _
        // Predicated region
        $region141: #{tpu_custom_call.1} parent=127 // pred_check
          %p938 = pneg %p136
        $region142: #{tpu_custom_call.1} parent=127 // pred_check_branch
          %940 = sbr.rel (%p938) target = $region144
        $region143: #{tpu_custom_call.1} parent=127 // pred_region
          %941 = dma.done [#allocation9], 1024
        $region144: #{tpu_custom_call.1} parent=127 // pred_fallthru
          _
        // Predicated region
        $region145: #{tpu_custom_call.1} parent=127 // pred_check
          %p942 = pneg %p157
        $region146: #{tpu_custom_call.1} parent=127 // pred_check_branch
          %944 = sbr.rel (%p942) target = $region148
        $region147: #{tpu_custom_call.1} parent=127 // pred_region
          %945 = dma.done [#allocation9], 16
        $region148: #{tpu_custom_call.1} parent=127 // pred_fallthru
          _
        // Predicated region
        $region149: #{tpu_custom_call.1} parent=127 // pred_check
          %p946 = pneg %p178
        $region150: #{tpu_custom_call.1} parent=127 // pred_check_branch
          %948 = sbr.rel (%p946) target = $region152
        $region151: #{tpu_custom_call.1} parent=127 // pred_region
          %949 = dma.done [#allocation12], 1024
        $region152: #{tpu_custom_call.1} parent=127 // pred_fallthru
          _
        // Predicated region
        $region153: #{tpu_custom_call.1} parent=127 // pred_check
          %p950 = pneg %p199
        $region154: #{tpu_custom_call.1} parent=127 // pred_check_branch
          %952 = sbr.rel (%p950) target = $region156
        $region155: #{tpu_custom_call.1} parent=127 // pred_region
          %953 = dma.done [#allocation12], 16
        $region156: #{tpu_custom_call.1} parent=127 // pred_fallthru
          _
        // Predicated region
        $region157: #{tpu_custom_call.1} parent=127 // pred_check
          %p954 = pneg %p220
        $region158: #{tpu_custom_call.1} parent=127 // pred_check_branch
          %956 = sbr.rel (%p954) target = $region160
        $region159: #{tpu_custom_call.1} parent=127 // pred_region
          %957 = dma.done [#allocation15], 1024
        $region160: #{tpu_custom_call.1} parent=127 // pred_fallthru
          _
        // Predicated region
        $region161: #{tpu_custom_call.1} parent=127 // pred_check
          %p958 = pneg %p262
        $region162: #{tpu_custom_call.1} parent=127 // pred_check_branch
          %960 = sbr.rel (%p958) target = $region164
        $region163: #{tpu_custom_call.1} parent=127 // pred_region
          %961 = dma.done [#allocation15], 1024
        $region164: #{tpu_custom_call.1} parent=127 // pred_fallthru
          _
        // Predicated region
        $region165: #{tpu_custom_call.1} parent=127 // pred_check
          %p962 = pneg %p304
        $region166: #{tpu_custom_call.1} parent=127 // pred_check_branch
          %964 = sbr.rel (%p962) target = $region168
        $region167: #{tpu_custom_call.1} parent=127 // pred_region
          %965 = dma.done [#allocation18], 2048
        $region168: #{tpu_custom_call.1} parent=127 // pred_fallthru
          _
        // Predicated region
        $region169: #{tpu_custom_call.1} parent=127 // pred_check
          %p966 = pneg %p346
        $region170: #{tpu_custom_call.1} parent=127 // pred_check_branch
          %968 = sbr.rel (%p966) target = $region172
        $region171: #{tpu_custom_call.1} parent=127 // pred_region
          %969 = dma.done [#allocation18], 2048
        $region172: #{tpu_custom_call.1} parent=127 // pred_fallthru
          _
        // Predicated region
        $region173: #{tpu_custom_call.1} parent=127 // pred_check
          %p970 = pneg %p388
        $region174: #{tpu_custom_call.1} parent=127 // pred_check_branch
          %972 = sbr.rel (%p970) target = $region176
        $region175: #{tpu_custom_call.1} parent=127 // pred_region
          %973 = dma.done [#allocation21], 2048
        $region176: #{tpu_custom_call.1} parent=127 // pred_fallthru
          _
        // Predicated region
        $region177: #{tpu_custom_call.1} parent=127 // pred_check
          %p974 = pneg %p430
        $region178: #{tpu_custom_call.1} parent=127 // pred_check_branch
          %976 = sbr.rel (%p974) target = $region180
        $region179: #{tpu_custom_call.1} parent=127 // pred_region
          %977 = dma.done [#allocation21], 2048
        $region180: #{tpu_custom_call.1} parent=127 // pred_fallthru
          _
        // Predicated region
        $region181: #{tpu_custom_call.1} parent=127 // pred_check
          %p978 = pneg %p472
        $region182: #{tpu_custom_call.1} parent=127 // pred_check_branch
          %980 = sbr.rel (%p978) target = $region184
        $region183: #{tpu_custom_call.1} parent=127 // pred_region
          %981 = dma.done [#allocation24], 2048
        $region184: #{tpu_custom_call.1} parent=127 // pred_fallthru
          _
        // Predicated region
        $region185: #{tpu_custom_call.1} parent=127 // pred_check
          %p982 = pneg %p514
        $region186: #{tpu_custom_call.1} parent=127 // pred_check_branch
          %984 = sbr.rel (%p982) target = $region188
        $region187: #{tpu_custom_call.1} parent=127 // pred_region
          %985 = dma.done [#allocation24], 1024
        $region188: #{tpu_custom_call.1} parent=127 // pred_fallthru
          _
        // Predicated region
        $region189: #{tpu_custom_call.1} parent=127 // pred_check
          %p986 = pneg %p556
        $region190: #{tpu_custom_call.1} parent=127 // pred_check_branch
          %988 = sbr.rel (%p986) target = $region192
        $region191: #{tpu_custom_call.1} parent=127 // pred_region
          %989 = dma.done [#allocation27], 1024
        $region192: #{tpu_custom_call.1} parent=127 // pred_fallthru
          _
        // Predicated region
        $region193: #{tpu_custom_call.1} parent=127 // pred_check
          %p990 = pneg %p598
        $region194: #{tpu_custom_call.1} parent=127 // pred_check_branch
          %992 = sbr.rel (%p990) target = $region196
        $region195: #{tpu_custom_call.1} parent=127 // pred_region
          %993 = dma.done [#allocation27], 1024
        $region196: #{tpu_custom_call.1} parent=127 // pred_fallthru
          _
        %s994 = sand.u32 %s60, 1
        %s995 = scalar_lea.sflag [#allocation3], %s994
        %s996 = sand.u32 %s60, 1
        %s997 = smul.addr %s996, 8
        %s998 = scalar_lea.vmem [#allocation2], %s997
        %p999 = pneg %p73
        %p1000 = pneg %p70
        %p1001 = pneg %p94
        %p1002 = pneg %p91
        %p1003 = pneg %p115
        %p1004 = pneg %p112
        %p1005 = pneg %p136
        %p1006 = pneg %p133
        %p1007 = pneg %p157
        %p1008 = pneg %p154
        %p1009 = pneg %p178
        %p1010 = pneg %p175
        %p1011 = pneg %p199
        %p1012 = pneg %p196
        %p1013 = pneg %p220
        %p1014 = pneg %p217
        %p1015 = pneg %p241
        %p1016 = pneg %p238
        %p1017 = pneg %p262
        %p1018 = pneg %p259
        %p1019 = pneg %p283
        %p1020 = pneg %p280
        %p1021 = pneg %p304
        %p1022 = pneg %p301
        %p1023 = pneg %p325
        %p1024 = pneg %p322
        %p1025 = pneg %p346
        %p1026 = pneg %p343
        %p1027 = pneg %p367
        %p1028 = pneg %p364
        %p1029 = pneg %p388
        %p1030 = pneg %p385
        %p1031 = pneg %p409
        %p1032 = pneg %p406
        %p1033 = pneg %p430
        %p1034 = pneg %p427
        %p1035 = pneg %p451
        %p1036 = pneg %p448
        %p1037 = pneg %p472
        %p1038 = pneg %p469
        %p1039 = pneg %p493
        %p1040 = pneg %p490
        %p1041 = pneg %p514
        %p1042 = pneg %p511
        %p1043 = pneg %p535
        %p1044 = pneg %p532
        %p1045 = pneg %p556
        %p1046 = pneg %p553
        %p1047 = pneg %p577
        %p1048 = pneg %p574
        %p1049 = pneg %p598
        %p1050 = pneg %p595
        %p1051 = pneg %p619
        %p1052 = pneg %p616
        %p1053 = pneg %p645
        %p1054 = pneg %p642
        %s1055 = sand.u32 %s632, 1
        %s1056 = scalar_lea.sflag [#allocation4], %s1055
        %s1057 = sand.u32 %s632, 1
        %s1058 = smul.addr %s1057, 8
        %s1059 = scalar_lea.vmem [#allocation29], %s1058
        %v1061 = vlaneseq
        %v1062 = vand.u32 %v1061, 127
        %vm1063 = vcmp.lt.s32.totalorder %v1062, 64
        %v1064 = vsel %vm1063, 1, 0
        %v1065 = vcvt.s32.f32 %v1064
        %v1066 = vld [vmem:[%s925] sm:$0xff]
        %v1067 = vld [vmem:[#allocation5] sm:$0xf]
        %v1068 = vld [vmem:[#allocation5 + $0x4] sm:$0xf]
        %v1069 = vld [vmem:[#allocation5 + $0x8] sm:$0xf]
        %v1070 = vld [vmem:[#allocation5 + $0xc] sm:$0xf]
        %v1071 = vld [vmem:[#allocation5 + $0x10] sm:$0xf]
        %v1072 = vld [vmem:[#allocation5 + $0x14] sm:$0xf]
        %v1073 = vld [vmem:[#allocation5 + $0x18] sm:$0xf]
        %v1074 = vld [vmem:[#allocation5 + $0x1c] sm:$0xf]
        %v1075 = vld [vmem:[#allocation5 + $0x20] sm:$0xf]
        %v1076 = vld [vmem:[#allocation5 + $0x24] sm:$0xf]
        %v1077 = vld [vmem:[#allocation5 + $0x28] sm:$0xf]
        %v1078 = vld [vmem:[#allocation5 + $0x2c] sm:$0xf]
        %v1079 = vld [vmem:[#allocation5 + $0x30] sm:$0xf]
        %v1080 = vld [vmem:[#allocation5 + $0x34] sm:$0xf]
        %v1081 = vld [vmem:[#allocation5 + $0x38] sm:$0xf]
        %v1082 = vld [vmem:[#allocation5 + $0x3c] sm:$0xf]
        %v1083 = vld [vmem:[#allocation7] sm:$0x1]
        %v1084 = vld [vmem:[#allocation8] sm:$0xf]
        %v1085 = vld [vmem:[#allocation8 + $0x4] sm:$0xf]
        %v1086 = vld [vmem:[#allocation8 + $0x8] sm:$0xf]
        %v1087 = vld [vmem:[#allocation8 + $0xc] sm:$0xf]
        %v1088 = vld [vmem:[#allocation8 + $0x10] sm:$0xf]
        %v1089 = vld [vmem:[#allocation8 + $0x14] sm:$0xf]
        %v1090 = vld [vmem:[#allocation8 + $0x18] sm:$0xf]
        %v1091 = vld [vmem:[#allocation8 + $0x1c] sm:$0xf]
        %v1092 = vld [vmem:[#allocation8 + $0x20] sm:$0xf]
        %v1093 = vld [vmem:[#allocation8 + $0x24] sm:$0xf]
        %v1094 = vld [vmem:[#allocation8 + $0x28] sm:$0xf]
        %v1095 = vld [vmem:[#allocation8 + $0x2c] sm:$0xf]
        %v1096 = vld [vmem:[#allocation8 + $0x30] sm:$0xf]
        %v1097 = vld [vmem:[#allocation8 + $0x34] sm:$0xf]
        %v1098 = vld [vmem:[#allocation8 + $0x38] sm:$0xf]
        %v1099 = vld [vmem:[#allocation8 + $0x3c] sm:$0xf]
        %v1100 = vld [vmem:[#allocation10] sm:$0x1]
        %v1101 = vld [vmem:[#allocation11] sm:$0xf]
        %v1102 = vld [vmem:[#allocation11 + $0x4] sm:$0xf]
        %v1103 = vld [vmem:[#allocation11 + $0x8] sm:$0xf]
        %v1104 = vld [vmem:[#allocation11 + $0xc] sm:$0xf]
        %v1105 = vld [vmem:[#allocation11 + $0x10] sm:$0xf]
        %v1106 = vld [vmem:[#allocation11 + $0x14] sm:$0xf]
        %v1107 = vld [vmem:[#allocation11 + $0x18] sm:$0xf]
        %v1108 = vld [vmem:[#allocation11 + $0x1c] sm:$0xf]
        %v1109 = vld [vmem:[#allocation11 + $0x20] sm:$0xf]
        %v1110 = vld [vmem:[#allocation11 + $0x24] sm:$0xf]
        %v1111 = vld [vmem:[#allocation11 + $0x28] sm:$0xf]
        %v1112 = vld [vmem:[#allocation11 + $0x2c] sm:$0xf]
        %v1113 = vld [vmem:[#allocation11 + $0x30] sm:$0xf]
        %v1114 = vld [vmem:[#allocation11 + $0x34] sm:$0xf]
        %v1115 = vld [vmem:[#allocation11 + $0x38] sm:$0xf]
        %v1116 = vld [vmem:[#allocation11 + $0x3c] sm:$0xf]
        %v1117 = vld [vmem:[#allocation13] sm:$0x1]
        %v1118 = vld [vmem:[#allocation14] sm:$0xf]
        %v1119 = vld [vmem:[#allocation14 + $0x4] sm:$0xf]
        %v1120 = vld [vmem:[#allocation14 + $0x8] sm:$0xf]
        %v1121 = vld [vmem:[#allocation14 + $0xc] sm:$0xf]
        %v1122 = vld [vmem:[#allocation14 + $0x10] sm:$0xf]
        %v1123 = vld [vmem:[#allocation14 + $0x14] sm:$0xf]
        %v1124 = vld [vmem:[#allocation14 + $0x18] sm:$0xf]
        %v1125 = vld [vmem:[#allocation14 + $0x1c] sm:$0xf]
        %v1126 = vld [vmem:[#allocation14 + $0x20] sm:$0xf]
        %v1127 = vld [vmem:[#allocation14 + $0x24] sm:$0xf]
        %v1128 = vld [vmem:[#allocation14 + $0x28] sm:$0xf]
        %v1129 = vld [vmem:[#allocation14 + $0x2c] sm:$0xf]
        %v1130 = vld [vmem:[#allocation14 + $0x30] sm:$0xf]
        %v1131 = vld [vmem:[#allocation14 + $0x34] sm:$0xf]
        %v1132 = vld [vmem:[#allocation14 + $0x38] sm:$0xf]
        %v1133 = vld [vmem:[#allocation14 + $0x3c] sm:$0xf]
        %v1134 = vld [vmem:[%s8] sm:$0x1]
        %v1135 = vld [vmem:[#allocation16] sm:$0xf]
        %v1136 = vld [vmem:[#allocation16 + $0x4] sm:$0xf]
        %v1137 = vld [vmem:[#allocation16 + $0x8] sm:$0xf]
        %v1138 = vld [vmem:[#allocation16 + $0xc] sm:$0xf]
        %v1139 = vld [vmem:[#allocation16 + $0x10] sm:$0xf]
        %v1140 = vld [vmem:[#allocation16 + $0x14] sm:$0xf]
        %v1141 = vld [vmem:[#allocation16 + $0x18] sm:$0xf]
        %v1142 = vld [vmem:[#allocation16 + $0x1c] sm:$0xf]
        %v1143 = vld [vmem:[#allocation16 + $0x20] sm:$0xf]
        %v1144 = vld [vmem:[#allocation16 + $0x24] sm:$0xf]
        %v1145 = vld [vmem:[#allocation16 + $0x28] sm:$0xf]
        %v1146 = vld [vmem:[#allocation16 + $0x2c] sm:$0xf]
        %v1147 = vld [vmem:[#allocation16 + $0x30] sm:$0xf]
        %v1148 = vld [vmem:[#allocation16 + $0x34] sm:$0xf]
        %v1149 = vld [vmem:[#allocation16 + $0x38] sm:$0xf]
        %v1150 = vld [vmem:[#allocation16 + $0x3c] sm:$0xf]
        %v1151 = vld [vmem:[%s10] sm:$0x1]
        %v1152 = vpack.c.bf16 %v1066, %v1066
        %v1154 = vlaneseq
        %v1155 = vshrl.u32 %v1154, 7
        %v1156 = vsub.s32 0, %v1155
        %v1157 = vrot.slane %v1083, %v1156
        %v1175 = vunpack.c.l.b16 %v1067
        %v1176 = vunpack.c.l.b16 %v1068
        %v1177 = vunpack.c.l.b16 %v1069
        %v1178 = vunpack.c.l.b16 %v1070
        %v1179 = vunpack.c.l.b16 %v1071
        %v1180 = vunpack.c.l.b16 %v1072
        %v1181 = vunpack.c.l.b16 %v1073
        %v1182 = vunpack.c.l.b16 %v1074
        %v1183 = vunpack.c.l.b16 %v1075
        %v1184 = vunpack.c.l.b16 %v1076
        %v1185 = vunpack.c.l.b16 %v1077
        %v1186 = vunpack.c.l.b16 %v1078
        %v1187 = vunpack.c.l.b16 %v1079
        %v1188 = vunpack.c.l.b16 %v1080
        %v1189 = vunpack.c.l.b16 %v1081
        %v1190 = vunpack.c.l.b16 %v1082
        %v1191 = vpack.c.b16 %v1176, %v1175
        %v1192 = vpack.c.b16 %v1178, %v1177
        %v1193 = vpack.c.b16 %v1180, %v1179
        %v1194 = vpack.c.b16 %v1182, %v1181
        %v1195 = vpack.c.b16 %v1184, %v1183
        %v1196 = vpack.c.b16 %v1186, %v1185
        %v1197 = vpack.c.b16 %v1188, %v1187
        %v1198 = vpack.c.b16 %v1190, %v1189
        %1207 = vmatprep.subr.bf16.mxu0 0
        %1208 = vmatpush1.bf16.msra.mxu0 %v1198
        %1209 = vmatprep.subr.bf16.mxu0 0
        %1210 = vmatpush1.bf16.msra.mxu0 %v1197
        %1211 = vmatprep.subr.bf16.mxu0 0
        %1212 = vmatpush1.bf16.msra.mxu0 %v1196
        %1213 = vmatprep.subr.bf16.mxu0 0
        %1214 = vmatpush1.bf16.msra.mxu0 %v1195
        %1215 = vmatprep.subr.bf16.mxu0 0
        %1216 = vmatpush1.bf16.msra.mxu0 %v1194
        %1217 = vmatprep.subr.bf16.mxu0 0
        %1218 = vmatpush1.bf16.msra.mxu0 %v1193
        %1219 = vmatprep.subr.bf16.mxu0 0
        %1220 = vmatpush1.bf16.msra.mxu0 %v1192
        %1221 = vmatprep.subr.bf16.mxu0 0
        %1222 = vmatpush1.bf16.msra.mxu0 %v1191
        %1223 = vmatprep.subr.bf16.mxu0 0
        %1224 = vmatpush2.bf16.msra.mxu0 0
        %1225 = vmatprep.subr.bf16.mxu0 0
        %1226 = vmatpush2.bf16.msra.mxu0 0
        %1227 = vmatprep.subr.bf16.mxu0 0
        %1228 = vmatpush2.bf16.msra.mxu0 0
        %1229 = vmatprep.subr.bf16.mxu0 0
        %1230 = vmatpush2.bf16.msra.mxu0 0
        %1231 = vmatprep.subr.bf16.mxu0 0
        %1232 = vmatpush2.bf16.msra.mxu0 0
        %1233 = vmatprep.subr.bf16.mxu0 0
        %1234 = vmatpush2.bf16.msra.mxu0 0
        %1235 = vmatprep.subr.bf16.mxu0 0
        %1236 = vmatpush2.bf16.msra.mxu0 0
        %1237 = vmatprep.subr.bf16.mxu0 0
        %1238 = vmatpush2.bf16.msra.mxu0 0
        %1239 = vmatprep.mubr.bf16.mxu0 0
        %1240 = vmatmul.mubr.bf16.gmra.mxu0 %v1152
        %v1241 = vpop.f32.mrf.mxu0
        %v1242 = vadd.f32 %v1157, %v1241
        %v1243 = vpop.f32.mrf.mxu0
        %v1244 = vpop.f32.mrf.mxu0
        %v1245 = vpop.f32.mrf.mxu0
        %1246 = vdwg.mxu0
        %v1248 = vlaneseq
        %v1249 = vshrl.u32 %v1248, 7
        %v1250 = vsub.s32 0, %v1249
        %v1251 = vrot.slane %v1100, %v1250
        %v1269 = vunpack.c.l.b16 %v1084
        %v1270 = vunpack.c.l.b16 %v1085
        %v1271 = vunpack.c.l.b16 %v1086
        %v1272 = vunpack.c.l.b16 %v1087
        %v1273 = vunpack.c.l.b16 %v1088
        %v1274 = vunpack.c.l.b16 %v1089
        %v1275 = vunpack.c.l.b16 %v1090
        %v1276 = vunpack.c.l.b16 %v1091
        %v1277 = vunpack.c.l.b16 %v1092
        %v1278 = vunpack.c.l.b16 %v1093
        %v1279 = vunpack.c.l.b16 %v1094
        %v1280 = vunpack.c.l.b16 %v1095
        %v1281 = vunpack.c.l.b16 %v1096
        %v1282 = vunpack.c.l.b16 %v1097
        %v1283 = vunpack.c.l.b16 %v1098
        %v1284 = vunpack.c.l.b16 %v1099
        %v1285 = vpack.c.b16 %v1270, %v1269
        %v1286 = vpack.c.b16 %v1272, %v1271
        %v1287 = vpack.c.b16 %v1274, %v1273
        %v1288 = vpack.c.b16 %v1276, %v1275
        %v1289 = vpack.c.b16 %v1278, %v1277
        %v1290 = vpack.c.b16 %v1280, %v1279
        %v1291 = vpack.c.b16 %v1282, %v1281
        %v1292 = vpack.c.b16 %v1284, %v1283
        %1301 = vmatprep.subr.bf16.mxu0 0
        %1302 = vmatpush1.bf16.msra.mxu0 %v1292
        %1303 = vmatprep.subr.bf16.mxu0 0
        %1304 = vmatpush1.bf16.msra.mxu0 %v1291
        %1305 = vmatprep.subr.bf16.mxu0 0
        %1306 = vmatpush1.bf16.msra.mxu0 %v1290
        %1307 = vmatprep.subr.bf16.mxu0 0
        %1308 = vmatpush1.bf16.msra.mxu0 %v1289
        %1309 = vmatprep.subr.bf16.mxu0 0
        %1310 = vmatpush1.bf16.msra.mxu0 %v1288
        %1311 = vmatprep.subr.bf16.mxu0 0
        %1312 = vmatpush1.bf16.msra.mxu0 %v1287
        %1313 = vmatprep.subr.bf16.mxu0 0
        %1314 = vmatpush1.bf16.msra.mxu0 %v1286
        %1315 = vmatprep.subr.bf16.mxu0 0
        %1316 = vmatpush1.bf16.msra.mxu0 %v1285
        %1317 = vmatprep.subr.bf16.mxu0 0
        %1318 = vmatpush2.bf16.msra.mxu0 0
        %1319 = vmatprep.subr.bf16.mxu0 0
        %1320 = vmatpush2.bf16.msra.mxu0 0
        %1321 = vmatprep.subr.bf16.mxu0 0
        %1322 = vmatpush2.bf16.msra.mxu0 0
        %1323 = vmatprep.subr.bf16.mxu0 0
        %1324 = vmatpush2.bf16.msra.mxu0 0
        %1325 = vmatprep.subr.bf16.mxu0 0
        %1326 = vmatpush2.bf16.msra.mxu0 0
        %1327 = vmatprep.subr.bf16.mxu0 0
        %1328 = vmatpush2.bf16.msra.mxu0 0
        %1329 = vmatprep.subr.bf16.mxu0 0
        %1330 = vmatpush2.bf16.msra.mxu0 0
        %1331 = vmatprep.subr.bf16.mxu0 0
        %1332 = vmatpush2.bf16.msra.mxu0 0
        %1333 = vmatprep.mubr.bf16.mxu0 0
        %1334 = vmatmul.mubr.bf16.gmra.mxu0 %v1152
        %v1335 = vpop.f32.mrf.mxu0
        %v1336 = vadd.f32 %v1251, %v1335
        %v1337 = vpop.f32.mrf.mxu0
        %v1338 = vpop.f32.mrf.mxu0
        %v1339 = vpop.f32.mrf.mxu0
        %1340 = vdwg.mxu0
        %v1342 = vlaneseq
        %v1343 = vshrl.u32 %v1342, 7
        %v1344 = vsub.s32 0, %v1343
        %v1345 = vrot.slane %v1117, %v1344
        %v1363 = vunpack.c.l.b16 %v1101
        %v1364 = vunpack.c.l.b16 %v1102
        %v1365 = vunpack.c.l.b16 %v1103
        %v1366 = vunpack.c.l.b16 %v1104
        %v1367 = vunpack.c.l.b16 %v1105
        %v1368 = vunpack.c.l.b16 %v1106
        %v1369 = vunpack.c.l.b16 %v1107
        %v1370 = vunpack.c.l.b16 %v1108
        %v1371 = vunpack.c.l.b16 %v1109
        %v1372 = vunpack.c.l.b16 %v1110
        %v1373 = vunpack.c.l.b16 %v1111
        %v1374 = vunpack.c.l.b16 %v1112
        %v1375 = vunpack.c.l.b16 %v1113
        %v1376 = vunpack.c.l.b16 %v1114
        %v1377 = vunpack.c.l.b16 %v1115
        %v1378 = vunpack.c.l.b16 %v1116
        %v1379 = vpack.c.b16 %v1364, %v1363
        %v1380 = vpack.c.b16 %v1366, %v1365
        %v1381 = vpack.c.b16 %v1368, %v1367
        %v1382 = vpack.c.b16 %v1370, %v1369
        %v1383 = vpack.c.b16 %v1372, %v1371
        %v1384 = vpack.c.b16 %v1374, %v1373
        %v1385 = vpack.c.b16 %v1376, %v1375
        %v1386 = vpack.c.b16 %v1378, %v1377
        %1395 = vmatprep.subr.bf16.mxu0 0
        %1396 = vmatpush1.bf16.msra.mxu0 %v1386
        %1397 = vmatprep.subr.bf16.mxu0 0
        %1398 = vmatpush1.bf16.msra.mxu0 %v1385
        %1399 = vmatprep.subr.bf16.mxu0 0
        %1400 = vmatpush1.bf16.msra.mxu0 %v1384
        %1401 = vmatprep.subr.bf16.mxu0 0
        %1402 = vmatpush1.bf16.msra.mxu0 %v1383
        %1403 = vmatprep.subr.bf16.mxu0 0
        %1404 = vmatpush1.bf16.msra.mxu0 %v1382
        %1405 = vmatprep.subr.bf16.mxu0 0
        %1406 = vmatpush1.bf16.msra.mxu0 %v1381
        %1407 = vmatprep.subr.bf16.mxu0 0
        %1408 = vmatpush1.bf16.msra.mxu0 %v1380
        %1409 = vmatprep.subr.bf16.mxu0 0
        %1410 = vmatpush1.bf16.msra.mxu0 %v1379
        %1411 = vmatprep.subr.bf16.mxu0 0
        %1412 = vmatpush2.bf16.msra.mxu0 0
        %1413 = vmatprep.subr.bf16.mxu0 0
        %1414 = vmatpush2.bf16.msra.mxu0 0
        %1415 = vmatprep.subr.bf16.mxu0 0
        %1416 = vmatpush2.bf16.msra.mxu0 0
        %1417 = vmatprep.subr.bf16.mxu0 0
        %1418 = vmatpush2.bf16.msra.mxu0 0
        %1419 = vmatprep.subr.bf16.mxu0 0
        %1420 = vmatpush2.bf16.msra.mxu0 0
        %1421 = vmatprep.subr.bf16.mxu0 0
        %1422 = vmatpush2.bf16.msra.mxu0 0
        %1423 = vmatprep.subr.bf16.mxu0 0
        %1424 = vmatpush2.bf16.msra.mxu0 0
        %1425 = vmatprep.subr.bf16.mxu0 0
        %1426 = vmatpush2.bf16.msra.mxu0 0
        %1427 = vmatprep.mubr.bf16.mxu0 0
        %1428 = vmatmul.mubr.bf16.gmra.mxu0 %v1152
        %v1429 = vpop.f32.mrf.mxu0
        %v1430 = vadd.f32 %v1345, %v1429
        %v1431 = vpop.f32.mrf.mxu0
        %v1432 = vpop.f32.mrf.mxu0
        %v1433 = vpop.f32.mrf.mxu0
        %1434 = vdwg.mxu0
        %v1435 = vpack.c.bf16 %v1242, %v1242
        %v1436 = vpack.c.bf16 %v1336, %v1336
        %1437 = vmatprep.subr.bf16.mxu0 0
        %1438 = vmatpush1.bf16.xpose.msra.mxu0 0
        %1439 = vmatprep.subr.bf16.mxu0 0
        %1440 = vmatpush1.bf16.xpose.msra.mxu0 0
        %1441 = vmatprep.subr.bf16.mxu0 0
        %1442 = vmatpush1.bf16.xpose.msra.mxu0 0
        %1443 = vmatprep.subr.bf16.mxu0 0
        %1444 = vmatpush1.bf16.xpose.msra.mxu0 0
        %1445 = vmatprep.subr.bf16.mxu0 0
        %1446 = vmatpush1.bf16.xpose.msra.mxu0 0
        %1447 = vmatprep.subr.bf16.mxu0 0
        %1448 = vmatpush1.bf16.xpose.msra.mxu0 0
        %1449 = vmatprep.subr.bf16.mxu0 0
        %1450 = vmatpush1.bf16.xpose.msra.mxu0 0
        %1451 = vmatprep.subr.bf16.mxu0 0
        %1452 = vmatpush1.bf16.xpose.msra.mxu0 %v1436
        %1453 = vmatprep.subr.bf16.mxu0 0
        %1454 = vmatpush2.bf16.xpose.msra.mxu0 0
        %1455 = vmatprep.subr.bf16.mxu0 0
        %1456 = vmatpush2.bf16.xpose.msra.mxu0 0
        %1457 = vmatprep.subr.bf16.mxu0 0
        %1458 = vmatpush2.bf16.xpose.msra.mxu0 0
        %1459 = vmatprep.subr.bf16.mxu0 0
        %1460 = vmatpush2.bf16.xpose.msra.mxu0 0
        %1461 = vmatprep.subr.bf16.mxu0 0
        %1462 = vmatpush2.bf16.xpose.msra.mxu0 0
        %1463 = vmatprep.subr.bf16.mxu0 0
        %1464 = vmatpush2.bf16.xpose.msra.mxu0 0
        %1465 = vmatprep.subr.bf16.mxu0 0
        %1466 = vmatpush2.bf16.xpose.msra.mxu0 0
        %1467 = vmatprep.subr.bf16.mxu0 0
        %1468 = vmatpush2.bf16.xpose.msra.mxu0 0
        %1469 = vmatprep.mubr.bf16.mxu0 0
        %1470 = vmatmul.mubr.bf16.gmra.mxu0 %v1435
        %v1471 = vpop.f32.mrf.mxu0
        %v1472 = vadd.f32 0.0, %v1471
        %v1473 = vpop.f32.mrf.mxu0
        %v1474 = vpop.f32.mrf.mxu0
        %v1475 = vpop.f32.mrf.mxu0
        %1476 = vdwg.mxu0
        %vm1477 = vcmask 64512
        %v1478 = vsel %vm1477, %v1472, -inf
        %1479 = vmax.xlane.f32.xlu0 %v1478
        %v1480 = vpop.xlane.xlu0 %1479
        %v1481 = vsub.f32 %v1472, %v1480
        %v1482 = vmul.f32 %v1481, 1.442695
        %v1483 = vpow.pop %v1482
        %v1484 = vsel %vm1477, %v1483, 0.0
        %1485 = vadd.xlane.f32.xlu0 %v1484
        %v1486 = vpop.xlane.xlu0 %1485
        %v1487 = vrcp.pop %v1486
        %v1488 = vmul.f32 %v1483, %v1487
        %v1489 = vpack.c.bf16 %v1488, %v1488
        %v1490 = vpack.c.bf16 %v1430, %v1430
        %v1492 = vsel %vm1477, %v1489, 0
        %vm1494 = vcmask 1043456
        %v1496 = vsel %vm1494, %v1490, 0
        %1498 = vmatprep.subr.bf16.mxu0 0
        %1499 = vmatpush1.bf16.msra.mxu0 0
        %1500 = vmatprep.subr.bf16.mxu0 0
        %1501 = vmatpush1.bf16.msra.mxu0 0
        %1502 = vmatprep.subr.bf16.mxu0 0
        %1503 = vmatpush1.bf16.msra.mxu0 0
        %1504 = vmatprep.subr.bf16.mxu0 0
        %1505 = vmatpush1.bf16.msra.mxu0 0
        %1506 = vmatprep.subr.bf16.mxu0 0
        %1507 = vmatpush1.bf16.msra.mxu0 0
        %1508 = vmatprep.subr.bf16.mxu0 0
        %1509 = vmatpush1.bf16.msra.mxu0 0
        %1510 = vmatprep.subr.bf16.mxu0 0
        %1511 = vmatpush1.bf16.msra.mxu0 0
        %1512 = vmatprep.subr.bf16.mxu0 0
        %1513 = vmatpush1.bf16.msra.mxu0 %v1496
        %1514 = vmatprep.subr.bf16.mxu0 0
        %1515 = vmatpush2.bf16.msra.mxu0 0
        %1516 = vmatprep.subr.bf16.mxu0 0
        %1517 = vmatpush2.bf16.msra.mxu0 0
        %1518 = vmatprep.subr.bf16.mxu0 0
        %1519 = vmatpush2.bf16.msra.mxu0 0
        %1520 = vmatprep.subr.bf16.mxu0 0
        %1521 = vmatpush2.bf16.msra.mxu0 0
        %1522 = vmatprep.subr.bf16.mxu0 0
        %1523 = vmatpush2.bf16.msra.mxu0 0
        %1524 = vmatprep.subr.bf16.mxu0 0
        %1525 = vmatpush2.bf16.msra.mxu0 0
        %1526 = vmatprep.subr.bf16.mxu0 0
        %1527 = vmatpush2.bf16.msra.mxu0 0
        %1528 = vmatprep.subr.bf16.mxu0 0
        %1529 = vmatpush2.bf16.msra.mxu0 0
        %1530 = vmatprep.mubr.bf16.mxu0 0
        %1531 = vmatmul.mubr.bf16.gmra.mxu0 %v1492
        %v1532 = vpop.f32.mrf.mxu0
        %v1533 = vadd.f32 %v1242, %v1532
        %v1534 = vpop.f32.mrf.mxu0
        %v1535 = vpop.f32.mrf.mxu0
        %v1536 = vpop.f32.mrf.mxu0
        %1537 = vdwg.mxu0
        %1538 = vadd.xlane.f32.xlu0 %v1533
        %v1539 = vpop.xlane.xlu0 %1538
        %v1540 = vmul.f32 %v1539, 0.015625
        %v1541 = vsub.f32 %v1533, %v1540
        %v1542 = vmul.f32 %v1541, %v1065
        %v1543 = vmul.f32 %v1542, %v1542
        %1544 = vadd.xlane.f32.xlu0 %v1543
        %v1545 = vpop.xlane.xlu0 %1544
        %v1546 = vmul.f32 %v1545, 0.015625
        %v1547 = vadd.f32 %v1546, 1e-05
        %v1548 = vrsqrt.pop %v1547
        %v1549 = vmul.f32 %v1542, %v1548
        %v1550 = vpack.c.bf16 %v1549, %v1549
        %v1552 = vlaneseq
        %v1553 = vshrl.u32 %v1552, 7
        %v1554 = vsub.s32 0, %v1553
        %v1555 = vrot.slane %v1134, %v1554
        %v1573 = vunpack.c.l.b16 %v1118
        %v1574 = vunpack.c.l.b16 %v1119
        %v1575 = vunpack.c.l.b16 %v1120
        %v1576 = vunpack.c.l.b16 %v1121
        %v1577 = vunpack.c.l.b16 %v1122
        %v1578 = vunpack.c.l.b16 %v1123
        %v1579 = vunpack.c.l.b16 %v1124
        %v1580 = vunpack.c.l.b16 %v1125
        %v1581 = vunpack.c.l.b16 %v1126
        %v1582 = vunpack.c.l.b16 %v1127
        %v1583 = vunpack.c.l.b16 %v1128
        %v1584 = vunpack.c.l.b16 %v1129
        %v1585 = vunpack.c.l.b16 %v1130
        %v1586 = vunpack.c.l.b16 %v1131
        %v1587 = vunpack.c.l.b16 %v1132
        %v1588 = vunpack.c.l.b16 %v1133
        %v1589 = vpack.c.b16 %v1574, %v1573
        %v1590 = vpack.c.b16 %v1576, %v1575
        %v1591 = vpack.c.b16 %v1578, %v1577
        %v1592 = vpack.c.b16 %v1580, %v1579
        %v1593 = vpack.c.b16 %v1582, %v1581
        %v1594 = vpack.c.b16 %v1584, %v1583
        %v1595 = vpack.c.b16 %v1586, %v1585
        %v1596 = vpack.c.b16 %v1588, %v1587
        %1605 = vmatprep.subr.bf16.mxu0 0
        %1606 = vmatpush1.bf16.msra.mxu0 %v1596
        %1607 = vmatprep.subr.bf16.mxu0 0
        %1608 = vmatpush1.bf16.msra.mxu0 %v1595
        %1609 = vmatprep.subr.bf16.mxu0 0
        %1610 = vmatpush1.bf16.msra.mxu0 %v1594
        %1611 = vmatprep.subr.bf16.mxu0 0
        %1612 = vmatpush1.bf16.msra.mxu0 %v1593
        %1613 = vmatprep.subr.bf16.mxu0 0
        %1614 = vmatpush1.bf16.msra.mxu0 %v1592
        %1615 = vmatprep.subr.bf16.mxu0 0
        %1616 = vmatpush1.bf16.msra.mxu0 %v1591
        %1617 = vmatprep.subr.bf16.mxu0 0
        %1618 = vmatpush1.bf16.msra.mxu0 %v1590
        %1619 = vmatprep.subr.bf16.mxu0 0
        %1620 = vmatpush1.bf16.msra.mxu0 %v1589
        %1621 = vmatprep.subr.bf16.mxu0 0
        %1622 = vmatpush2.bf16.msra.mxu0 0
        %1623 = vmatprep.subr.bf16.mxu0 0
        %1624 = vmatpush2.bf16.msra.mxu0 0
        %1625 = vmatprep.subr.bf16.mxu0 0
        %1626 = vmatpush2.bf16.msra.mxu0 0
        %1627 = vmatprep.subr.bf16.mxu0 0
        %1628 = vmatpush2.bf16.msra.mxu0 0
        %1629 = vmatprep.subr.bf16.mxu0 0
        %1630 = vmatpush2.bf16.msra.mxu0 0
        %1631 = vmatprep.subr.bf16.mxu0 0
        %1632 = vmatpush2.bf16.msra.mxu0 0
        %1633 = vmatprep.subr.bf16.mxu0 0
        %1634 = vmatpush2.bf16.msra.mxu0 0
        %1635 = vmatprep.subr.bf16.mxu0 0
        %1636 = vmatpush2.bf16.msra.mxu0 0
        %1637 = vmatprep.mubr.bf16.mxu0 0
        %1638 = vmatmul.mubr.bf16.gmra.mxu0 %v1550
        %v1639 = vpop.f32.mrf.mxu0
        %v1640 = vadd.f32 %v1555, %v1639
        %v1641 = vpop.f32.mrf.mxu0
        %v1642 = vpop.f32.mrf.mxu0
        %v1643 = vpop.f32.mrf.mxu0
        %1644 = vdwg.mxu0
        %v1645 = vmax.f32 %v1640, 0.0
        %v1646 = vpack.c.bf16 %v1645, %v1645
        %v1663 = vunpack.c.l.b16 %v1135
        %v1664 = vunpack.c.l.b16 %v1136
        %v1665 = vunpack.c.l.b16 %v1137
        %v1666 = vunpack.c.l.b16 %v1138
        %v1667 = vunpack.c.l.b16 %v1139
        %v1668 = vunpack.c.l.b16 %v1140
        %v1669 = vunpack.c.l.b16 %v1141
        %v1670 = vunpack.c.l.b16 %v1142
        %v1671 = vunpack.c.l.b16 %v1143
        %v1672 = vunpack.c.l.b16 %v1144
        %v1673 = vunpack.c.l.b16 %v1145
        %v1674 = vunpack.c.l.b16 %v1146
        %v1675 = vunpack.c.l.b16 %v1147
        %v1676 = vunpack.c.l.b16 %v1148
        %v1677 = vunpack.c.l.b16 %v1149
        %v1678 = vunpack.c.l.b16 %v1150
        %v1679 = vpack.c.b16 %v1664, %v1663
        %v1680 = vpack.c.b16 %v1666, %v1665
        %v1681 = vpack.c.b16 %v1668, %v1667
        %v1682 = vpack.c.b16 %v1670, %v1669
        %v1683 = vpack.c.b16 %v1672, %v1671
        %v1684 = vpack.c.b16 %v1674, %v1673
        %v1685 = vpack.c.b16 %v1676, %v1675
        %v1686 = vpack.c.b16 %v1678, %v1677
        %1695 = vmatprep.subr.bf16.mxu0 0
        %1696 = vmatpush1.bf16.msra.mxu0 %v1686
        %1697 = vmatprep.subr.bf16.mxu0 0
        %1698 = vmatpush1.bf16.msra.mxu0 %v1685
        %1699 = vmatprep.subr.bf16.mxu0 0
        %1700 = vmatpush1.bf16.msra.mxu0 %v1684
        %1701 = vmatprep.subr.bf16.mxu0 0
        %1702 = vmatpush1.bf16.msra.mxu0 %v1683
        %1703 = vmatprep.subr.bf16.mxu0 0
        %1704 = vmatpush1.bf16.msra.mxu0 %v1682
        %1705 = vmatprep.subr.bf16.mxu0 0
        %1706 = vmatpush1.bf16.msra.mxu0 %v1681
        %1707 = vmatprep.subr.bf16.mxu0 0
        %1708 = vmatpush1.bf16.msra.mxu0 %v1680
        %1709 = vmatprep.subr.bf16.mxu0 0
        %1710 = vmatpush1.bf16.msra.mxu0 %v1679
        %1711 = vmatprep.subr.bf16.mxu0 0
        %1712 = vmatpush2.bf16.msra.mxu0 0
        %1713 = vmatprep.subr.bf16.mxu0 0
        %1714 = vmatpush2.bf16.msra.mxu0 0
        %1715 = vmatprep.subr.bf16.mxu0 0
        %1716 = vmatpush2.bf16.msra.mxu0 0
        %1717 = vmatprep.subr.bf16.mxu0 0
        %1718 = vmatpush2.bf16.msra.mxu0 0
        %1719 = vmatprep.subr.bf16.mxu0 0
        %1720 = vmatpush2.bf16.msra.mxu0 0
        %1721 = vmatprep.subr.bf16.mxu0 0
        %1722 = vmatpush2.bf16.msra.mxu0 0
        %1723 = vmatprep.subr.bf16.mxu0 0
        %1724 = vmatpush2.bf16.msra.mxu0 0
        %1725 = vmatprep.subr.bf16.mxu0 0
        %1726 = vmatpush2.bf16.msra.mxu0 0
        %1727 = vmatprep.mubr.bf16.mxu0 0
        %1728 = vmatmul.mubr.bf16.gmra.mxu0 %v1646
        %v1729 = vpop.f32.mrf.mxu0
        %v1730 = vadd.f32 0.0, %v1729
        %v1731 = vpop.f32.mrf.mxu0
        %v1732 = vpop.f32.mrf.mxu0
        %v1733 = vpop.f32.mrf.mxu0
        %1734 = vdwg.mxu0
        %v1735 = vadd.f32 %v1549, %v1730
        %v1737 = vlaneseq
        %v1738 = vshrl.u32 %v1737, 7
        %v1739 = vsub.s32 0, %v1738
        %v1740 = vrot.slane %v1151, %v1739
        %v1742 = vadd.f32 %v1735, %v1740
        %1743 = vadd.xlane.f32.xlu0 %v1742
        %v1744 = vpop.xlane.xlu0 %1743
        %v1745 = vmul.f32 %v1744, 0.015625
        %v1746 = vsub.f32 %v1742, %v1745
        %v1747 = vmul.f32 %v1746, %v1065
        %v1748 = vmul.f32 %v1747, %v1747
        %1749 = vadd.xlane.f32.xlu0 %v1748
        %v1750 = vpop.xlane.xlu0 %1749
        %v1751 = vmul.f32 %v1750, 0.015625
        %v1752 = vadd.f32 %v1751, 1e-05
        %v1753 = vrsqrt.pop %v1752
        %v1754 = vmul.f32 %v1747, %v1753
        %v1755 = vld [vmem:[#allocation17] sm:$0xf]
        %v1756 = vld [vmem:[#allocation17 + $0x4] sm:$0xf]
        %v1757 = vld [vmem:[#allocation17 + $0x8] sm:$0xf]
        %v1758 = vld [vmem:[#allocation17 + $0xc] sm:$0xf]
        %v1759 = vld [vmem:[#allocation17 + $0x10] sm:$0xf]
        %v1760 = vld [vmem:[#allocation17 + $0x14] sm:$0xf]
        %v1761 = vld [vmem:[#allocation17 + $0x18] sm:$0xf]
        %v1762 = vld [vmem:[#allocation17 + $0x1c] sm:$0xf]
        %v1763 = vld [vmem:[#allocation17 + $0x20] sm:$0xf]
        %v1764 = vld [vmem:[#allocation17 + $0x24] sm:$0xf]
        %v1765 = vld [vmem:[#allocation17 + $0x28] sm:$0xf]
        %v1766 = vld [vmem:[#allocation17 + $0x2c] sm:$0xf]
        %v1767 = vld [vmem:[#allocation17 + $0x30] sm:$0xf]
        %v1768 = vld [vmem:[#allocation17 + $0x34] sm:$0xf]
        %v1769 = vld [vmem:[#allocation17 + $0x38] sm:$0xf]
        %v1770 = vld [vmem:[#allocation17 + $0x3c] sm:$0xf]
        %v1771 = vld [vmem:[%s12] sm:$0x1]
        %v1772 = vld [vmem:[#allocation19] sm:$0xf]
        %v1773 = vld [vmem:[#allocation19 + $0x4] sm:$0xf]
        %v1774 = vld [vmem:[#allocation19 + $0x8] sm:$0xf]
        %v1775 = vld [vmem:[#allocation19 + $0xc] sm:$0xf]
        %v1776 = vld [vmem:[#allocation19 + $0x10] sm:$0xf]
        %v1777 = vld [vmem:[#allocation19 + $0x14] sm:$0xf]
        %v1778 = vld [vmem:[#allocation19 + $0x18] sm:$0xf]
        %v1779 = vld [vmem:[#allocation19 + $0x1c] sm:$0xf]
        %v1780 = vld [vmem:[#allocation19 + $0x20] sm:$0xf]
        %v1781 = vld [vmem:[#allocation19 + $0x24] sm:$0xf]
        %v1782 = vld [vmem:[#allocation19 + $0x28] sm:$0xf]
        %v1783 = vld [vmem:[#allocation19 + $0x2c] sm:$0xf]
        %v1784 = vld [vmem:[#allocation19 + $0x30] sm:$0xf]
        %v1785 = vld [vmem:[#allocation19 + $0x34] sm:$0xf]
        %v1786 = vld [vmem:[#allocation19 + $0x38] sm:$0xf]
        %v1787 = vld [vmem:[#allocation19 + $0x3c] sm:$0xf]
        %v1788 = vld [vmem:[%s14] sm:$0x1]
        %v1789 = vld [vmem:[#allocation20] sm:$0xf]
        %v1790 = vld [vmem:[#allocation20 + $0x4] sm:$0xf]
        %v1791 = vld [vmem:[#allocation20 + $0x8] sm:$0xf]
        %v1792 = vld [vmem:[#allocation20 + $0xc] sm:$0xf]
        %v1793 = vld [vmem:[#allocation20 + $0x10] sm:$0xf]
        %v1794 = vld [vmem:[#allocation20 + $0x14] sm:$0xf]
        %v1795 = vld [vmem:[#allocation20 + $0x18] sm:$0xf]
        %v1796 = vld [vmem:[#allocation20 + $0x1c] sm:$0xf]
        %v1797 = vld [vmem:[#allocation20 + $0x20] sm:$0xf]
        %v1798 = vld [vmem:[#allocation20 + $0x24] sm:$0xf]
        %v1799 = vld [vmem:[#allocation20 + $0x28] sm:$0xf]
        %v1800 = vld [vmem:[#allocation20 + $0x2c] sm:$0xf]
        %v1801 = vld [vmem:[#allocation20 + $0x30] sm:$0xf]
        %v1802 = vld [vmem:[#allocation20 + $0x34] sm:$0xf]
        %v1803 = vld [vmem:[#allocation20 + $0x38] sm:$0xf]
        %v1804 = vld [vmem:[#allocation20 + $0x3c] sm:$0xf]
        %v1805 = vld [vmem:[%s16] sm:$0x1]
        %v1806 = vld [vmem:[#allocation22] sm:$0xf]
        %v1807 = vld [vmem:[#allocation22 + $0x4] sm:$0xf]
        %v1808 = vld [vmem:[#allocation22 + $0x8] sm:$0xf]
        %v1809 = vld [vmem:[#allocation22 + $0xc] sm:$0xf]
        %v1810 = vld [vmem:[#allocation22 + $0x10] sm:$0xf]
        %v1811 = vld [vmem:[#allocation22 + $0x14] sm:$0xf]
        %v1812 = vld [vmem:[#allocation22 + $0x18] sm:$0xf]
        %v1813 = vld [vmem:[#allocation22 + $0x1c] sm:$0xf]
        %v1814 = vld [vmem:[#allocation22 + $0x20] sm:$0xf]
        %v1815 = vld [vmem:[#allocation22 + $0x24] sm:$0xf]
        %v1816 = vld [vmem:[#allocation22 + $0x28] sm:$0xf]
        %v1817 = vld [vmem:[#allocation22 + $0x2c] sm:$0xf]
        %v1818 = vld [vmem:[#allocation22 + $0x30] sm:$0xf]
        %v1819 = vld [vmem:[#allocation22 + $0x34] sm:$0xf]
        %v1820 = vld [vmem:[#allocation22 + $0x38] sm:$0xf]
        %v1821 = vld [vmem:[#allocation22 + $0x3c] sm:$0xf]
        %v1822 = vld [vmem:[%s18] sm:$0x1]
        %v1823 = vld [vmem:[#allocation23] sm:$0xf]
        %v1824 = vld [vmem:[#allocation23 + $0x4] sm:$0xf]
        %v1825 = vld [vmem:[#allocation23 + $0x8] sm:$0xf]
        %v1826 = vld [vmem:[#allocation23 + $0xc] sm:$0xf]
        %v1827 = vld [vmem:[#allocation23 + $0x10] sm:$0xf]
        %v1828 = vld [vmem:[#allocation23 + $0x14] sm:$0xf]
        %v1829 = vld [vmem:[#allocation23 + $0x18] sm:$0xf]
        %v1830 = vld [vmem:[#allocation23 + $0x1c] sm:$0xf]
        %v1831 = vld [vmem:[#allocation23 + $0x20] sm:$0xf]
        %v1832 = vld [vmem:[#allocation23 + $0x24] sm:$0xf]
        %v1833 = vld [vmem:[#allocation23 + $0x28] sm:$0xf]
        %v1834 = vld [vmem:[#allocation23 + $0x2c] sm:$0xf]
        %v1835 = vld [vmem:[#allocation23 + $0x30] sm:$0xf]
        %v1836 = vld [vmem:[#allocation23 + $0x34] sm:$0xf]
        %v1837 = vld [vmem:[#allocation23 + $0x38] sm:$0xf]
        %v1838 = vld [vmem:[#allocation23 + $0x3c] sm:$0xf]
        %v1839 = vld [vmem:[%s20] sm:$0x1]
        %v1840 = vpack.c.bf16 %v1754, %v1754
        %v1842 = vlaneseq
        %v1843 = vshrl.u32 %v1842, 7
        %v1844 = vsub.s32 0, %v1843
        %v1845 = vrot.slane %v1771, %v1844
        %v1863 = vunpack.c.l.b16 %v1755
        %v1864 = vunpack.c.l.b16 %v1756
        %v1865 = vunpack.c.l.b16 %v1757
        %v1866 = vunpack.c.l.b16 %v1758
        %v1867 = vunpack.c.l.b16 %v1759
        %v1868 = vunpack.c.l.b16 %v1760
        %v1869 = vunpack.c.l.b16 %v1761
        %v1870 = vunpack.c.l.b16 %v1762
        %v1871 = vunpack.c.l.b16 %v1763
        %v1872 = vunpack.c.l.b16 %v1764
        %v1873 = vunpack.c.l.b16 %v1765
        %v1874 = vunpack.c.l.b16 %v1766
        %v1875 = vunpack.c.l.b16 %v1767
        %v1876 = vunpack.c.l.b16 %v1768
        %v1877 = vunpack.c.l.b16 %v1769
        %v1878 = vunpack.c.l.b16 %v1770
        %v1879 = vpack.c.b16 %v1864, %v1863
        %v1880 = vpack.c.b16 %v1866, %v1865
        %v1881 = vpack.c.b16 %v1868, %v1867
        %v1882 = vpack.c.b16 %v1870, %v1869
        %v1883 = vpack.c.b16 %v1872, %v1871
        %v1884 = vpack.c.b16 %v1874, %v1873
        %v1885 = vpack.c.b16 %v1876, %v1875
        %v1886 = vpack.c.b16 %v1878, %v1877
        %1895 = vmatprep.subr.bf16.mxu0 0
        %1896 = vmatpush1.bf16.msra.mxu0 %v1886
        %1897 = vmatprep.subr.bf16.mxu0 0
        %1898 = vmatpush1.bf16.msra.mxu0 %v1885
        %1899 = vmatprep.subr.bf16.mxu0 0
        %1900 = vmatpush1.bf16.msra.mxu0 %v1884
        %1901 = vmatprep.subr.bf16.mxu0 0
        %1902 = vmatpush1.bf16.msra.mxu0 %v1883
        %1903 = vmatprep.subr.bf16.mxu0 0
        %1904 = vmatpush1.bf16.msra.mxu0 %v1882
        %1905 = vmatprep.subr.bf16.mxu0 0
        %1906 = vmatpush1.bf16.msra.mxu0 %v1881
        %1907 = vmatprep.subr.bf16.mxu0 0
        %1908 = vmatpush1.bf16.msra.mxu0 %v1880
        %1909 = vmatprep.subr.bf16.mxu0 0
        %1910 = vmatpush1.bf16.msra.mxu0 %v1879
        %1911 = vmatprep.subr.bf16.mxu0 0
        %1912 = vmatpush2.bf16.msra.mxu0 0
        %1913 = vmatprep.subr.bf16.mxu0 0
        %1914 = vmatpush2.bf16.msra.mxu0 0
        %1915 = vmatprep.subr.bf16.mxu0 0
        %1916 = vmatpush2.bf16.msra.mxu0 0
        %1917 = vmatprep.subr.bf16.mxu0 0
        %1918 = vmatpush2.bf16.msra.mxu0 0
        %1919 = vmatprep.subr.bf16.mxu0 0
        %1920 = vmatpush2.bf16.msra.mxu0 0
        %1921 = vmatprep.subr.bf16.mxu0 0
        %1922 = vmatpush2.bf16.msra.mxu0 0
        %1923 = vmatprep.subr.bf16.mxu0 0
        %1924 = vmatpush2.bf16.msra.mxu0 0
        %1925 = vmatprep.subr.bf16.mxu0 0
        %1926 = vmatpush2.bf16.msra.mxu0 0
        %1927 = vmatprep.mubr.bf16.mxu0 0
        %1928 = vmatmul.mubr.bf16.gmra.mxu0 %v1840
        %v1929 = vpop.f32.mrf.mxu0
        %v1930 = vadd.f32 %v1845, %v1929
        %v1931 = vpop.f32.mrf.mxu0
        %v1932 = vpop.f32.mrf.mxu0
        %v1933 = vpop.f32.mrf.mxu0
        %1934 = vdwg.mxu0
        %v1936 = vlaneseq
        %v1937 = vshrl.u32 %v1936, 7
        %v1938 = vsub.s32 0, %v1937
        %v1939 = vrot.slane %v1788, %v1938
        %v1957 = vunpack.c.l.b16 %v1772
        %v1958 = vunpack.c.l.b16 %v1773
        %v1959 = vunpack.c.l.b16 %v1774
        %v1960 = vunpack.c.l.b16 %v1775
        %v1961 = vunpack.c.l.b16 %v1776
        %v1962 = vunpack.c.l.b16 %v1777
        %v1963 = vunpack.c.l.b16 %v1778
        %v1964 = vunpack.c.l.b16 %v1779
        %v1965 = vunpack.c.l.b16 %v1780
        %v1966 = vunpack.c.l.b16 %v1781
        %v1967 = vunpack.c.l.b16 %v1782
        %v1968 = vunpack.c.l.b16 %v1783
        %v1969 = vunpack.c.l.b16 %v1784
        %v1970 = vunpack.c.l.b16 %v1785
        %v1971 = vunpack.c.l.b16 %v1786
        %v1972 = vunpack.c.l.b16 %v1787
        %v1973 = vpack.c.b16 %v1958, %v1957
        %v1974 = vpack.c.b16 %v1960, %v1959
        %v1975 = vpack.c.b16 %v1962, %v1961
        %v1976 = vpack.c.b16 %v1964, %v1963
        %v1977 = vpack.c.b16 %v1966, %v1965
        %v1978 = vpack.c.b16 %v1968, %v1967
        %v1979 = vpack.c.b16 %v1970, %v1969
        %v1980 = vpack.c.b16 %v1972, %v1971
        %1989 = vmatprep.subr.bf16.mxu0 0
        %1990 = vmatpush1.bf16.msra.mxu0 %v1980
        %1991 = vmatprep.subr.bf16.mxu0 0
        %1992 = vmatpush1.bf16.msra.mxu0 %v1979
        %1993 = vmatprep.subr.bf16.mxu0 0
        %1994 = vmatpush1.bf16.msra.mxu0 %v1978
        %1995 = vmatprep.subr.bf16.mxu0 0
        %1996 = vmatpush1.bf16.msra.mxu0 %v1977
        %1997 = vmatprep.subr.bf16.mxu0 0
        %1998 = vmatpush1.bf16.msra.mxu0 %v1976
        %1999 = vmatprep.subr.bf16.mxu0 0
        %2000 = vmatpush1.bf16.msra.mxu0 %v1975
        %2001 = vmatprep.subr.bf16.mxu0 0
        %2002 = vmatpush1.bf16.msra.mxu0 %v1974
        %2003 = vmatprep.subr.bf16.mxu0 0
        %2004 = vmatpush1.bf16.msra.mxu0 %v1973
        %2005 = vmatprep.subr.bf16.mxu0 0
        %2006 = vmatpush2.bf16.msra.mxu0 0
        %2007 = vmatprep.subr.bf16.mxu0 0
        %2008 = vmatpush2.bf16.msra.mxu0 0
        %2009 = vmatprep.subr.bf16.mxu0 0
        %2010 = vmatpush2.bf16.msra.mxu0 0
        %2011 = vmatprep.subr.bf16.mxu0 0
        %2012 = vmatpush2.bf16.msra.mxu0 0
        %2013 = vmatprep.subr.bf16.mxu0 0
        %2014 = vmatpush2.bf16.msra.mxu0 0
        %2015 = vmatprep.subr.bf16.mxu0 0
        %2016 = vmatpush2.bf16.msra.mxu0 0
        %2017 = vmatprep.subr.bf16.mxu0 0
        %2018 = vmatpush2.bf16.msra.mxu0 0
        %2019 = vmatprep.subr.bf16.mxu0 0
        %2020 = vmatpush2.bf16.msra.mxu0 0
        %2021 = vmatprep.mubr.bf16.mxu0 0
        %2022 = vmatmul.mubr.bf16.gmra.mxu0 %v1840
        %v2023 = vpop.f32.mrf.mxu0
        %v2024 = vadd.f32 %v1939, %v2023
        %v2025 = vpop.f32.mrf.mxu0
        %v2026 = vpop.f32.mrf.mxu0
        %v2027 = vpop.f32.mrf.mxu0
        %2028 = vdwg.mxu0
        %v2030 = vlaneseq
        %v2031 = vshrl.u32 %v2030, 7
        %v2032 = vsub.s32 0, %v2031
        %v2033 = vrot.slane %v1805, %v2032
        %v2051 = vunpack.c.l.b16 %v1789
        %v2052 = vunpack.c.l.b16 %v1790
        %v2053 = vunpack.c.l.b16 %v1791
        %v2054 = vunpack.c.l.b16 %v1792
        %v2055 = vunpack.c.l.b16 %v1793
        %v2056 = vunpack.c.l.b16 %v1794
        %v2057 = vunpack.c.l.b16 %v1795
        %v2058 = vunpack.c.l.b16 %v1796
        %v2059 = vunpack.c.l.b16 %v1797
        %v2060 = vunpack.c.l.b16 %v1798
        %v2061 = vunpack.c.l.b16 %v1799
        %v2062 = vunpack.c.l.b16 %v1800
        %v2063 = vunpack.c.l.b16 %v1801
        %v2064 = vunpack.c.l.b16 %v1802
        %v2065 = vunpack.c.l.b16 %v1803
        %v2066 = vunpack.c.l.b16 %v1804
        %v2067 = vpack.c.b16 %v2052, %v2051
        %v2068 = vpack.c.b16 %v2054, %v2053
        %v2069 = vpack.c.b16 %v2056, %v2055
        %v2070 = vpack.c.b16 %v2058, %v2057
        %v2071 = vpack.c.b16 %v2060, %v2059
        %v2072 = vpack.c.b16 %v2062, %v2061
        %v2073 = vpack.c.b16 %v2064, %v2063
        %v2074 = vpack.c.b16 %v2066, %v2065
        %2083 = vmatprep.subr.bf16.mxu0 0
        %2084 = vmatpush1.bf16.msra.mxu0 %v2074
        %2085 = vmatprep.subr.bf16.mxu0 0
        %2086 = vmatpush1.bf16.msra.mxu0 %v2073
        %2087 = vmatprep.subr.bf16.mxu0 0
        %2088 = vmatpush1.bf16.msra.mxu0 %v2072
        %2089 = vmatprep.subr.bf16.mxu0 0
        %2090 = vmatpush1.bf16.msra.mxu0 %v2071
        %2091 = vmatprep.subr.bf16.mxu0 0
        %2092 = vmatpush1.bf16.msra.mxu0 %v2070
        %2093 = vmatprep.subr.bf16.mxu0 0
        %2094 = vmatpush1.bf16.msra.mxu0 %v2069
        %2095 = vmatprep.subr.bf16.mxu0 0
        %2096 = vmatpush1.bf16.msra.mxu0 %v2068
        %2097 = vmatprep.subr.bf16.mxu0 0
        %2098 = vmatpush1.bf16.msra.mxu0 %v2067
        %2099 = vmatprep.subr.bf16.mxu0 0
        %2100 = vmatpush2.bf16.msra.mxu0 0
        %2101 = vmatprep.subr.bf16.mxu0 0
        %2102 = vmatpush2.bf16.msra.mxu0 0
        %2103 = vmatprep.subr.bf16.mxu0 0
        %2104 = vmatpush2.bf16.msra.mxu0 0
        %2105 = vmatprep.subr.bf16.mxu0 0
        %2106 = vmatpush2.bf16.msra.mxu0 0
        %2107 = vmatprep.subr.bf16.mxu0 0
        %2108 = vmatpush2.bf16.msra.mxu0 0
        %2109 = vmatprep.subr.bf16.mxu0 0
        %2110 = vmatpush2.bf16.msra.mxu0 0
        %2111 = vmatprep.subr.bf16.mxu0 0
        %2112 = vmatpush2.bf16.msra.mxu0 0
        %2113 = vmatprep.subr.bf16.mxu0 0
        %2114 = vmatpush2.bf16.msra.mxu0 0
        %2115 = vmatprep.mubr.bf16.mxu0 0
        %2116 = vmatmul.mubr.bf16.gmra.mxu0 %v1840
        %v2117 = vpop.f32.mrf.mxu0
        %v2118 = vadd.f32 %v2033, %v2117
        %v2119 = vpop.f32.mrf.mxu0
        %v2120 = vpop.f32.mrf.mxu0
        %v2121 = vpop.f32.mrf.mxu0
        %2122 = vdwg.mxu0
        %v2123 = vpack.c.bf16 %v1930, %v1930
        %v2124 = vpack.c.bf16 %v2024, %v2024
        %2125 = vmatprep.subr.bf16.mxu0 0
        %2126 = vmatpush1.bf16.xpose.msra.mxu0 0
        %2127 = vmatprep.subr.bf16.mxu0 0
        %2128 = vmatpush1.bf16.xpose.msra.mxu0 0
        %2129 = vmatprep.subr.bf16.mxu0 0
        %2130 = vmatpush1.bf16.xpose.msra.mxu0 0
        %2131 = vmatprep.subr.bf16.mxu0 0
        %2132 = vmatpush1.bf16.xpose.msra.mxu0 0
        %2133 = vmatprep.subr.bf16.mxu0 0
        %2134 = vmatpush1.bf16.xpose.msra.mxu0 0
        %2135 = vmatprep.subr.bf16.mxu0 0
        %2136 = vmatpush1.bf16.xpose.msra.mxu0 0
        %2137 = vmatprep.subr.bf16.mxu0 0
        %2138 = vmatpush1.bf16.xpose.msra.mxu0 0
        %2139 = vmatprep.subr.bf16.mxu0 0
        %2140 = vmatpush1.bf16.xpose.msra.mxu0 %v2124
        %2141 = vmatprep.subr.bf16.mxu0 0
        %2142 = vmatpush2.bf16.xpose.msra.mxu0 0
        %2143 = vmatprep.subr.bf16.mxu0 0
        %2144 = vmatpush2.bf16.xpose.msra.mxu0 0
        %2145 = vmatprep.subr.bf16.mxu0 0
        %2146 = vmatpush2.bf16.xpose.msra.mxu0 0
        %2147 = vmatprep.subr.bf16.mxu0 0
        %2148 = vmatpush2.bf16.xpose.msra.mxu0 0
        %2149 = vmatprep.subr.bf16.mxu0 0
        %2150 = vmatpush2.bf16.xpose.msra.mxu0 0
        %2151 = vmatprep.subr.bf16.mxu0 0
        %2152 = vmatpush2.bf16.xpose.msra.mxu0 0
        %2153 = vmatprep.subr.bf16.mxu0 0
        %2154 = vmatpush2.bf16.xpose.msra.mxu0 0
        %2155 = vmatprep.subr.bf16.mxu0 0
        %2156 = vmatpush2.bf16.xpose.msra.mxu0 0
        %2157 = vmatprep.mubr.bf16.mxu0 0
        %2158 = vmatmul.mubr.bf16.gmra.mxu0 %v2123
        %v2159 = vpop.f32.mrf.mxu0
        %v2160 = vadd.f32 0.0, %v2159
        %v2161 = vpop.f32.mrf.mxu0
        %v2162 = vpop.f32.mrf.mxu0
        %v2163 = vpop.f32.mrf.mxu0
        %2164 = vdwg.mxu0
        %v2165 = vsel %vm1477, %v2160, -inf
        %2166 = vmax.xlane.f32.xlu0 %v2165
        %v2167 = vpop.xlane.xlu0 %2166
        %v2168 = vsub.f32 %v2160, %v2167
        %v2169 = vmul.f32 %v2168, 1.442695
        %v2170 = vpow.pop %v2169
        %v2171 = vsel %vm1477, %v2170, 0.0
        %2172 = vadd.xlane.f32.xlu0 %v2171
        %v2173 = vpop.xlane.xlu0 %2172
        %v2174 = vrcp.pop %v2173
        %v2175 = vmul.f32 %v2170, %v2174
        %v2176 = vpack.c.bf16 %v2175, %v2175
        %v2177 = vpack.c.bf16 %v2118, %v2118
        %v2179 = vsel %vm1477, %v2176, 0
        %v2182 = vsel %vm1494, %v2177, 0
        %2184 = vmatprep.subr.bf16.mxu0 0
        %2185 = vmatpush1.bf16.msra.mxu0 0
        %2186 = vmatprep.subr.bf16.mxu0 0
        %2187 = vmatpush1.bf16.msra.mxu0 0
        %2188 = vmatprep.subr.bf16.mxu0 0
        %2189 = vmatpush1.bf16.msra.mxu0 0
        %2190 = vmatprep.subr.bf16.mxu0 0
        %2191 = vmatpush1.bf16.msra.mxu0 0
        %2192 = vmatprep.subr.bf16.mxu0 0
        %2193 = vmatpush1.bf16.msra.mxu0 0
        %2194 = vmatprep.subr.bf16.mxu0 0
        %2195 = vmatpush1.bf16.msra.mxu0 0
        %2196 = vmatprep.subr.bf16.mxu0 0
        %2197 = vmatpush1.bf16.msra.mxu0 0
        %2198 = vmatprep.subr.bf16.mxu0 0
        %2199 = vmatpush1.bf16.msra.mxu0 %v2182
        %2200 = vmatprep.subr.bf16.mxu0 0
        %2201 = vmatpush2.bf16.msra.mxu0 0
        %2202 = vmatprep.subr.bf16.mxu0 0
        %2203 = vmatpush2.bf16.msra.mxu0 0
        %2204 = vmatprep.subr.bf16.mxu0 0
        %2205 = vmatpush2.bf16.msra.mxu0 0
        %2206 = vmatprep.subr.bf16.mxu0 0
        %2207 = vmatpush2.bf16.msra.mxu0 0
        %2208 = vmatprep.subr.bf16.mxu0 0
        %2209 = vmatpush2.bf16.msra.mxu0 0
        %2210 = vmatprep.subr.bf16.mxu0 0
        %2211 = vmatpush2.bf16.msra.mxu0 0
        %2212 = vmatprep.subr.bf16.mxu0 0
        %2213 = vmatpush2.bf16.msra.mxu0 0
        %2214 = vmatprep.subr.bf16.mxu0 0
        %2215 = vmatpush2.bf16.msra.mxu0 0
        %2216 = vmatprep.mubr.bf16.mxu0 0
        %2217 = vmatmul.mubr.bf16.gmra.mxu0 %v2179
        %v2218 = vpop.f32.mrf.mxu0
        %v2219 = vadd.f32 %v1930, %v2218
        %v2220 = vpop.f32.mrf.mxu0
        %v2221 = vpop.f32.mrf.mxu0
        %v2222 = vpop.f32.mrf.mxu0
        %2223 = vdwg.mxu0
        %2224 = vadd.xlane.f32.xlu0 %v2219
        %v2225 = vpop.xlane.xlu0 %2224
        %v2226 = vmul.f32 %v2225, 0.015625
        %v2227 = vsub.f32 %v2219, %v2226
        %v2228 = vmul.f32 %v2227, %v1065
        %v2229 = vmul.f32 %v2228, %v2228
        %2230 = vadd.xlane.f32.xlu0 %v2229
        %v2231 = vpop.xlane.xlu0 %2230
        %v2232 = vmul.f32 %v2231, 0.015625
        %v2233 = vadd.f32 %v2232, 1e-05
        %v2234 = vrsqrt.pop %v2233
        %v2235 = vmul.f32 %v2228, %v2234
        %v2236 = vpack.c.bf16 %v2235, %v2235
        %v2238 = vlaneseq
        %v2239 = vshrl.u32 %v2238, 7
        %v2240 = vsub.s32 0, %v2239
        %v2241 = vrot.slane %v1822, %v2240
        %v2259 = vunpack.c.l.b16 %v1806
        %v2260 = vunpack.c.l.b16 %v1807
        %v2261 = vunpack.c.l.b16 %v1808
        %v2262 = vunpack.c.l.b16 %v1809
        %v2263 = vunpack.c.l.b16 %v1810
        %v2264 = vunpack.c.l.b16 %v1811
        %v2265 = vunpack.c.l.b16 %v1812
        %v2266 = vunpack.c.l.b16 %v1813
        %v2267 = vunpack.c.l.b16 %v1814
        %v2268 = vunpack.c.l.b16 %v1815
        %v2269 = vunpack.c.l.b16 %v1816
        %v2270 = vunpack.c.l.b16 %v1817
        %v2271 = vunpack.c.l.b16 %v1818
        %v2272 = vunpack.c.l.b16 %v1819
        %v2273 = vunpack.c.l.b16 %v1820
        %v2274 = vunpack.c.l.b16 %v1821
        %v2275 = vpack.c.b16 %v2260, %v2259
        %v2276 = vpack.c.b16 %v2262, %v2261
        %v2277 = vpack.c.b16 %v2264, %v2263
        %v2278 = vpack.c.b16 %v2266, %v2265
        %v2279 = vpack.c.b16 %v2268, %v2267
        %v2280 = vpack.c.b16 %v2270, %v2269
        %v2281 = vpack.c.b16 %v2272, %v2271
        %v2282 = vpack.c.b16 %v2274, %v2273
        %2291 = vmatprep.subr.bf16.mxu0 0
        %2292 = vmatpush1.bf16.msra.mxu0 %v2282
        %2293 = vmatprep.subr.bf16.mxu0 0
        %2294 = vmatpush1.bf16.msra.mxu0 %v2281
        %2295 = vmatprep.subr.bf16.mxu0 0
        %2296 = vmatpush1.bf16.msra.mxu0 %v2280
        %2297 = vmatprep.subr.bf16.mxu0 0
        %2298 = vmatpush1.bf16.msra.mxu0 %v2279
        %2299 = vmatprep.subr.bf16.mxu0 0
        %2300 = vmatpush1.bf16.msra.mxu0 %v2278
        %2301 = vmatprep.subr.bf16.mxu0 0
        %2302 = vmatpush1.bf16.msra.mxu0 %v2277
        %2303 = vmatprep.subr.bf16.mxu0 0
        %2304 = vmatpush1.bf16.msra.mxu0 %v2276
        %2305 = vmatprep.subr.bf16.mxu0 0
        %2306 = vmatpush1.bf16.msra.mxu0 %v2275
        %2307 = vmatprep.subr.bf16.mxu0 0
        %2308 = vmatpush2.bf16.msra.mxu0 0
        %2309 = vmatprep.subr.bf16.mxu0 0
        %2310 = vmatpush2.bf16.msra.mxu0 0
        %2311 = vmatprep.subr.bf16.mxu0 0
        %2312 = vmatpush2.bf16.msra.mxu0 0
        %2313 = vmatprep.subr.bf16.mxu0 0
        %2314 = vmatpush2.bf16.msra.mxu0 0
        %2315 = vmatprep.subr.bf16.mxu0 0
        %2316 = vmatpush2.bf16.msra.mxu0 0
        %2317 = vmatprep.subr.bf16.mxu0 0
        %2318 = vmatpush2.bf16.msra.mxu0 0
        %2319 = vmatprep.subr.bf16.mxu0 0
        %2320 = vmatpush2.bf16.msra.mxu0 0
        %2321 = vmatprep.subr.bf16.mxu0 0
        %2322 = vmatpush2.bf16.msra.mxu0 0
        %2323 = vmatprep.mubr.bf16.mxu0 0
        %2324 = vmatmul.mubr.bf16.gmra.mxu0 %v2236
        %v2325 = vpop.f32.mrf.mxu0
        %v2326 = vadd.f32 %v2241, %v2325
        %v2327 = vpop.f32.mrf.mxu0
        %v2328 = vpop.f32.mrf.mxu0
        %v2329 = vpop.f32.mrf.mxu0
        %2330 = vdwg.mxu0
        %v2331 = vmax.f32 %v2326, 0.0
        %v2332 = vpack.c.bf16 %v2331, %v2331
        %v2349 = vunpack.c.l.b16 %v1823
        %v2350 = vunpack.c.l.b16 %v1824
        %v2351 = vunpack.c.l.b16 %v1825
        %v2352 = vunpack.c.l.b16 %v1826
        %v2353 = vunpack.c.l.b16 %v1827
        %v2354 = vunpack.c.l.b16 %v1828
        %v2355 = vunpack.c.l.b16 %v1829
        %v2356 = vunpack.c.l.b16 %v1830
        %v2357 = vunpack.c.l.b16 %v1831
        %v2358 = vunpack.c.l.b16 %v1832
        %v2359 = vunpack.c.l.b16 %v1833
        %v2360 = vunpack.c.l.b16 %v1834
        %v2361 = vunpack.c.l.b16 %v1835
        %v2362 = vunpack.c.l.b16 %v1836
        %v2363 = vunpack.c.l.b16 %v1837
        %v2364 = vunpack.c.l.b16 %v1838
        %v2365 = vpack.c.b16 %v2350, %v2349
        %v2366 = vpack.c.b16 %v2352, %v2351
        %v2367 = vpack.c.b16 %v2354, %v2353
        %v2368 = vpack.c.b16 %v2356, %v2355
        %v2369 = vpack.c.b16 %v2358, %v2357
        %v2370 = vpack.c.b16 %v2360, %v2359
        %v2371 = vpack.c.b16 %v2362, %v2361
        %v2372 = vpack.c.b16 %v2364, %v2363
        %2381 = vmatprep.subr.bf16.mxu0 0
        %2382 = vmatpush1.bf16.msra.mxu0 %v2372
        %2383 = vmatprep.subr.bf16.mxu0 0
        %2384 = vmatpush1.bf16.msra.mxu0 %v2371
        %2385 = vmatprep.subr.bf16.mxu0 0
        %2386 = vmatpush1.bf16.msra.mxu0 %v2370
        %2387 = vmatprep.subr.bf16.mxu0 0
        %2388 = vmatpush1.bf16.msra.mxu0 %v2369
        %2389 = vmatprep.subr.bf16.mxu0 0
        %2390 = vmatpush1.bf16.msra.mxu0 %v2368
        %2391 = vmatprep.subr.bf16.mxu0 0
        %2392 = vmatpush1.bf16.msra.mxu0 %v2367
        %2393 = vmatprep.subr.bf16.mxu0 0
        %2394 = vmatpush1.bf16.msra.mxu0 %v2366
        %2395 = vmatprep.subr.bf16.mxu0 0
        %2396 = vmatpush1.bf16.msra.mxu0 %v2365
        %2397 = vmatprep.subr.bf16.mxu0 0
        %2398 = vmatpush2.bf16.msra.mxu0 0
        %2399 = vmatprep.subr.bf16.mxu0 0
        %2400 = vmatpush2.bf16.msra.mxu0 0
        %2401 = vmatprep.subr.bf16.mxu0 0
        %2402 = vmatpush2.bf16.msra.mxu0 0
        %2403 = vmatprep.subr.bf16.mxu0 0
        %2404 = vmatpush2.bf16.msra.mxu0 0
        %2405 = vmatprep.subr.bf16.mxu0 0
        %2406 = vmatpush2.bf16.msra.mxu0 0
        %2407 = vmatprep.subr.bf16.mxu0 0
        %2408 = vmatpush2.bf16.msra.mxu0 0
        %2409 = vmatprep.subr.bf16.mxu0 0
        %2410 = vmatpush2.bf16.msra.mxu0 0
        %2411 = vmatprep.subr.bf16.mxu0 0
        %2412 = vmatpush2.bf16.msra.mxu0 0
        %2413 = vmatprep.mubr.bf16.mxu0 0
        %2414 = vmatmul.mubr.bf16.gmra.mxu0 %v2332
        %v2415 = vpop.f32.mrf.mxu0
        %v2416 = vadd.f32 0.0, %v2415
        %v2417 = vpop.f32.mrf.mxu0
        %v2418 = vpop.f32.mrf.mxu0
        %v2419 = vpop.f32.mrf.mxu0
        %2420 = vdwg.mxu0
        %v2421 = vadd.f32 %v2235, %v2416
        %v2423 = vlaneseq
        %v2424 = vshrl.u32 %v2423, 7
        %v2425 = vsub.s32 0, %v2424
        %v2426 = vrot.slane %v1839, %v2425
        %v2428 = vadd.f32 %v2421, %v2426
        %2429 = vadd.xlane.f32.xlu0 %v2428
        %v2430 = vpop.xlane.xlu0 %2429
        %v2431 = vmul.f32 %v2430, 0.015625
        %v2432 = vsub.f32 %v2428, %v2431
        %v2433 = vmul.f32 %v2432, %v1065
        %v2434 = vmul.f32 %v2433, %v2433
        %2435 = vadd.xlane.f32.xlu0 %v2434
        %v2436 = vpop.xlane.xlu0 %2435
        %v2437 = vmul.f32 %v2436, 0.015625
        %v2438 = vadd.f32 %v2437, 1e-05
        %v2439 = vrsqrt.pop %v2438
        %v2440 = vmul.f32 %v2433, %v2439
        %s2441 = scalar_lea.vmem [#allocation17], 64
        %v2442 = vld [vmem:[%s2441] sm:$0xf]
        %v2443 = vld [vmem:[%s2441 + $0x4] sm:$0xf]
        %v2444 = vld [vmem:[%s2441 + $0x8] sm:$0xf]
        %v2445 = vld [vmem:[%s2441 + $0xc] sm:$0xf]
        %v2446 = vld [vmem:[%s2441 + $0x10] sm:$0xf]
        %v2447 = vld [vmem:[%s2441 + $0x14] sm:$0xf]
        %v2448 = vld [vmem:[%s2441 + $0x18] sm:$0xf]
        %v2449 = vld [vmem:[%s2441 + $0x1c] sm:$0xf]
        %v2450 = vld [vmem:[%s2441 + $0x20] sm:$0xf]
        %v2451 = vld [vmem:[%s2441 + $0x24] sm:$0xf]
        %v2452 = vld [vmem:[%s2441 + $0x28] sm:$0xf]
        %v2453 = vld [vmem:[%s2441 + $0x2c] sm:$0xf]
        %v2454 = vld [vmem:[%s2441 + $0x30] sm:$0xf]
        %v2455 = vld [vmem:[%s2441 + $0x34] sm:$0xf]
        %v2456 = vld [vmem:[%s2441 + $0x38] sm:$0xf]
        %v2457 = vld [vmem:[%s2441 + $0x3c] sm:$0xf]
        %s2458 = scalar_lea.vmem %s12, 1
        %v2459 = vld [vmem:[%s2458] sm:$0x1]
        %s2460 = scalar_lea.vmem [#allocation19], 64
        %v2461 = vld [vmem:[%s2460] sm:$0xf]
        %v2462 = vld [vmem:[%s2460 + $0x4] sm:$0xf]
        %v2463 = vld [vmem:[%s2460 + $0x8] sm:$0xf]
        %v2464 = vld [vmem:[%s2460 + $0xc] sm:$0xf]
        %v2465 = vld [vmem:[%s2460 + $0x10] sm:$0xf]
        %v2466 = vld [vmem:[%s2460 + $0x14] sm:$0xf]
        %v2467 = vld [vmem:[%s2460 + $0x18] sm:$0xf]
        %v2468 = vld [vmem:[%s2460 + $0x1c] sm:$0xf]
        %v2469 = vld [vmem:[%s2460 + $0x20] sm:$0xf]
        %v2470 = vld [vmem:[%s2460 + $0x24] sm:$0xf]
        %v2471 = vld [vmem:[%s2460 + $0x28] sm:$0xf]
        %v2472 = vld [vmem:[%s2460 + $0x2c] sm:$0xf]
        %v2473 = vld [vmem:[%s2460 + $0x30] sm:$0xf]
        %v2474 = vld [vmem:[%s2460 + $0x34] sm:$0xf]
        %v2475 = vld [vmem:[%s2460 + $0x38] sm:$0xf]
        %v2476 = vld [vmem:[%s2460 + $0x3c] sm:$0xf]
        %s2477 = scalar_lea.vmem %s14, 1
        %v2478 = vld [vmem:[%s2477] sm:$0x1]
        %s2479 = scalar_lea.vmem [#allocation20], 64
        %v2480 = vld [vmem:[%s2479] sm:$0xf]
        %v2481 = vld [vmem:[%s2479 + $0x4] sm:$0xf]
        %v2482 = vld [vmem:[%s2479 + $0x8] sm:$0xf]
        %v2483 = vld [vmem:[%s2479 + $0xc] sm:$0xf]
        %v2484 = vld [vmem:[%s2479 + $0x10] sm:$0xf]
        %v2485 = vld [vmem:[%s2479 + $0x14] sm:$0xf]
        %v2486 = vld [vmem:[%s2479 + $0x18] sm:$0xf]
        %v2487 = vld [vmem:[%s2479 + $0x1c] sm:$0xf]
        %v2488 = vld [vmem:[%s2479 + $0x20] sm:$0xf]
        %v2489 = vld [vmem:[%s2479 + $0x24] sm:$0xf]
        %v2490 = vld [vmem:[%s2479 + $0x28] sm:$0xf]
        %v2491 = vld [vmem:[%s2479 + $0x2c] sm:$0xf]
        %v2492 = vld [vmem:[%s2479 + $0x30] sm:$0xf]
        %v2493 = vld [vmem:[%s2479 + $0x34] sm:$0xf]
        %v2494 = vld [vmem:[%s2479 + $0x38] sm:$0xf]
        %v2495 = vld [vmem:[%s2479 + $0x3c] sm:$0xf]
        %s2496 = scalar_lea.vmem %s16, 1
        %v2497 = vld [vmem:[%s2496] sm:$0x1]
        %s2498 = scalar_lea.vmem [#allocation22], 64
        %v2499 = vld [vmem:[%s2498] sm:$0xf]
        %v2500 = vld [vmem:[%s2498 + $0x4] sm:$0xf]
        %v2501 = vld [vmem:[%s2498 + $0x8] sm:$0xf]
        %v2502 = vld [vmem:[%s2498 + $0xc] sm:$0xf]
        %v2503 = vld [vmem:[%s2498 + $0x10] sm:$0xf]
        %v2504 = vld [vmem:[%s2498 + $0x14] sm:$0xf]
        %v2505 = vld [vmem:[%s2498 + $0x18] sm:$0xf]
        %v2506 = vld [vmem:[%s2498 + $0x1c] sm:$0xf]
        %v2507 = vld [vmem:[%s2498 + $0x20] sm:$0xf]
        %v2508 = vld [vmem:[%s2498 + $0x24] sm:$0xf]
        %v2509 = vld [vmem:[%s2498 + $0x28] sm:$0xf]
        %v2510 = vld [vmem:[%s2498 + $0x2c] sm:$0xf]
        %v2511 = vld [vmem:[%s2498 + $0x30] sm:$0xf]
        %v2512 = vld [vmem:[%s2498 + $0x34] sm:$0xf]
        %v2513 = vld [vmem:[%s2498 + $0x38] sm:$0xf]
        %v2514 = vld [vmem:[%s2498 + $0x3c] sm:$0xf]
        %s2515 = scalar_lea.vmem %s18, 1
        %v2516 = vld [vmem:[%s2515] sm:$0x1]
        %s2517 = scalar_lea.vmem [#allocation23], 64
        %v2518 = vld [vmem:[%s2517] sm:$0xf]
        %v2519 = vld [vmem:[%s2517 + $0x4] sm:$0xf]
        %v2520 = vld [vmem:[%s2517 + $0x8] sm:$0xf]
        %v2521 = vld [vmem:[%s2517 + $0xc] sm:$0xf]
        %v2522 = vld [vmem:[%s2517 + $0x10] sm:$0xf]
        %v2523 = vld [vmem:[%s2517 + $0x14] sm:$0xf]
        %v2524 = vld [vmem:[%s2517 + $0x18] sm:$0xf]
        %v2525 = vld [vmem:[%s2517 + $0x1c] sm:$0xf]
        %v2526 = vld [vmem:[%s2517 + $0x20] sm:$0xf]
        %v2527 = vld [vmem:[%s2517 + $0x24] sm:$0xf]
        %v2528 = vld [vmem:[%s2517 + $0x28] sm:$0xf]
        %v2529 = vld [vmem:[%s2517 + $0x2c] sm:$0xf]
        %v2530 = vld [vmem:[%s2517 + $0x30] sm:$0xf]
        %v2531 = vld [vmem:[%s2517 + $0x34] sm:$0xf]
        %v2532 = vld [vmem:[%s2517 + $0x38] sm:$0xf]
        %v2533 = vld [vmem:[%s2517 + $0x3c] sm:$0xf]
        %s2534 = scalar_lea.vmem %s20, 1
        %v2535 = vld [vmem:[%s2534] sm:$0x1]
        %v2536 = vpack.c.bf16 %v2440, %v2440
        %v2538 = vlaneseq
        %v2539 = vshrl.u32 %v2538, 7
        %v2540 = vsub.s32 0, %v2539
        %v2541 = vrot.slane %v2459, %v2540
        %v2559 = vunpack.c.l.b16 %v2442
        %v2560 = vunpack.c.l.b16 %v2443
        %v2561 = vunpack.c.l.b16 %v2444
        %v2562 = vunpack.c.l.b16 %v2445
        %v2563 = vunpack.c.l.b16 %v2446
        %v2564 = vunpack.c.l.b16 %v2447
        %v2565 = vunpack.c.l.b16 %v2448
        %v2566 = vunpack.c.l.b16 %v2449
        %v2567 = vunpack.c.l.b16 %v2450
        %v2568 = vunpack.c.l.b16 %v2451
        %v2569 = vunpack.c.l.b16 %v2452
        %v2570 = vunpack.c.l.b16 %v2453
        %v2571 = vunpack.c.l.b16 %v2454
        %v2572 = vunpack.c.l.b16 %v2455
        %v2573 = vunpack.c.l.b16 %v2456
        %v2574 = vunpack.c.l.b16 %v2457
        %v2575 = vpack.c.b16 %v2560, %v2559
        %v2576 = vpack.c.b16 %v2562, %v2561
        %v2577 = vpack.c.b16 %v2564, %v2563
        %v2578 = vpack.c.b16 %v2566, %v2565
        %v2579 = vpack.c.b16 %v2568, %v2567
        %v2580 = vpack.c.b16 %v2570, %v2569
        %v2581 = vpack.c.b16 %v2572, %v2571
        %v2582 = vpack.c.b16 %v2574, %v2573
        %2591 = vmatprep.subr.bf16.mxu0 0
        %2592 = vmatpush1.bf16.msra.mxu0 %v2582
        %2593 = vmatprep.subr.bf16.mxu0 0
        %2594 = vmatpush1.bf16.msra.mxu0 %v2581
        %2595 = vmatprep.subr.bf16.mxu0 0
        %2596 = vmatpush1.bf16.msra.mxu0 %v2580
        %2597 = vmatprep.subr.bf16.mxu0 0
        %2598 = vmatpush1.bf16.msra.mxu0 %v2579
        %2599 = vmatprep.subr.bf16.mxu0 0
        %2600 = vmatpush1.bf16.msra.mxu0 %v2578
        %2601 = vmatprep.subr.bf16.mxu0 0
        %2602 = vmatpush1.bf16.msra.mxu0 %v2577
        %2603 = vmatprep.subr.bf16.mxu0 0
        %2604 = vmatpush1.bf16.msra.mxu0 %v2576
        %2605 = vmatprep.subr.bf16.mxu0 0
        %2606 = vmatpush1.bf16.msra.mxu0 %v2575
        %2607 = vmatprep.subr.bf16.mxu0 0
        %2608 = vmatpush2.bf16.msra.mxu0 0
        %2609 = vmatprep.subr.bf16.mxu0 0
        %2610 = vmatpush2.bf16.msra.mxu0 0
        %2611 = vmatprep.subr.bf16.mxu0 0
        %2612 = vmatpush2.bf16.msra.mxu0 0
        %2613 = vmatprep.subr.bf16.mxu0 0
        %2614 = vmatpush2.bf16.msra.mxu0 0
        %2615 = vmatprep.subr.bf16.mxu0 0
        %2616 = vmatpush2.bf16.msra.mxu0 0
        %2617 = vmatprep.subr.bf16.mxu0 0
        %2618 = vmatpush2.bf16.msra.mxu0 0
        %2619 = vmatprep.subr.bf16.mxu0 0
        %2620 = vmatpush2.bf16.msra.mxu0 0
        %2621 = vmatprep.subr.bf16.mxu0 0
        %2622 = vmatpush2.bf16.msra.mxu0 0
        %2623 = vmatprep.mubr.bf16.mxu0 0
        %2624 = vmatmul.mubr.bf16.gmra.mxu0 %v2536
        %v2625 = vpop.f32.mrf.mxu0
        %v2626 = vadd.f32 %v2541, %v2625
        %v2627 = vpop.f32.mrf.mxu0
        %v2628 = vpop.f32.mrf.mxu0
        %v2629 = vpop.f32.mrf.mxu0
        %2630 = vdwg.mxu0
        %v2632 = vlaneseq
        %v2633 = vshrl.u32 %v2632, 7
        %v2634 = vsub.s32 0, %v2633
        %v2635 = vrot.slane %v2478, %v2634
        %v2653 = vunpack.c.l.b16 %v2461
        %v2654 = vunpack.c.l.b16 %v2462
        %v2655 = vunpack.c.l.b16 %v2463
        %v2656 = vunpack.c.l.b16 %v2464
        %v2657 = vunpack.c.l.b16 %v2465
        %v2658 = vunpack.c.l.b16 %v2466
        %v2659 = vunpack.c.l.b16 %v2467
        %v2660 = vunpack.c.l.b16 %v2468
        %v2661 = vunpack.c.l.b16 %v2469
        %v2662 = vunpack.c.l.b16 %v2470
        %v2663 = vunpack.c.l.b16 %v2471
        %v2664 = vunpack.c.l.b16 %v2472
        %v2665 = vunpack.c.l.b16 %v2473
        %v2666 = vunpack.c.l.b16 %v2474
        %v2667 = vunpack.c.l.b16 %v2475
        %v2668 = vunpack.c.l.b16 %v2476
        %v2669 = vpack.c.b16 %v2654, %v2653
        %v2670 = vpack.c.b16 %v2656, %v2655
        %v2671 = vpack.c.b16 %v2658, %v2657
        %v2672 = vpack.c.b16 %v2660, %v2659
        %v2673 = vpack.c.b16 %v2662, %v2661
        %v2674 = vpack.c.b16 %v2664, %v2663
        %v2675 = vpack.c.b16 %v2666, %v2665
        %v2676 = vpack.c.b16 %v2668, %v2667
        %2685 = vmatprep.subr.bf16.mxu0 0
        %2686 = vmatpush1.bf16.msra.mxu0 %v2676
        %2687 = vmatprep.subr.bf16.mxu0 0
        %2688 = vmatpush1.bf16.msra.mxu0 %v2675
        %2689 = vmatprep.subr.bf16.mxu0 0
        %2690 = vmatpush1.bf16.msra.mxu0 %v2674
        %2691 = vmatprep.subr.bf16.mxu0 0
        %2692 = vmatpush1.bf16.msra.mxu0 %v2673
        %2693 = vmatprep.subr.bf16.mxu0 0
        %2694 = vmatpush1.bf16.msra.mxu0 %v2672
        %2695 = vmatprep.subr.bf16.mxu0 0
        %2696 = vmatpush1.bf16.msra.mxu0 %v2671
        %2697 = vmatprep.subr.bf16.mxu0 0
        %2698 = vmatpush1.bf16.msra.mxu0 %v2670
        %2699 = vmatprep.subr.bf16.mxu0 0
        %2700 = vmatpush1.bf16.msra.mxu0 %v2669
        %2701 = vmatprep.subr.bf16.mxu0 0
        %2702 = vmatpush2.bf16.msra.mxu0 0
        %2703 = vmatprep.subr.bf16.mxu0 0
        %2704 = vmatpush2.bf16.msra.mxu0 0
        %2705 = vmatprep.subr.bf16.mxu0 0
        %2706 = vmatpush2.bf16.msra.mxu0 0
        %2707 = vmatprep.subr.bf16.mxu0 0
        %2708 = vmatpush2.bf16.msra.mxu0 0
        %2709 = vmatprep.subr.bf16.mxu0 0
        %2710 = vmatpush2.bf16.msra.mxu0 0
        %2711 = vmatprep.subr.bf16.mxu0 0
        %2712 = vmatpush2.bf16.msra.mxu0 0
        %2713 = vmatprep.subr.bf16.mxu0 0
        %2714 = vmatpush2.bf16.msra.mxu0 0
        %2715 = vmatprep.subr.bf16.mxu0 0
        %2716 = vmatpush2.bf16.msra.mxu0 0
        %2717 = vmatprep.mubr.bf16.mxu0 0
        %2718 = vmatmul.mubr.bf16.gmra.mxu0 %v2536
        %v2719 = vpop.f32.mrf.mxu0
        %v2720 = vadd.f32 %v2635, %v2719
        %v2721 = vpop.f32.mrf.mxu0
        %v2722 = vpop.f32.mrf.mxu0
        %v2723 = vpop.f32.mrf.mxu0
        %2724 = vdwg.mxu0
        %v2726 = vlaneseq
        %v2727 = vshrl.u32 %v2726, 7
        %v2728 = vsub.s32 0, %v2727
        %v2729 = vrot.slane %v2497, %v2728
        %v2747 = vunpack.c.l.b16 %v2480
        %v2748 = vunpack.c.l.b16 %v2481
        %v2749 = vunpack.c.l.b16 %v2482
        %v2750 = vunpack.c.l.b16 %v2483
        %v2751 = vunpack.c.l.b16 %v2484
        %v2752 = vunpack.c.l.b16 %v2485
        %v2753 = vunpack.c.l.b16 %v2486
        %v2754 = vunpack.c.l.b16 %v2487
        %v2755 = vunpack.c.l.b16 %v2488
        %v2756 = vunpack.c.l.b16 %v2489
        %v2757 = vunpack.c.l.b16 %v2490
        %v2758 = vunpack.c.l.b16 %v2491
        %v2759 = vunpack.c.l.b16 %v2492
        %v2760 = vunpack.c.l.b16 %v2493
        %v2761 = vunpack.c.l.b16 %v2494
        %v2762 = vunpack.c.l.b16 %v2495
        %v2763 = vpack.c.b16 %v2748, %v2747
        %v2764 = vpack.c.b16 %v2750, %v2749
        %v2765 = vpack.c.b16 %v2752, %v2751
        %v2766 = vpack.c.b16 %v2754, %v2753
        %v2767 = vpack.c.b16 %v2756, %v2755
        %v2768 = vpack.c.b16 %v2758, %v2757
        %v2769 = vpack.c.b16 %v2760, %v2759
        %v2770 = vpack.c.b16 %v2762, %v2761
        %2779 = vmatprep.subr.bf16.mxu0 0
        %2780 = vmatpush1.bf16.msra.mxu0 %v2770
        %2781 = vmatprep.subr.bf16.mxu0 0
        %2782 = vmatpush1.bf16.msra.mxu0 %v2769
        %2783 = vmatprep.subr.bf16.mxu0 0
        %2784 = vmatpush1.bf16.msra.mxu0 %v2768
        %2785 = vmatprep.subr.bf16.mxu0 0
        %2786 = vmatpush1.bf16.msra.mxu0 %v2767
        %2787 = vmatprep.subr.bf16.mxu0 0
        %2788 = vmatpush1.bf16.msra.mxu0 %v2766
        %2789 = vmatprep.subr.bf16.mxu0 0
        %2790 = vmatpush1.bf16.msra.mxu0 %v2765
        %2791 = vmatprep.subr.bf16.mxu0 0
        %2792 = vmatpush1.bf16.msra.mxu0 %v2764
        %2793 = vmatprep.subr.bf16.mxu0 0
        %2794 = vmatpush1.bf16.msra.mxu0 %v2763
        %2795 = vmatprep.subr.bf16.mxu0 0
        %2796 = vmatpush2.bf16.msra.mxu0 0
        %2797 = vmatprep.subr.bf16.mxu0 0
        %2798 = vmatpush2.bf16.msra.mxu0 0
        %2799 = vmatprep.subr.bf16.mxu0 0
        %2800 = vmatpush2.bf16.msra.mxu0 0
        %2801 = vmatprep.subr.bf16.mxu0 0
        %2802 = vmatpush2.bf16.msra.mxu0 0
        %2803 = vmatprep.subr.bf16.mxu0 0
        %2804 = vmatpush2.bf16.msra.mxu0 0
        %2805 = vmatprep.subr.bf16.mxu0 0
        %2806 = vmatpush2.bf16.msra.mxu0 0
        %2807 = vmatprep.subr.bf16.mxu0 0
        %2808 = vmatpush2.bf16.msra.mxu0 0
        %2809 = vmatprep.subr.bf16.mxu0 0
        %2810 = vmatpush2.bf16.msra.mxu0 0
        %2811 = vmatprep.mubr.bf16.mxu0 0
        %2812 = vmatmul.mubr.bf16.gmra.mxu0 %v2536
        %v2813 = vpop.f32.mrf.mxu0
        %v2814 = vadd.f32 %v2729, %v2813
        %v2815 = vpop.f32.mrf.mxu0
        %v2816 = vpop.f32.mrf.mxu0
        %v2817 = vpop.f32.mrf.mxu0
        %2818 = vdwg.mxu0
        %v2819 = vpack.c.bf16 %v2626, %v2626
        %v2820 = vpack.c.bf16 %v2720, %v2720
        %2821 = vmatprep.subr.bf16.mxu0 0
        %2822 = vmatpush1.bf16.xpose.msra.mxu0 0
        %2823 = vmatprep.subr.bf16.mxu0 0
        %2824 = vmatpush1.bf16.xpose.msra.mxu0 0
        %2825 = vmatprep.subr.bf16.mxu0 0
        %2826 = vmatpush1.bf16.xpose.msra.mxu0 0
        %2827 = vmatprep.subr.bf16.mxu0 0
        %2828 = vmatpush1.bf16.xpose.msra.mxu0 0
        %2829 = vmatprep.subr.bf16.mxu0 0
        %2830 = vmatpush1.bf16.xpose.msra.mxu0 0
        %2831 = vmatprep.subr.bf16.mxu0 0
        %2832 = vmatpush1.bf16.xpose.msra.mxu0 0
        %2833 = vmatprep.subr.bf16.mxu0 0
        %2834 = vmatpush1.bf16.xpose.msra.mxu0 0
        %2835 = vmatprep.subr.bf16.mxu0 0
        %2836 = vmatpush1.bf16.xpose.msra.mxu0 %v2820
        %2837 = vmatprep.subr.bf16.mxu0 0
        %2838 = vmatpush2.bf16.xpose.msra.mxu0 0
        %2839 = vmatprep.subr.bf16.mxu0 0
        %2840 = vmatpush2.bf16.xpose.msra.mxu0 0
        %2841 = vmatprep.subr.bf16.mxu0 0
        %2842 = vmatpush2.bf16.xpose.msra.mxu0 0
        %2843 = vmatprep.subr.bf16.mxu0 0
        %2844 = vmatpush2.bf16.xpose.msra.mxu0 0
        %2845 = vmatprep.subr.bf16.mxu0 0
        %2846 = vmatpush2.bf16.xpose.msra.mxu0 0
        %2847 = vmatprep.subr.bf16.mxu0 0
        %2848 = vmatpush2.bf16.xpose.msra.mxu0 0
        %2849 = vmatprep.subr.bf16.mxu0 0
        %2850 = vmatpush2.bf16.xpose.msra.mxu0 0
        %2851 = vmatprep.subr.bf16.mxu0 0
        %2852 = vmatpush2.bf16.xpose.msra.mxu0 0
        %2853 = vmatprep.mubr.bf16.mxu0 0
        %2854 = vmatmul.mubr.bf16.gmra.mxu0 %v2819
        %v2855 = vpop.f32.mrf.mxu0
        %v2856 = vadd.f32 0.0, %v2855
        %v2857 = vpop.f32.mrf.mxu0
        %v2858 = vpop.f32.mrf.mxu0
        %v2859 = vpop.f32.mrf.mxu0
        %2860 = vdwg.mxu0
        %v2861 = vsel %vm1477, %v2856, -inf
        %2862 = vmax.xlane.f32.xlu0 %v2861
        %v2863 = vpop.xlane.xlu0 %2862
        %v2864 = vsub.f32 %v2856, %v2863
        %v2865 = vmul.f32 %v2864, 1.442695
        %v2866 = vpow.pop %v2865
        %v2867 = vsel %vm1477, %v2866, 0.0
        %2868 = vadd.xlane.f32.xlu0 %v2867
        %v2869 = vpop.xlane.xlu0 %2868
        %v2870 = vrcp.pop %v2869
        %v2871 = vmul.f32 %v2866, %v2870
        %v2872 = vpack.c.bf16 %v2871, %v2871
        %v2873 = vpack.c.bf16 %v2814, %v2814
        %v2875 = vsel %vm1477, %v2872, 0
        %v2878 = vsel %vm1494, %v2873, 0
        %2880 = vmatprep.subr.bf16.mxu0 0
        %2881 = vmatpush1.bf16.msra.mxu0 0
        %2882 = vmatprep.subr.bf16.mxu0 0
        %2883 = vmatpush1.bf16.msra.mxu0 0
        %2884 = vmatprep.subr.bf16.mxu0 0
        %2885 = vmatpush1.bf16.msra.mxu0 0
        %2886 = vmatprep.subr.bf16.mxu0 0
        %2887 = vmatpush1.bf16.msra.mxu0 0
        %2888 = vmatprep.subr.bf16.mxu0 0
        %2889 = vmatpush1.bf16.msra.mxu0 0
        %2890 = vmatprep.subr.bf16.mxu0 0
        %2891 = vmatpush1.bf16.msra.mxu0 0
        %2892 = vmatprep.subr.bf16.mxu0 0
        %2893 = vmatpush1.bf16.msra.mxu0 0
        %2894 = vmatprep.subr.bf16.mxu0 0
        %2895 = vmatpush1.bf16.msra.mxu0 %v2878
        %2896 = vmatprep.subr.bf16.mxu0 0
        %2897 = vmatpush2.bf16.msra.mxu0 0
        %2898 = vmatprep.subr.bf16.mxu0 0
        %2899 = vmatpush2.bf16.msra.mxu0 0
        %2900 = vmatprep.subr.bf16.mxu0 0
        %2901 = vmatpush2.bf16.msra.mxu0 0
        %2902 = vmatprep.subr.bf16.mxu0 0
        %2903 = vmatpush2.bf16.msra.mxu0 0
        %2904 = vmatprep.subr.bf16.mxu0 0
        %2905 = vmatpush2.bf16.msra.mxu0 0
        %2906 = vmatprep.subr.bf16.mxu0 0
        %2907 = vmatpush2.bf16.msra.mxu0 0
        %2908 = vmatprep.subr.bf16.mxu0 0
        %2909 = vmatpush2.bf16.msra.mxu0 0
        %2910 = vmatprep.subr.bf16.mxu0 0
        %2911 = vmatpush2.bf16.msra.mxu0 0
        %2912 = vmatprep.mubr.bf16.mxu0 0
        %2913 = vmatmul.mubr.bf16.gmra.mxu0 %v2875
        %v2914 = vpop.f32.mrf.mxu0
        %v2915 = vadd.f32 %v2626, %v2914
        %v2916 = vpop.f32.mrf.mxu0
        %v2917 = vpop.f32.mrf.mxu0
        %v2918 = vpop.f32.mrf.mxu0
        %2919 = vdwg.mxu0
        %2920 = vadd.xlane.f32.xlu0 %v2915
        %v2921 = vpop.xlane.xlu0 %2920
        %v2922 = vmul.f32 %v2921, 0.015625
        %v2923 = vsub.f32 %v2915, %v2922
        %v2924 = vmul.f32 %v2923, %v1065
        %v2925 = vmul.f32 %v2924, %v2924
        %2926 = vadd.xlane.f32.xlu0 %v2925
        %v2927 = vpop.xlane.xlu0 %2926
        %v2928 = vmul.f32 %v2927, 0.015625
        %v2929 = vadd.f32 %v2928, 1e-05
        %v2930 = vrsqrt.pop %v2929
        %v2931 = vmul.f32 %v2924, %v2930
        %v2932 = vpack.c.bf16 %v2931, %v2931
        %v2934 = vlaneseq
        %v2935 = vshrl.u32 %v2934, 7
        %v2936 = vsub.s32 0, %v2935
        %v2937 = vrot.slane %v2516, %v2936
        %v2955 = vunpack.c.l.b16 %v2499
        %v2956 = vunpack.c.l.b16 %v2500
        %v2957 = vunpack.c.l.b16 %v2501
        %v2958 = vunpack.c.l.b16 %v2502
        %v2959 = vunpack.c.l.b16 %v2503
        %v2960 = vunpack.c.l.b16 %v2504
        %v2961 = vunpack.c.l.b16 %v2505
        %v2962 = vunpack.c.l.b16 %v2506
        %v2963 = vunpack.c.l.b16 %v2507
        %v2964 = vunpack.c.l.b16 %v2508
        %v2965 = vunpack.c.l.b16 %v2509
        %v2966 = vunpack.c.l.b16 %v2510
        %v2967 = vunpack.c.l.b16 %v2511
        %v2968 = vunpack.c.l.b16 %v2512
        %v2969 = vunpack.c.l.b16 %v2513
        %v2970 = vunpack.c.l.b16 %v2514
        %v2971 = vpack.c.b16 %v2956, %v2955
        %v2972 = vpack.c.b16 %v2958, %v2957
        %v2973 = vpack.c.b16 %v2960, %v2959
        %v2974 = vpack.c.b16 %v2962, %v2961
        %v2975 = vpack.c.b16 %v2964, %v2963
        %v2976 = vpack.c.b16 %v2966, %v2965
        %v2977 = vpack.c.b16 %v2968, %v2967
        %v2978 = vpack.c.b16 %v2970, %v2969
        %2987 = vmatprep.subr.bf16.mxu0 0
        %2988 = vmatpush1.bf16.msra.mxu0 %v2978
        %2989 = vmatprep.subr.bf16.mxu0 0
        %2990 = vmatpush1.bf16.msra.mxu0 %v2977
        %2991 = vmatprep.subr.bf16.mxu0 0
        %2992 = vmatpush1.bf16.msra.mxu0 %v2976
        %2993 = vmatprep.subr.bf16.mxu0 0
        %2994 = vmatpush1.bf16.msra.mxu0 %v2975
        %2995 = vmatprep.subr.bf16.mxu0 0
        %2996 = vmatpush1.bf16.msra.mxu0 %v2974
        %2997 = vmatprep.subr.bf16.mxu0 0
        %2998 = vmatpush1.bf16.msra.mxu0 %v2973
        %2999 = vmatprep.subr.bf16.mxu0 0
        %3000 = vmatpush1.bf16.msra.mxu0 %v2972
        %3001 = vmatprep.subr.bf16.mxu0 0
        %3002 = vmatpush1.bf16.msra.mxu0 %v2971
        %3003 = vmatprep.subr.bf16.mxu0 0
        %3004 = vmatpush2.bf16.msra.mxu0 0
        %3005 = vmatprep.subr.bf16.mxu0 0
        %3006 = vmatpush2.bf16.msra.mxu0 0
        %3007 = vmatprep.subr.bf16.mxu0 0
        %3008 = vmatpush2.bf16.msra.mxu0 0
        %3009 = vmatprep.subr.bf16.mxu0 0
        %3010 = vmatpush2.bf16.msra.mxu0 0
        %3011 = vmatprep.subr.bf16.mxu0 0
        %3012 = vmatpush2.bf16.msra.mxu0 0
        %3013 = vmatprep.subr.bf16.mxu0 0
        %3014 = vmatpush2.bf16.msra.mxu0 0
        %3015 = vmatprep.subr.bf16.mxu0 0
        %3016 = vmatpush2.bf16.msra.mxu0 0
        %3017 = vmatprep.subr.bf16.mxu0 0
        %3018 = vmatpush2.bf16.msra.mxu0 0
        %3019 = vmatprep.mubr.bf16.mxu0 0
        %3020 = vmatmul.mubr.bf16.gmra.mxu0 %v2932
        %v3021 = vpop.f32.mrf.mxu0
        %v3022 = vadd.f32 %v2937, %v3021
        %v3023 = vpop.f32.mrf.mxu0
        %v3024 = vpop.f32.mrf.mxu0
        %v3025 = vpop.f32.mrf.mxu0
        %3026 = vdwg.mxu0
        %v3027 = vmax.f32 %v3022, 0.0
        %v3028 = vpack.c.bf16 %v3027, %v3027
        %v3045 = vunpack.c.l.b16 %v2518
        %v3046 = vunpack.c.l.b16 %v2519
        %v3047 = vunpack.c.l.b16 %v2520
        %v3048 = vunpack.c.l.b16 %v2521
        %v3049 = vunpack.c.l.b16 %v2522
        %v3050 = vunpack.c.l.b16 %v2523
        %v3051 = vunpack.c.l.b16 %v2524
        %v3052 = vunpack.c.l.b16 %v2525
        %v3053 = vunpack.c.l.b16 %v2526
        %v3054 = vunpack.c.l.b16 %v2527
        %v3055 = vunpack.c.l.b16 %v2528
        %v3056 = vunpack.c.l.b16 %v2529
        %v3057 = vunpack.c.l.b16 %v2530
        %v3058 = vunpack.c.l.b16 %v2531
        %v3059 = vunpack.c.l.b16 %v2532
        %v3060 = vunpack.c.l.b16 %v2533
        %v3061 = vpack.c.b16 %v3046, %v3045
        %v3062 = vpack.c.b16 %v3048, %v3047
        %v3063 = vpack.c.b16 %v3050, %v3049
        %v3064 = vpack.c.b16 %v3052, %v3051
        %v3065 = vpack.c.b16 %v3054, %v3053
        %v3066 = vpack.c.b16 %v3056, %v3055
        %v3067 = vpack.c.b16 %v3058, %v3057
        %v3068 = vpack.c.b16 %v3060, %v3059
        %3077 = vmatprep.subr.bf16.mxu0 0
        %3078 = vmatpush1.bf16.msra.mxu0 %v3068
        %3079 = vmatprep.subr.bf16.mxu0 0
        %3080 = vmatpush1.bf16.msra.mxu0 %v3067
        %3081 = vmatprep.subr.bf16.mxu0 0
        %3082 = vmatpush1.bf16.msra.mxu0 %v3066
        %3083 = vmatprep.subr.bf16.mxu0 0
        %3084 = vmatpush1.bf16.msra.mxu0 %v3065
        %3085 = vmatprep.subr.bf16.mxu0 0
        %3086 = vmatpush1.bf16.msra.mxu0 %v3064
        %3087 = vmatprep.subr.bf16.mxu0 0
        %3088 = vmatpush1.bf16.msra.mxu0 %v3063
        %3089 = vmatprep.subr.bf16.mxu0 0
        %3090 = vmatpush1.bf16.msra.mxu0 %v3062
        %3091 = vmatprep.subr.bf16.mxu0 0
        %3092 = vmatpush1.bf16.msra.mxu0 %v3061
        %3093 = vmatprep.subr.bf16.mxu0 0
        %3094 = vmatpush2.bf16.msra.mxu0 0
        %3095 = vmatprep.subr.bf16.mxu0 0
        %3096 = vmatpush2.bf16.msra.mxu0 0
        %3097 = vmatprep.subr.bf16.mxu0 0
        %3098 = vmatpush2.bf16.msra.mxu0 0
        %3099 = vmatprep.subr.bf16.mxu0 0
        %3100 = vmatpush2.bf16.msra.mxu0 0
        %3101 = vmatprep.subr.bf16.mxu0 0
        %3102 = vmatpush2.bf16.msra.mxu0 0
        %3103 = vmatprep.subr.bf16.mxu0 0
        %3104 = vmatpush2.bf16.msra.mxu0 0
        %3105 = vmatprep.subr.bf16.mxu0 0
        %3106 = vmatpush2.bf16.msra.mxu0 0
        %3107 = vmatprep.subr.bf16.mxu0 0
        %3108 = vmatpush2.bf16.msra.mxu0 0
        %3109 = vmatprep.mubr.bf16.mxu0 0
        %3110 = vmatmul.mubr.bf16.gmra.mxu0 %v3028
        %v3111 = vpop.f32.mrf.mxu0
        %v3112 = vadd.f32 0.0, %v3111
        %v3113 = vpop.f32.mrf.mxu0
        %v3114 = vpop.f32.mrf.mxu0
        %v3115 = vpop.f32.mrf.mxu0
        %3116 = vdwg.mxu0
        %v3117 = vadd.f32 %v2931, %v3112
        %v3119 = vlaneseq
        %v3120 = vshrl.u32 %v3119, 7
        %v3121 = vsub.s32 0, %v3120
        %v3122 = vrot.slane %v2535, %v3121
        %v3124 = vadd.f32 %v3117, %v3122
        %3125 = vadd.xlane.f32.xlu0 %v3124
        %v3126 = vpop.xlane.xlu0 %3125
        %v3127 = vmul.f32 %v3126, 0.015625
        %v3128 = vsub.f32 %v3124, %v3127
        %v3129 = vmul.f32 %v3128, %v1065
        %v3130 = vmul.f32 %v3129, %v3129
        %3131 = vadd.xlane.f32.xlu0 %v3130
        %v3132 = vpop.xlane.xlu0 %3131
        %v3133 = vmul.f32 %v3132, 0.015625
        %v3134 = vadd.f32 %v3133, 1e-05
        %v3135 = vrsqrt.pop %v3134
        %v3136 = vmul.f32 %v3129, %v3135
        %v3137 = vpack.c.bf16 %v3136, %v3136
        %v3138 = vld [vmem:[#allocation25] sm:$0xf]
        %v3139 = vld [vmem:[#allocation25 + $0x4] sm:$0xf]
        %v3140 = vld [vmem:[#allocation25 + $0x8] sm:$0xf]
        %v3141 = vld [vmem:[#allocation25 + $0xc] sm:$0xf]
        %v3142 = vld [vmem:[#allocation25 + $0x10] sm:$0xf]
        %v3143 = vld [vmem:[#allocation25 + $0x14] sm:$0xf]
        %v3144 = vld [vmem:[#allocation25 + $0x18] sm:$0xf]
        %v3145 = vld [vmem:[#allocation25 + $0x1c] sm:$0xf]
        %v3146 = vld [vmem:[#allocation25 + $0x20] sm:$0xf]
        %v3147 = vld [vmem:[#allocation25 + $0x24] sm:$0xf]
        %v3148 = vld [vmem:[#allocation25 + $0x28] sm:$0xf]
        %v3149 = vld [vmem:[#allocation25 + $0x2c] sm:$0xf]
        %v3150 = vld [vmem:[#allocation25 + $0x30] sm:$0xf]
        %v3151 = vld [vmem:[#allocation25 + $0x34] sm:$0xf]
        %v3152 = vld [vmem:[#allocation25 + $0x38] sm:$0xf]
        %v3153 = vld [vmem:[#allocation25 + $0x3c] sm:$0xf]
        %v3154 = vld [vmem:[%s22] sm:$0x1]
        %v3156 = vlaneseq
        %v3157 = vshrl.u32 %v3156, 7
        %v3158 = vsub.s32 0, %v3157
        %v3159 = vrot.slane %v3154, %v3158
        %v3177 = vunpack.c.l.b16 %v3138
        %v3178 = vunpack.c.l.b16 %v3139
        %v3179 = vunpack.c.l.b16 %v3140
        %v3180 = vunpack.c.l.b16 %v3141
        %v3181 = vunpack.c.l.b16 %v3142
        %v3182 = vunpack.c.l.b16 %v3143
        %v3183 = vunpack.c.l.b16 %v3144
        %v3184 = vunpack.c.l.b16 %v3145
        %v3185 = vunpack.c.l.b16 %v3146
        %v3186 = vunpack.c.l.b16 %v3147
        %v3187 = vunpack.c.l.b16 %v3148
        %v3188 = vunpack.c.l.b16 %v3149
        %v3189 = vunpack.c.l.b16 %v3150
        %v3190 = vunpack.c.l.b16 %v3151
        %v3191 = vunpack.c.l.b16 %v3152
        %v3192 = vunpack.c.l.b16 %v3153
        %v3193 = vpack.c.b16 %v3178, %v3177
        %v3194 = vpack.c.b16 %v3180, %v3179
        %v3195 = vpack.c.b16 %v3182, %v3181
        %v3196 = vpack.c.b16 %v3184, %v3183
        %v3197 = vpack.c.b16 %v3186, %v3185
        %v3198 = vpack.c.b16 %v3188, %v3187
        %v3199 = vpack.c.b16 %v3190, %v3189
        %v3200 = vpack.c.b16 %v3192, %v3191
        %3209 = vmatprep.subr.bf16.mxu0 0
        %3210 = vmatpush1.bf16.msra.mxu0 %v3200
        %3211 = vmatprep.subr.bf16.mxu0 0
        %3212 = vmatpush1.bf16.msra.mxu0 %v3199
        %3213 = vmatprep.subr.bf16.mxu0 0
        %3214 = vmatpush1.bf16.msra.mxu0 %v3198
        %3215 = vmatprep.subr.bf16.mxu0 0
        %3216 = vmatpush1.bf16.msra.mxu0 %v3197
        %3217 = vmatprep.subr.bf16.mxu0 0
        %3218 = vmatpush1.bf16.msra.mxu0 %v3196
        %3219 = vmatprep.subr.bf16.mxu0 0
        %3220 = vmatpush1.bf16.msra.mxu0 %v3195
        %3221 = vmatprep.subr.bf16.mxu0 0
        %3222 = vmatpush1.bf16.msra.mxu0 %v3194
        %3223 = vmatprep.subr.bf16.mxu0 0
        %3224 = vmatpush1.bf16.msra.mxu0 %v3193
        %3225 = vmatprep.subr.bf16.mxu0 0
        %3226 = vmatpush2.bf16.msra.mxu0 0
        %3227 = vmatprep.subr.bf16.mxu0 0
        %3228 = vmatpush2.bf16.msra.mxu0 0
        %3229 = vmatprep.subr.bf16.mxu0 0
        %3230 = vmatpush2.bf16.msra.mxu0 0
        %3231 = vmatprep.subr.bf16.mxu0 0
        %3232 = vmatpush2.bf16.msra.mxu0 0
        %3233 = vmatprep.subr.bf16.mxu0 0
        %3234 = vmatpush2.bf16.msra.mxu0 0
        %3235 = vmatprep.subr.bf16.mxu0 0
        %3236 = vmatpush2.bf16.msra.mxu0 0
        %3237 = vmatprep.subr.bf16.mxu0 0
        %3238 = vmatpush2.bf16.msra.mxu0 0
        %3239 = vmatprep.subr.bf16.mxu0 0
        %3240 = vmatpush2.bf16.msra.mxu0 0
        %3241 = vmatprep.mubr.bf16.mxu0 0
        %3242 = vmatmul.mubr.bf16.gmra.mxu0 %v3137
        %v3243 = vpop.f32.mrf.mxu0
        %v3244 = vadd.f32 %v3159, %v3243
        %v3245 = vpop.f32.mrf.mxu0
        %v3246 = vpop.f32.mrf.mxu0
        %v3247 = vpop.f32.mrf.mxu0
        %3248 = vdwg.mxu0
        %v3249 = vmax.f32 %v3244, 0.0
        %v3250 = vpack.c.bf16 %v3249, %v3249
        %v3251 = vld [vmem:[#allocation26] sm:$0xf]
        %v3252 = vld [vmem:[#allocation26 + $0x4] sm:$0xf]
        %v3253 = vld [vmem:[#allocation26 + $0x8] sm:$0xf]
        %v3254 = vld [vmem:[#allocation26 + $0xc] sm:$0xf]
        %v3255 = vld [vmem:[#allocation26 + $0x10] sm:$0xf]
        %v3256 = vld [vmem:[#allocation26 + $0x14] sm:$0xf]
        %v3257 = vld [vmem:[#allocation26 + $0x18] sm:$0xf]
        %v3258 = vld [vmem:[#allocation26 + $0x1c] sm:$0xf]
        %v3259 = vld [vmem:[#allocation26 + $0x20] sm:$0xf]
        %v3260 = vld [vmem:[#allocation26 + $0x24] sm:$0xf]
        %v3261 = vld [vmem:[#allocation26 + $0x28] sm:$0xf]
        %v3262 = vld [vmem:[#allocation26 + $0x2c] sm:$0xf]
        %v3263 = vld [vmem:[#allocation26 + $0x30] sm:$0xf]
        %v3264 = vld [vmem:[#allocation26 + $0x34] sm:$0xf]
        %v3265 = vld [vmem:[#allocation26 + $0x38] sm:$0xf]
        %v3266 = vld [vmem:[#allocation26 + $0x3c] sm:$0xf]
        %v3267 = vld [vmem:[%s24] sm:$0x1]
        %v3269 = vlaneseq
        %v3270 = vshrl.u32 %v3269, 7
        %v3271 = vsub.s32 0, %v3270
        %v3272 = vrot.slane %v3267, %v3271
        %v3290 = vunpack.c.l.b16 %v3251
        %v3291 = vunpack.c.l.b16 %v3252
        %v3292 = vunpack.c.l.b16 %v3253
        %v3293 = vunpack.c.l.b16 %v3254
        %v3294 = vunpack.c.l.b16 %v3255
        %v3295 = vunpack.c.l.b16 %v3256
        %v3296 = vunpack.c.l.b16 %v3257
        %v3297 = vunpack.c.l.b16 %v3258
        %v3298 = vunpack.c.l.b16 %v3259
        %v3299 = vunpack.c.l.b16 %v3260
        %v3300 = vunpack.c.l.b16 %v3261
        %v3301 = vunpack.c.l.b16 %v3262
        %v3302 = vunpack.c.l.b16 %v3263
        %v3303 = vunpack.c.l.b16 %v3264
        %v3304 = vunpack.c.l.b16 %v3265
        %v3305 = vunpack.c.l.b16 %v3266
        %v3306 = vpack.c.b16 %v3291, %v3290
        %v3307 = vpack.c.b16 %v3293, %v3292
        %v3308 = vpack.c.b16 %v3295, %v3294
        %v3309 = vpack.c.b16 %v3297, %v3296
        %v3310 = vpack.c.b16 %v3299, %v3298
        %v3311 = vpack.c.b16 %v3301, %v3300
        %v3312 = vpack.c.b16 %v3303, %v3302
        %v3313 = vpack.c.b16 %v3305, %v3304
        %3322 = vmatprep.subr.bf16.mxu0 0
        %3323 = vmatpush1.bf16.msra.mxu0 %v3313
        %3324 = vmatprep.subr.bf16.mxu0 0
        %3325 = vmatpush1.bf16.msra.mxu0 %v3312
        %3326 = vmatprep.subr.bf16.mxu0 0
        %3327 = vmatpush1.bf16.msra.mxu0 %v3311
        %3328 = vmatprep.subr.bf16.mxu0 0
        %3329 = vmatpush1.bf16.msra.mxu0 %v3310
        %3330 = vmatprep.subr.bf16.mxu0 0
        %3331 = vmatpush1.bf16.msra.mxu0 %v3309
        %3332 = vmatprep.subr.bf16.mxu0 0
        %3333 = vmatpush1.bf16.msra.mxu0 %v3308
        %3334 = vmatprep.subr.bf16.mxu0 0
        %3335 = vmatpush1.bf16.msra.mxu0 %v3307
        %3336 = vmatprep.subr.bf16.mxu0 0
        %3337 = vmatpush1.bf16.msra.mxu0 %v3306
        %3338 = vmatprep.subr.bf16.mxu0 0
        %3339 = vmatpush2.bf16.msra.mxu0 0
        %3340 = vmatprep.subr.bf16.mxu0 0
        %3341 = vmatpush2.bf16.msra.mxu0 0
        %3342 = vmatprep.subr.bf16.mxu0 0
        %3343 = vmatpush2.bf16.msra.mxu0 0
        %3344 = vmatprep.subr.bf16.mxu0 0
        %3345 = vmatpush2.bf16.msra.mxu0 0
        %3346 = vmatprep.subr.bf16.mxu0 0
        %3347 = vmatpush2.bf16.msra.mxu0 0
        %3348 = vmatprep.subr.bf16.mxu0 0
        %3349 = vmatpush2.bf16.msra.mxu0 0
        %3350 = vmatprep.subr.bf16.mxu0 0
        %3351 = vmatpush2.bf16.msra.mxu0 0
        %3352 = vmatprep.subr.bf16.mxu0 0
        %3353 = vmatpush2.bf16.msra.mxu0 0
        %3354 = vmatprep.mubr.bf16.mxu0 0
        %3355 = vmatmul.mubr.bf16.gmra.mxu0 %v3250
        %v3356 = vpop.f32.mrf.mxu0
        %v3357 = vadd.f32 %v3272, %v3356
        %v3358 = vpop.f32.mrf.mxu0
        %v3359 = vpop.f32.mrf.mxu0
        %v3360 = vpop.f32.mrf.mxu0
        %3361 = vdwg.mxu0
        %v3362 = vmax.f32 %v3357, 0.0
        %v3363 = vpack.c.bf16 %v3362, %v3362
        %v3364 = vld [vmem:[#allocation28] sm:$0xf]
        %v3365 = vld [vmem:[#allocation28 + $0x4] sm:$0xf]
        %v3366 = vld [vmem:[#allocation28 + $0x8] sm:$0xf]
        %v3367 = vld [vmem:[#allocation28 + $0xc] sm:$0xf]
        %v3368 = vld [vmem:[#allocation28 + $0x10] sm:$0xf]
        %v3369 = vld [vmem:[#allocation28 + $0x14] sm:$0xf]
        %v3370 = vld [vmem:[#allocation28 + $0x18] sm:$0xf]
        %v3371 = vld [vmem:[#allocation28 + $0x1c] sm:$0xf]
        %v3372 = vld [vmem:[#allocation28 + $0x20] sm:$0xf]
        %v3373 = vld [vmem:[#allocation28 + $0x24] sm:$0xf]
        %v3374 = vld [vmem:[#allocation28 + $0x28] sm:$0xf]
        %v3375 = vld [vmem:[#allocation28 + $0x2c] sm:$0xf]
        %v3376 = vld [vmem:[#allocation28 + $0x30] sm:$0xf]
        %v3377 = vld [vmem:[#allocation28 + $0x34] sm:$0xf]
        %v3378 = vld [vmem:[#allocation28 + $0x38] sm:$0xf]
        %v3379 = vld [vmem:[#allocation28 + $0x3c] sm:$0xf]
        %v3380 = vld [vmem:[%s26] sm:$0x1]
        %v3382 = vlaneseq
        %v3383 = vshrl.u32 %v3382, 7
        %v3384 = vsub.s32 0, %v3383
        %v3385 = vrot.slane %v3380, %v3384
        %v3403 = vunpack.c.l.b16 %v3364
        %v3404 = vunpack.c.l.b16 %v3365
        %v3405 = vunpack.c.l.b16 %v3366
        %v3406 = vunpack.c.l.b16 %v3367
        %v3407 = vunpack.c.l.b16 %v3368
        %v3408 = vunpack.c.l.b16 %v3369
        %v3409 = vunpack.c.l.b16 %v3370
        %v3410 = vunpack.c.l.b16 %v3371
        %v3411 = vunpack.c.l.b16 %v3372
        %v3412 = vunpack.c.l.b16 %v3373
        %v3413 = vunpack.c.l.b16 %v3374
        %v3414 = vunpack.c.l.b16 %v3375
        %v3415 = vunpack.c.l.b16 %v3376
        %v3416 = vunpack.c.l.b16 %v3377
        %v3417 = vunpack.c.l.b16 %v3378
        %v3418 = vunpack.c.l.b16 %v3379
        %v3419 = vpack.c.b16 %v3404, %v3403
        %v3420 = vpack.c.b16 %v3406, %v3405
        %v3421 = vpack.c.b16 %v3408, %v3407
        %v3422 = vpack.c.b16 %v3410, %v3409
        %v3423 = vpack.c.b16 %v3412, %v3411
        %v3424 = vpack.c.b16 %v3414, %v3413
        %v3425 = vpack.c.b16 %v3416, %v3415
        %v3426 = vpack.c.b16 %v3418, %v3417
        %3435 = vmatprep.subr.bf16.mxu0 0
        %3436 = vmatpush1.bf16.msra.mxu0 %v3426
        %3437 = vmatprep.subr.bf16.mxu0 0
        %3438 = vmatpush1.bf16.msra.mxu0 %v3425
        %3439 = vmatprep.subr.bf16.mxu0 0
        %3440 = vmatpush1.bf16.msra.mxu0 %v3424
        %3441 = vmatprep.subr.bf16.mxu0 0
        %3442 = vmatpush1.bf16.msra.mxu0 %v3423
        %3443 = vmatprep.subr.bf16.mxu0 0
        %3444 = vmatpush1.bf16.msra.mxu0 %v3422
        %3445 = vmatprep.subr.bf16.mxu0 0
        %3446 = vmatpush1.bf16.msra.mxu0 %v3421
        %3447 = vmatprep.subr.bf16.mxu0 0
        %3448 = vmatpush1.bf16.msra.mxu0 %v3420
        %3449 = vmatprep.subr.bf16.mxu0 0
        %3450 = vmatpush1.bf16.msra.mxu0 %v3419
        %3451 = vmatprep.subr.bf16.mxu0 0
        %3452 = vmatpush2.bf16.msra.mxu0 0
        %3453 = vmatprep.subr.bf16.mxu0 0
        %3454 = vmatpush2.bf16.msra.mxu0 0
        %3455 = vmatprep.subr.bf16.mxu0 0
        %3456 = vmatpush2.bf16.msra.mxu0 0
        %3457 = vmatprep.subr.bf16.mxu0 0
        %3458 = vmatpush2.bf16.msra.mxu0 0
        %3459 = vmatprep.subr.bf16.mxu0 0
        %3460 = vmatpush2.bf16.msra.mxu0 0
        %3461 = vmatprep.subr.bf16.mxu0 0
        %3462 = vmatpush2.bf16.msra.mxu0 0
        %3463 = vmatprep.subr.bf16.mxu0 0
        %3464 = vmatpush2.bf16.msra.mxu0 0
        %3465 = vmatprep.subr.bf16.mxu0 0
        %3466 = vmatpush2.bf16.msra.mxu0 0
        %3467 = vmatprep.mubr.bf16.mxu0 0
        %3468 = vmatmul.mubr.bf16.gmra.mxu0 %v3363
        %v3469 = vpop.f32.mrf.mxu0
        %v3470 = vadd.f32 %v3385, %v3469
        %v3471 = vpop.f32.mrf.mxu0
        %v3472 = vpop.f32.mrf.mxu0
        %v3473 = vpop.f32.mrf.mxu0
        %3474 = vdwg.mxu0
        %3475 = vst [vmem:[%s1059] sm:$0xff] %v3470
        %s3476 = sand.u32 %s632, 1
        %s3477 = scalar_lea.sflag [#allocation4], %s3476
        %s3478 = sand.u32 %s632, 1
        %s3479 = smul.addr %s3478, 8
        %s3480 = scalar_lea.vmem [#allocation29], %s3479
        // Predicated region
        $region197: #{tpu_custom_call.1} parent=127 // pred_check
          %p3481 = pneg %p642
        $region198: #{tpu_custom_call.1} parent=127 // pred_check_branch
          %3483 = sbr.rel (%p3481) target = $region200
        $region199: #{tpu_custom_call.1} parent=127 // pred_region
          %s3485 = ssub.s32 128, 128
          %3486 = vsyncadd %s3477, %s3485
          %s3487 = smul.addr %s52, 128
          %s3488 = scalar_lea.hbm %s27, %s3487
          %s3490 = sshll.u32 %s3480, 4
          %s3491 = int_to_ptr.vmem [resolvable:$true] %s3490
          %3493 = dma.vmem_to_hbm [thread:$0]  %s3491, 128, %s3488, %s3477
        $region200: #{tpu_custom_call.1} parent=127 // pred_fallthru
          _
      $region128: #{tpu_custom_call.1} parent=5 // pred_fallthru
        _
      %p3494 = scmp.le.s32.totalorder 2, %s47
      // Predicated region
      $region201: #{tpu_custom_call.1} parent=5 // pred_check
        %p3495 = pneg %p3494
      $region202: #{tpu_custom_call.1} parent=5 // pred_check_branch
        %3497 = sbr.rel (%p3495) target = $region204
      $region203: #{tpu_custom_call.1} parent=5 // pred_region
        %s3498 = ssub.s32 %s47, 2
        // Predicated region
        $region205: #{tpu_custom_call.1} parent=203 // pred_check
          %p3499 = pneg %p648
        $region206: #{tpu_custom_call.1} parent=203 // pred_check_branch
          %3501 = sbr.rel (%p3499) target = $region208
        $region207: #{tpu_custom_call.1} parent=203 // pred_region
          %s3502 = sand.u32 %s633, 1
          %s3503 = scalar_lea.sflag [#allocation4], %s3502
          %s3504 = sand.u32 %s633, 1
          %s3505 = smul.addr %s3504, 8
          %s3506 = scalar_lea.vmem [#allocation29], %s3505
          %3507 = dma.done %s3503, 128
        $region208: #{tpu_custom_call.1} parent=203 // pred_fallthru
          _
      $region204: #{tpu_custom_call.1} parent=5 // pred_fallthru
        _
    $region6: #{tpu_custom_call.1} parent=1 // loop_footer
      %s51 = sadd.s32 1, %s47
    $region7: #{tpu_custom_call.1} parent=1 // loop_footer_branch
      %46 = sbr.rel target = $region3
    $region8: #{tpu_custom_call.1} parent=1 // loop_exit
      _
    %3508 = vsyncpa [#allocation3], 1
    %s3509 = scalar_lea.sflag [#allocation3], 1
    %3510 = vsyncpa %s3509, 1
    %3511 = vsyncpa [#allocation6], 1
    %3512 = vsyncpa [#allocation9], 1
    %3513 = vsyncpa [#allocation12], 1
    %3514 = vsyncpa [#allocation15], 1
    %3515 = vsyncpa [#allocation18], 1
    %3516 = vsyncpa [#allocation21], 1
    %3517 = vsyncpa [#allocation24], 1
    %3518 = vsyncpa [#allocation27], 1
    %3519 = vsyncpa [#allocation4], 1
    %s3520 = scalar_lea.sflag [#allocation4], 1
    %3521 = vsyncpa %s3520, 1

</llo_original>
